<compile_context>
chip_gen: v5e
topology: v5e:2x2
jax: 0.10.0
libtpu: 0.0.40
codegen_flags: <defaults>
</compile_context>

<pallas_src>
import functools
import math

import jax
import jax.numpy as jnp
from jax import lax
from jax.experimental import pallas as pl
from jax.experimental.pallas import tpu as pltpu


# ----------------------------- helpers -----------------------------

def _round_up(x, m):
    return (x + m - 1) // m * m


def _vmem_ceiling_bytes():
    """Per-generation usable VMEM ceiling (with headroom for compiler internal scratch)."""
    cap = None
    try:
        info = pltpu.get_tpu_info()
        cap = getattr(info, "vmem_capacity_bytes", None)
    except Exception:
        cap = None
    if not cap:
        cap = 64 * (1 << 20)          # conservative default (v7x per-core VMEM)
    return max(int(cap * 0.875), 32 * (1 << 20))


def _layer_vmem_bytes(tt, b_pad, din_pad, h_pad, emit_y):
    """Conservative VMEM usage estimate for one layer call (assumes double buffering)."""
    x_blk = tt * b_pad * din_pad * 2                       # bf16
    y_blk = tt * b_pad * h_pad * 2 if emit_y else 0        # bf16
    gx_sc = tt * b_pad * 4 * h_pad * 4                     # f32 scratch
    weights = (din_pad + h_pad) * 4 * h_pad * 2            # bf16 W_ih + W_hh
    bias = 4 * h_pad * 4
    state = 6 * b_pad * h_pad * 4                          # h0, c0, hN, cN, h_sc, c_sc
    return 2 * (x_blk + y_blk + weights + bias + state) + gx_sc


def _pick_time_block(T, b_pad, din_pad_max, h_pad, ceiling, target=32):
    """Largest time block <= target whose blocks fit the per-generation VMEM ceiling."""
    tt = max(1, min(T, target))
    while tt > 1 and _layer_vmem_bytes(tt, b_pad, din_pad_max, h_pad, True) > ceiling:
        tt = max(1, tt // 2)
    return tt


def _prep_layer_weights(w_ih, w_hh, b_ih, b_hh, d_in, d_in_pad, H, H_pad):
    """Pad + transpose PyTorch-layout weights into lane-aligned bf16 operands.

    Gate g occupies the 128-aligned column slab [g*H_pad, g*H_pad + H).  Padded rows/cols
    are zero so padded hidden columns stay exactly zero.
    Returns (W_ih (d_in_pad, 4H_pad) bf16, W_hh (H_pad, 4H_pad) bf16, bias (1, 4H_pad) f32).
    """
    wi = jnp.zeros((d_in_pad, 4 * H_pad), jnp.float32)
    wh = jnp.zeros((H_pad, 4 * H_pad), jnp.float32)
    b = jnp.zeros((1, 4 * H_pad), jnp.float32)
    bsum = b_ih + b_hh
    for g in range(4):
        col = g * H_pad
        wi = wi.at[:d_in, col:col + H].set(w_ih[g * H:(g + 1) * H, :].T)
        wh = wh.at[:H, col:col + H].set(w_hh[g * H:(g + 1) * H, :].T)
        b = b.at[0, col:col + H].set(bsum[g * H:(g + 1) * H])
    return wi.astype(jnp.bfloat16), wh.astype(jnp.bfloat16), b


# ----------------------------- Pallas kernel (one LSTM layer) -----------------------------

def _lstm_layer_kernel(x_ref, wih_ref, whh_ref, b_ref, h0_ref, c0_ref, *refs,
                       hidden_pad, time_block, seq_len, emit_y, needs_mask):
    """One grid step = one block of `time_block` timesteps.  (h, c) carried in VMEM scratch.

    x_ref is the 2-D (time_block*B_pad, D_in_pad) bf16 slab for this block.
    """
    if emit_y:
        y_ref, hN_ref, cN_ref, gx_sc, h_sc, c_sc = refs
    else:
        y_ref = None
        hN_ref, cN_ref, gx_sc, h_sc, c_sc = refs

    blk = pl.program_id(0)
    H = hidden_pad
    B = h_sc.shape[0]

    @pl.when(blk == 0)
    def _init():
        h_sc[...] = h0_ref[...]
        c_sc[...] = c0_ref[...]

    # ---- Hoisted, time-parallel input projection: one MXU matmul at M = time_block*B ----
    # Bias is folded in here once per block (no per-step broadcast; JAX doesn't CSE it).
    gx = jnp.dot(x_ref[...], wih_ref[...], preferred_element_type=jnp.float32)
    gx_sc[...] = gx + jnp.broadcast_to(b_ref[...], gx.shape)

    w_hh = whh_ref[...]          # (H_pad, 4*H_pad) bf16, resident across the grid

    def step(t, carry):
        h_prev, c_prev = carry                               # (B, H_pad) f32
        off = pl.multiple_of(t * B, B)                       # sublane-aligned row offset
        # Serial critical path: only the recurrent matmul (K = H_pad).
        gates = gx_sc[pl.ds(off, B), :] + jnp.dot(
            h_prev.astype(jnp.bfloat16), w_hh, preferred_element_type=jnp.float32)
        # sigmoid(x) == 0.5*tanh(0.5*x) + 0.5 : one EUP op per gate instead of exp + rcp.
        # Gate slices start at 128-aligned offsets (g * H_pad) -> lane-dense, no relayout.
        i_g = 0.5 * jnp.tanh(0.5 * gates[:, 0 * H:1 * H]) + 0.5
        f_g = 0.5 * jnp.tanh(0.5 * gates[:, 1 * H:2 * H]) + 0.5
        g_g = jnp.tanh(gates[:, 2 * H:3 * H])
        o_g = 0.5 * jnp.tanh(0.5 * gates[:, 3 * H:4 * H]) + 0.5
        c_new = f_g * c_prev + i_g * g_g
        h_new = o_g * jnp.tanh(c_new)
        if needs_mask:
            # Padded tail timesteps (global_t >= seq_len) must not advance the state.
            valid = (blk * time_block + t) < seq_len
            h_new = jnp.where(valid, h_new, h_prev)
            c_new = jnp.where(valid, c_new, c_prev)
        if emit_y:
            y_ref[pl.ds(off, B), :] = h_new.astype(y_ref.dtype)   # lane-dense bf16 store
        return (h_new, c_new)

    # Bounded unroll keeps live vregs in check while giving the LLO scheduler visibility.
    h_fin, c_fin = lax.fori_loop(0, time_block, step,
                                 (h_sc[...], c_sc[...]), unroll=min(time_block, 8))
    h_sc[...] = h_fin
    c_sc[...] = c_fin

    @pl.when(blk == pl.num_programs(0) - 1)
    def _finalize():
        hN_ref[...] = h_fin
        cN_ref[...] = c_fin


def _build_layer_call(T_pad, B_pad, Din_pad, H_pad, time_block, seq_len, emit_y,
                      single_buffer_consts, vmem_limit):
    kernel = functools.partial(
        _lstm_layer_kernel, hidden_pad=H_pad, time_block=time_block, seq_len=seq_len,
        emit_y=emit_y, needs_mask=(T_pad != seq_len))

    def const_spec(shape):
        # Constant-index operands: single-buffer to avoid a 2x weight copy in VMEM.
        idx = lambda b: (0,) * len(shape)
        if single_buffer_consts and hasattr(pl, "Buffered"):
            return pl.BlockSpec(shape, idx, pipeline_mode=pl.Buffered(1))
        return pl.BlockSpec(shape, idx)

    in_specs = [
        pl.BlockSpec((time_block * B_pad, Din_pad), lambda b: (b, 0)),   # x block (2-D)
        const_spec((Din_pad, 4 * H_pad)),                                # W_ih
        const_spec((H_pad, 4 * H_pad)),                                  # W_hh
        const_spec((1, 4 * H_pad)),                                      # bias
        const_spec((B_pad, H_pad)),                                      # h0
        const_spec((B_pad, H_pad)),                                      # c0
    ]

    out_shapes = []
    out_specs = []
    if emit_y:
        out_shapes.append(jax.ShapeDtypeStruct((T_pad * B_pad, H_pad), jnp.bfloat16))
        out_specs.append(pl.BlockSpec((time_block * B_pad, H_pad), lambda b: (b, 0)))
    out_shapes += [jax.ShapeDtypeStruct((B_pad, H_pad), jnp.float32),    # final h
                   jax.ShapeDtypeStruct((B_pad, H_pad), jnp.float32)]    # final c
    out_specs += [pl.BlockSpec((B_pad, H_pad), lambda b: (0, 0)),
                  pl.BlockSpec((B_pad, H_pad), lambda b: (0, 0))]

    grid_spec = pltpu.PrefetchScalarGridSpec(
        num_scalar_prefetch=0,
        grid=(T_pad // time_block,),
        in_specs=in_specs,
        out_specs=out_specs,
        scratch_shapes=[
            pltpu.VMEM((time_block * B_pad, 4 * H_pad), jnp.float32),    # hoisted x @ W_ih
            pltpu.VMEM((B_pad, H_pad), jnp.float32),                     # h state
            pltpu.VMEM((B_pad, H_pad), jnp.float32),                     # c state
        ],
    )

    return pl.pallas_call(
        kernel,
        out_shape=tuple(out_shapes),
        grid_spec=grid_spec,
        compiler_params=pltpu.CompilerParams(
            dimension_semantics=("arbitrary",),       # sequential recurrence over time blocks
            vmem_limit_bytes=int(vmem_limit)),
    )


def lstm_layer_pallas(x_2d, w_ih, w_hh, bias, h0, c0, *, time_block, seq_len, emit_y,
                      vmem_limit):
    """Run one LSTM layer over a full (padded) sequence.

    x_2d  : (T_pad*B_pad, D_in_pad) bf16, time-major rows grouped per timestep
    w_ih  : (D_in_pad, 4*H_pad) bf16 ; w_hh : (H_pad, 4*H_pad) bf16 ; bias : (1, 4*H_pad) f32
    h0,c0 : (B_pad, H_pad) f32
    returns (y_2d?, h_final, c_final); y_2d is (T_pad*B_pad, H_pad) bf16 when emit_y.
    """
    B_pad, H_pad = h0.shape
    Din_pad = w_ih.shape[0]
    T_pad = x_2d.shape[0] // B_pad
    assert T_pad % time_block == 0

    args = (x_2d, w_ih, w_hh, bias, h0, c0)
    try:
        f = _build_layer_call(T_pad, B_pad, Din_pad, H_pad, time_block, seq_len, emit_y,
                              single_buffer_consts=True, vmem_limit=vmem_limit)
        return f(*args)
    except Exception:
        # Fallback for JAX builds where pipeline_mode=pl.Buffered(1) is rejected for
        # top-level pallas_call operands: use default (double) buffering.
        f = _build_layer_call(T_pad, B_pad, Din_pad, H_pad, time_block, seq_len, emit_y,
                              single_buffer_consts=False, vmem_limit=vmem_limit)
        return f(*args)


# ----------------------------- Encoder (stacked LSTM) -----------------------------

class EncoderPallas:
    """Mirror of the PyTorch Encoder: stacked unidirectional LSTM, returns (h, c)."""

    def __init__(self, input_size, hidden_size, num_layers, batch_size, key):
        self.input_size = input_size
        self.hidden_size = hidden_size
        self.num_layers = num_layers
        self.num_directions = 1
        self.batch_size = batch_size

        # Deterministic parameter init, same shapes / U(-1/sqrt(H), 1/sqrt(H)) as nn.LSTM.
        bound = 1.0 / math.sqrt(hidden_size)
        self.params = []  # raw f32 PyTorch-layout params (used by the pure-JAX reference)
        for layer in range(num_layers):
            d_in = input_size if layer == 0 else hidden_size
            key, k1, k2, k3, k4 = jax.random.split(key, 5)
            w_ih = jax.random.uniform(k1, (4 * hidden_size, d_in), jnp.float32, -bound, bound)
            w_hh = jax.random.uniform(k2, (4 * hidden_size, hidden_size), jnp.float32, -bound, bound)
            b_ih = jax.random.uniform(k3, (4 * hidden_size,), jnp.float32, -bound, bound)
            b_hh = jax.random.uniform(k4, (4 * hidden_size,), jnp.float32, -bound, bound)
            self.params.append((w_ih, w_hh, b_ih, b_hh))

        # Padded bf16 kernel weights (built once, reused every call).
        self.H_pad = _round_up(hidden_size, 128)
        self.Din_pad = _round_up(input_size, 128)
        self._prepped = []
        for layer, (w_ih, w_hh, b_ih, b_hh) in enumerate(self.params):
            d_in = input_size if layer == 0 else hidden_size
            d_in_pad = self.Din_pad if layer == 0 else self.H_pad
            self._prepped.append(_prep_layer_weights(w_ih, w_hh, b_ih, b_hh,
                                                     d_in, d_in_pad, hidden_size, self.H_pad))

    def __call__(self, input_seq, h_0, c_0, *, time_block_target=32):
        """input_seq: (B, T, input_size) batch-first, like the PyTorch module.
        h_0, c_0: (num_layers, B, H).  (PyTorch draws them with torch.randn inside
        forward; here they are passed in so the run is deterministic.)
        Returns (h, c), each (num_layers, B, H)."""
        B, T, D = input_seq.shape
        assert D == self.input_size
        H, H_pad = self.hidden_size, self.H_pad
        B_pad = _round_up(B, 16)                         # full bf16 sublane packing

        # Generation-aware VMEM budgeting: ceiling from the chip, time block sized to fit.
        ceiling = _vmem_ceiling_bytes()
        din_max = max(self.Din_pad, H_pad)
        tt = _pick_time_block(T, B_pad, din_max, H_pad, ceiling, target=time_block_target)
        T_pad = _round_up(T, tt)                         # pad + mask instead of tt -> 1

        # Time-major, pad (T, B, lanes), then flatten to the 2-D (T_pad*B_pad, Din_pad)
        # slab format the kernel consumes (lane-dense, no in-kernel reshapes).
        x_tm = jnp.transpose(input_seq, (1, 0, 2))       # (T, B, D)
        x_tm = jnp.pad(x_tm, ((0, T_pad - T), (0, B_pad - B), (0, self.Din_pad - D)))
        x = x_tm.astype(jnp.bfloat16).reshape(T_pad * B_pad, self.Din_pad)

        h_pad = jnp.pad(h_0, ((0, 0), (0, B_pad - B), (0, H_pad - H))).astype(jnp.float32)
        c_pad = jnp.pad(c_0, ((0, 0), (0, B_pad - B), (0, H_pad - H))).astype(jnp.float32)

        h_finals, c_finals = [], []
        for layer, (w_ih, w_hh, bias) in enumerate(self._prepped):
            emit_y = layer < self.num_layers - 1          # last layer's y is never used
            din_pad = self.Din_pad if layer == 0 else H_pad
            need = _layer_vmem_bytes(tt, B_pad, din_pad, H_pad, emit_y)
            vmem_limit = min(ceiling, max(need + (8 << 20), 32 << 20))
            outs = lstm_layer_pallas(x, w_ih, w_hh, bias, h_pad[layer], c_pad[layer],
                                     time_block=tt, seq_len=T, emit_y=emit_y,
                                     vmem_limit=vmem_limit)
            if emit_y:
                y, h_n, c_n = outs
                x = y                                     # bf16 hidden sequence -> next layer
            else:
                h_n, c_n = outs
            h_finals.append(h_n[:B, :H])
            c_finals.append(c_n[:B, :H])
        return jnp.stack(h_finals, axis=0), jnp.stack(c_finals, axis=0)


# ----------------------------- pure-JAX f32 reference (for verification) -----------------------------

def _lstm_layer_ref(x_tm, w_ih, w_hh, b_ih, b_hh, h0, c0):
    H = w_hh.shape[1]

    def step(carry, x_t):
        h, c = carry
        gates = x_t @ w_ih.T + b_ih + h @ w_hh.T + b_hh
        i = jax.nn.sigmoid(gates[:, 0 * H:1 * H])
        f = jax.nn.sigmoid(gates[:, 1 * H:2 * H])
        g = jnp.tanh(gates[:, 2 * H:3 * H])
        o = jax.nn.sigmoid(gates[:, 3 * H:4 * H])
        c_new = f * c + i * g
        h_new = o * jnp.tanh(c_new)
        return (h_new, c_new), h_new

    (h_n, c_n), y = lax.scan(step, (h0, c0), x_tm)
    return y, h_n, c_n


def encoder_ref(params, input_seq, h_0, c_0):
    x_tm = jnp.transpose(input_seq, (1, 0, 2))
    hs, cs = [], []
    for layer, (w_ih, w_hh, b_ih, b_hh) in enumerate(params):
        x_tm, h_n, c_n = _lstm_layer_ref(x_tm, w_ih, w_hh, b_ih, b_hh, h_0[layer], c_0[layer])
        hs.append(h_n)
        cs.append(c_n)
    return jnp.stack(hs, 0), jnp.stack(cs, 0)


# ----------------------------- demo -----------------------------

if __name__ == "__main__":
    input_size = 8
    hidden_size = 32
    num_layers = 2
    batch_size = 2
    seq_len = 8

    root = jax.random.PRNGKey(0)
    k_params, k_x, k_h, k_c = jax.random.split(root, 4)

    enc = EncoderPallas(input_size, hidden_size, num_layers, batch_size, k_params)

    x = jax.random.normal(k_x, (batch_size, seq_len, input_size), jnp.float32)
    # Deterministic stand-in for torch.randn(h_0 / c_0) inside forward.
    h_0 = jax.random.normal(k_h, (num_layers, batch_size, hidden_size), jnp.float32)
    c_0 = jax.random.normal(k_c, (num_layers, batch_size, hidden_size), jnp.float32)

    h, c = enc(x, h_0, c_0)
    jax.block_until_ready((h, c))

    h_ref, c_ref = encoder_ref(enc.params, x, h_0, c_0)
    assert h.shape == (num_layers, batch_size, hidden_size)
    assert c.shape == (num_layers, batch_size, hidden_size)
    # bf16 weights / inter-layer activations -> compare against the f32 reference with a
    # correspondingly loosened tolerance.
    h_err = float(jnp.max(jnp.abs(h - h_ref)))
    c_err = float(jnp.max(jnp.abs(c - c_ref)))
    assert h_err < 5e-2 and c_err < 5e-2, (h_err, c_err)

    # Also exercise the padded-T / masked-tail path (T not a multiple of the time block).
    k_x2 = jax.random.fold_in(k_x, 1)
    seq_len2 = 10
    x2 = jax.random.normal(k_x2, (batch_size, seq_len2, input_size), jnp.float32)
    h2, c2 = enc(x2, h_0, c_0, time_block_target=4)   # tt=4, T_pad=12 -> 2 masked steps
    jax.block_until_ready((h2, c2))
    h2_ref, c2_ref = encoder_ref(enc.params, x2, h_0, c_0)
    h2_err = float(jnp.max(jnp.abs(h2 - h2_ref)))
    c2_err = float(jnp.max(jnp.abs(c2 - c2_ref)))
    assert h2_err < 5e-2 and c2_err < 5e-2, (h2_err, c2_err)

    print("KERNEL_OK")
</pallas_src>

<mosaic_0001>
module attributes {stable_mosaic.version = 11 : i64} {
  func.func @_lstm_layer_kernel(%arg0: i32, %arg1: memref<128x128xbf16, #tpu.memory_space<vmem>>, %arg2: memref<128x512xbf16, #tpu.memory_space<vmem>>, %arg3: memref<128x512xbf16, #tpu.memory_space<vmem>>, %arg4: memref<1x512xf32, #tpu.memory_space<vmem>>, %arg5: memref<16x128xf32, #tpu.memory_space<vmem>>, %arg6: memref<16x128xf32, #tpu.memory_space<vmem>>, %arg7: memref<128x128xbf16, #tpu.memory_space<vmem>>, %arg8: memref<16x128xf32, #tpu.memory_space<vmem>>, %arg9: memref<16x128xf32, #tpu.memory_space<vmem>>, %arg10: memref<128x512xf32, #tpu.memory_space<vmem>>, %arg11: memref<16x128xf32, #tpu.memory_space<vmem>>, %arg12: memref<16x128xf32, #tpu.memory_space<vmem>>) attributes {dimension_semantics = [#tpu.dimension_semantics<arbitrary>], iteration_bounds = array<i64: 1>, scalar_prefetch = 0 : i64, scratch_operands = 3 : i64, tpu.core_type = #tpu.core_type<tc>, window_params = [{transform_indices = @transform_0, window_bounds = array<i64: 128, 128>}, {pipeline_mode = #tpu.pipeline_mode<synchronous>, transform_indices = @transform_1, window_bounds = array<i64: 128, 512>}, {pipeline_mode = #tpu.pipeline_mode<synchronous>, transform_indices = @transform_2, window_bounds = array<i64: 128, 512>}, {pipeline_mode = #tpu.pipeline_mode<synchronous>, transform_indices = @transform_3, window_bounds = array<i64: 1, 512>}, {pipeline_mode = #tpu.pipeline_mode<synchronous>, transform_indices = @transform_4, window_bounds = array<i64: 16, 128>}, {pipeline_mode = #tpu.pipeline_mode<synchronous>, transform_indices = @transform_5, window_bounds = array<i64: 16, 128>}, {transform_indices = @transform_6, window_bounds = array<i64: 128, 128>}, {pipeline_mode = #tpu.pipeline_mode<synchronous>, transform_indices = @transform_7, window_bounds = array<i64: 16, 128>}, {pipeline_mode = #tpu.pipeline_mode<synchronous>, transform_indices = @transform_8, window_bounds = array<i64: 16, 128>}]} {
    %c0_i32 = arith.constant 0 : i32
    %0 = arith.cmpi eq, %arg0, %c0_i32 : i32
    %1 = arith.extui %0 : i1 to i32
    %c0_i32_0 = arith.constant 0 : i32
    %2 = arith.cmpi ne, %1, %c0_i32_0 : i32
    scf.if %2 {
      %c0_124 = arith.constant 0 : index
      %c0_125 = arith.constant 0 : index
      %347 = vector.load %arg5[%c0_124, %c0_125] : memref<16x128xf32, #tpu.memory_space<vmem>>, vector<16x128xf32>
      %c0_126 = arith.constant 0 : index
      %c0_127 = arith.constant 0 : index
      %348 = vector.load %arg11[%c0_126, %c0_127] : memref<16x128xf32, #tpu.memory_space<vmem>>, vector<16x128xf32>
      tpu.vector_store %arg11[%c0_126, %c0_127], %347 {strides = array<i32>} : memref<16x128xf32, #tpu.memory_space<vmem>>, vector<16x128xf32>,
      %c0_128 = arith.constant 0 : index
      %c0_129 = arith.constant 0 : index
      %349 = vector.load %arg6[%c0_128, %c0_129] : memref<16x128xf32, #tpu.memory_space<vmem>>, vector<16x128xf32>
      %c0_130 = arith.constant 0 : index
      %c0_131 = arith.constant 0 : index
      %350 = vector.load %arg12[%c0_130, %c0_131] : memref<16x128xf32, #tpu.memory_space<vmem>>, vector<16x128xf32>
      tpu.vector_store %arg12[%c0_130, %c0_131], %349 {strides = array<i32>} : memref<16x128xf32, #tpu.memory_space<vmem>>, vector<16x128xf32>,
    } else {
    }
    %c0 = arith.constant 0 : index
    %c0_1 = arith.constant 0 : index
    %3 = vector.load %arg1[%c0, %c0_1] : memref<128x128xbf16, #tpu.memory_space<vmem>>, vector<128x128xbf16>
    %c0_2 = arith.constant 0 : index
    %c0_3 = arith.constant 0 : index
    %4 = vector.load %arg2[%c0_2, %c0_3] : memref<128x512xbf16, #tpu.memory_space<vmem>>, vector<128x512xbf16>
    %cst = arith.constant dense<0.000000e+00> : vector<128x512xf32>
    %5 = tpu.matmul %3, %4, %cst {dimension_numbers = #tpu.dot_dimension_numbers<[1], [0], [0], [1], [0, 0, 1, 1], [], []>} : vector<128x128xbf16>, vector<128x512xbf16>, vector<128x512xf32> -> vector<128x512xf32>
    %c0_4 = arith.constant 0 : index
    %c0_5 = arith.constant 0 : index
    %6 = vector.load %arg4[%c0_4, %c0_5] : memref<1x512xf32, #tpu.memory_space<vmem>>, vector<1x512xf32>
    %7 = vector.shape_cast %6 : vector<1x512xf32> to vector<1x512xf32>
    %8 = vector.broadcast %7 : vector<1x512xf32> to vector<128x512xf32>
    %9 = arith.addf %5, %8 : vector<128x512xf32>
    %c0_6 = arith.constant 0 : index
    %c0_7 = arith.constant 0 : index
    %10 = vector.load %arg10[%c0_6, %c0_7] : memref<128x512xf32, #tpu.memory_space<vmem>>, vector<128x512xf32>
    tpu.vector_store %arg10[%c0_6, %c0_7], %9 {strides = array<i32>} : memref<128x512xf32, #tpu.memory_space<vmem>>, vector<128x512xf32>,
    %c0_8 = arith.constant 0 : index
    %c0_9 = arith.constant 0 : index
    %11 = vector.load %arg3[%c0_8, %c0_9] : memref<128x512xbf16, #tpu.memory_space<vmem>>, vector<128x512xbf16>
    %c0_10 = arith.constant 0 : index
    %c0_11 = arith.constant 0 : index
    %12 = vector.load %arg11[%c0_10, %c0_11] : memref<16x128xf32, #tpu.memory_space<vmem>>, vector<16x128xf32>
    %c0_12 = arith.constant 0 : index
    %c0_13 = arith.constant 0 : index
    %13 = vector.load %arg12[%c0_12, %c0_13] : memref<16x128xf32, #tpu.memory_space<vmem>>, vector<16x128xf32>
    %c0_i32_14 = arith.constant 0 : i32
    %c16_i32 = arith.constant 16 : i32
    %14 = arith.muli %c0_i32_14, %c16_i32 : i32
    %15 = tpu.assume_multiple %14, 16 : i32
    %16 = arith.index_cast %15 : i32 to index
    %c0_15 = arith.constant 0 : index
    %17 = vector.load %arg10[%16, %c0_15] : memref<128x512xf32, #tpu.memory_space<vmem>>, vector<16x512xf32>
    %18 = arith.truncf %12 : vector<16x128xf32> to vector<16x128xbf16>
    %cst_16 = arith.constant dense<0.000000e+00> : vector<16x512xf32>
    %19 = tpu.matmul %18, %11, %cst_16 {dimension_numbers = #tpu.dot_dimension_numbers<[1], [0], [0], [1], [0, 0, 1, 1], [], []>} : vector<16x128xbf16>, vector<128x512xbf16>, vector<16x512xf32> -> vector<16x512xf32>
    %20 = arith.addf %17, %19 : vector<16x512xf32>
    %21 = vector.extract_strided_slice %20 {offsets = [0, 0], sizes = [16, 128], strides = [1, 1]} : vector<16x512xf32> to vector<16x128xf32>
    %cst_17 = arith.constant 5.000000e-01 : f32
    %22 = vector.broadcast %cst_17 : f32 to vector<16x128xf32>
    %23 = arith.mulf %22, %21 : vector<16x128xf32>
    %24 = math.tanh %23 : vector<16x128xf32>
    %cst_18 = arith.constant 5.000000e-01 : f32
    %25 = vector.broadcast %cst_18 : f32 to vector<16x128xf32>
    %26 = arith.mulf %25, %24 : vector<16x128xf32>
    %cst_19 = arith.constant 5.000000e-01 : f32
    %27 = vector.broadcast %cst_19 : f32 to vector<16x128xf32>
    %28 = arith.addf %26, %27 : vector<16x128xf32>
    %29 = vector.extract_strided_slice %20 {offsets = [0, 128], sizes = [16, 128], strides = [1, 1]} : vector<16x512xf32> to vector<16x128xf32>
    %cst_20 = arith.constant 5.000000e-01 : f32
    %30 = vector.broadcast %cst_20 : f32 to vector<16x128xf32>
    %31 = arith.mulf %30, %29 : vector<16x128xf32>
    %32 = math.tanh %31 : vector<16x128xf32>
    %cst_21 = arith.constant 5.000000e-01 : f32
    %33 = vector.broadcast %cst_21 : f32 to vector<16x128xf32>
    %34 = arith.mulf %33, %32 : vector<16x128xf32>
    %cst_22 = arith.constant 5.000000e-01 : f32
    %35 = vector.broadcast %cst_22 : f32 to vector<16x128xf32>
    %36 = arith.addf %34, %35 : vector<16x128xf32>
    %37 = vector.extract_strided_slice %20 {offsets = [0, 256], sizes = [16, 128], strides = [1, 1]} : vector<16x512xf32> to vector<16x128xf32>
    %38 = math.tanh %37 : vector<16x128xf32>
    %39 = vector.extract_strided_slice %20 {offsets = [0, 384], sizes = [16, 128], strides = [1, 1]} : vector<16x512xf32> to vector<16x128xf32>
    %cst_23 = arith.constant 5.000000e-01 : f32
    %40 = vector.broadcast %cst_23 : f32 to vector<16x128xf32>
    %41 = arith.mulf %40, %39 : vector<16x128xf32>
    %42 = math.tanh %41 : vector<16x128xf32>
    %cst_24 = arith.constant 5.000000e-01 : f32
    %43 = vector.broadcast %cst_24 : f32 to vector<16x128xf32>
    %44 = arith.mulf %43, %42 : vector<16x128xf32>
    %cst_25 = arith.constant 5.000000e-01 : f32
    %45 = vector.broadcast %cst_25 : f32 to vector<16x128xf32>
    %46 = arith.addf %44, %45 : vector<16x128xf32>
    %47 = arith.mulf %36, %13 : vector<16x128xf32>
    %48 = arith.mulf %28, %38 : vector<16x128xf32>
    %49 = arith.addf %47, %48 : vector<16x128xf32>
    %50 = math.tanh %49 : vector<16x128xf32>
    %51 = arith.mulf %46, %50 : vector<16x128xf32>
    %52 = arith.truncf %51 : vector<16x128xf32> to vector<16x128xbf16>
    %53 = arith.index_cast %15 : i32 to index
    %c0_26 = arith.constant 0 : index
    %54 = vector.load %arg7[%53, %c0_26] : memref<128x128xbf16, #tpu.memory_space<vmem>>, vector<16x128xbf16>
    tpu.vector_store %arg7[%53, %c0_26], %52 {strides = array<i32>} : memref<128x128xbf16, #tpu.memory_space<vmem>>, vector<16x128xbf16>,
    %c1_i32 = arith.constant 1 : i32
    %c16_i32_27 = arith.constant 16 : i32
    %55 = arith.muli %c1_i32, %c16_i32_27 : i32
    %56 = tpu.assume_multiple %55, 16 : i32
    %57 = arith.index_cast %56 : i32 to index
    %c0_28 = arith.constant 0 : index
    %58 = vector.load %arg10[%57, %c0_28] : memref<128x512xf32, #tpu.memory_space<vmem>>, vector<16x512xf32>
    %59 = arith.truncf %51 : vector<16x128xf32> to vector<16x128xbf16>
    %cst_29 = arith.constant dense<0.000000e+00> : vector<16x512xf32>
    %60 = tpu.matmul %59, %11, %cst_29 {dimension_numbers = #tpu.dot_dimension_numbers<[1], [0], [0], [1], [0, 0, 1, 1], [], []>} : vector<16x128xbf16>, vector<128x512xbf16>, vector<16x512xf32> -> vector<16x512xf32>
    %61 = arith.addf %58, %60 : vector<16x512xf32>
    %62 = vector.extract_strided_slice %61 {offsets = [0, 0], sizes = [16, 128], strides = [1, 1]} : vector<16x512xf32> to vector<16x128xf32>
    %cst_30 = arith.constant 5.000000e-01 : f32
    %63 = vector.broadcast %cst_30 : f32 to vector<16x128xf32>
    %64 = arith.mulf %63, %62 : vector<16x128xf32>
    %65 = math.tanh %64 : vector<16x128xf32>
    %cst_31 = arith.constant 5.000000e-01 : f32
    %66 = vector.broadcast %cst_31 : f32 to vector<16x128xf32>
    %67 = arith.mulf %66, %65 : vector<16x128xf32>
    %cst_32 = arith.constant 5.000000e-01 : f32
    %68 = vector.broadcast %cst_32 : f32 to vector<16x128xf32>
    %69 = arith.addf %67, %68 : vector<16x128xf32>
    %70 = vector.extract_strided_slice %61 {offsets = [0, 128], sizes = [16, 128], strides = [1, 1]} : vector<16x512xf32> to vector<16x128xf32>
    %cst_33 = arith.constant 5.000000e-01 : f32
    %71 = vector.broadcast %cst_33 : f32 to vector<16x128xf32>
    %72 = arith.mulf %71, %70 : vector<16x128xf32>
    %73 = math.tanh %72 : vector<16x128xf32>
    %cst_34 = arith.constant 5.000000e-01 : f32
    %74 = vector.broadcast %cst_34 : f32 to vector<16x128xf32>
    %75 = arith.mulf %74, %73 : vector<16x128xf32>
    %cst_35 = arith.constant 5.000000e-01 : f32
    %76 = vector.broadcast %cst_35 : f32 to vector<16x128xf32>
    %77 = arith.addf %75, %76 : vector<16x128xf32>
    %78 = vector.extract_strided_slice %61 {offsets = [0, 256], sizes = [16, 128], strides = [1, 1]} : vector<16x512xf32> to vector<16x128xf32>
    %79 = math.tanh %78 : vector<16x128xf32>
    %80 = vector.extract_strided_slice %61 {offsets = [0, 384], sizes = [16, 128], strides = [1, 1]} : vector<16x512xf32> to vector<16x128xf32>
    %cst_36 = arith.constant 5.000000e-01 : f32
    %81 = vector.broadcast %cst_36 : f32 to vector<16x128xf32>
    %82 = arith.mulf %81, %80 : vector<16x128xf32>
    %83 = math.tanh %82 : vector<16x128xf32>
    %cst_37 = arith.constant 5.000000e-01 : f32
    %84 = vector.broadcast %cst_37 : f32 to vector<16x128xf32>
    %85 = arith.mulf %84, %83 : vector<16x128xf32>
    %cst_38 = arith.constant 5.000000e-01 : f32
    %86 = vector.broadcast %cst_38 : f32 to vector<16x128xf32>
    %87 = arith.addf %85, %86 : vector<16x128xf32>
    %88 = arith.mulf %77, %49 : vector<16x128xf32>
    %89 = arith.mulf %69, %79 : vector<16x128xf32>
    %90 = arith.addf %88, %89 : vector<16x128xf32>
    %91 = math.tanh %90 : vector<16x128xf32>
    %92 = arith.mulf %87, %91 : vector<16x128xf32>
    %93 = arith.truncf %92 : vector<16x128xf32> to vector<16x128xbf16>
    %94 = arith.index_cast %56 : i32 to index
    %c0_39 = arith.constant 0 : index
    %95 = vector.load %arg7[%94, %c0_39] : memref<128x128xbf16, #tpu.memory_space<vmem>>, vector<16x128xbf16>
    tpu.vector_store %arg7[%94, %c0_39], %93 {strides = array<i32>} : memref<128x128xbf16, #tpu.memory_space<vmem>>, vector<16x128xbf16>,
    %c2_i32 = arith.constant 2 : i32
    %c16_i32_40 = arith.constant 16 : i32
    %96 = arith.muli %c2_i32, %c16_i32_40 : i32
    %97 = tpu.assume_multiple %96, 16 : i32
    %98 = arith.index_cast %97 : i32 to index
    %c0_41 = arith.constant 0 : index
    %99 = vector.load %arg10[%98, %c0_41] : memref<128x512xf32, #tpu.memory_space<vmem>>, vector<16x512xf32>
    %100 = arith.truncf %92 : vector<16x128xf32> to vector<16x128xbf16>
    %cst_42 = arith.constant dense<0.000000e+00> : vector<16x512xf32>
    %101 = tpu.matmul %100, %11, %cst_42 {dimension_numbers = #tpu.dot_dimension_numbers<[1], [0], [0], [1], [0, 0, 1, 1], [], []>} : vector<16x128xbf16>, vector<128x512xbf16>, vector<16x512xf32> -> vector<16x512xf32>
    %102 = arith.addf %99, %101 : vector<16x512xf32>
    %103 = vector.extract_strided_slice %102 {offsets = [0, 0], sizes = [16, 128], strides = [1, 1]} : vector<16x512xf32> to vector<16x128xf32>
    %cst_43 = arith.constant 5.000000e-01 : f32
    %104 = vector.broadcast %cst_43 : f32 to vector<16x128xf32>
    %105 = arith.mulf %104, %103 : vector<16x128xf32>
    %106 = math.tanh %105 : vector<16x128xf32>
    %cst_44 = arith.constant 5.000000e-01 : f32
    %107 = vector.broadcast %cst_44 : f32 to vector<16x128xf32>
    %108 = arith.mulf %107, %106 : vector<16x128xf32>
    %cst_45 = arith.constant 5.000000e-01 : f32
    %109 = vector.broadcast %cst_45 : f32 to vector<16x128xf32>
    %110 = arith.addf %108, %109 : vector<16x128xf32>
    %111 = vector.extract_strided_slice %102 {offsets = [0, 128], sizes = [16, 128], strides = [1, 1]} : vector<16x512xf32> to vector<16x128xf32>
    %cst_46 = arith.constant 5.000000e-01 : f32
    %112 = vector.broadcast %cst_46 : f32 to vector<16x128xf32>
    %113 = arith.mulf %112, %111 : vector<16x128xf32>
    %114 = math.tanh %113 : vector<16x128xf32>
    %cst_47 = arith.constant 5.000000e-01 : f32
    %115 = vector.broadcast %cst_47 : f32 to vector<16x128xf32>
    %116 = arith.mulf %115, %114 : vector<16x128xf32>
    %cst_48 = arith.constant 5.000000e-01 : f32
    %117 = vector.broadcast %cst_48 : f32 to vector<16x128xf32>
    %118 = arith.addf %116, %117 : vector<16x128xf32>
    %119 = vector.extract_strided_slice %102 {offsets = [0, 256], sizes = [16, 128], strides = [1, 1]} : vector<16x512xf32> to vector<16x128xf32>
    %120 = math.tanh %119 : vector<16x128xf32>
    %121 = vector.extract_strided_slice %102 {offsets = [0, 384], sizes = [16, 128], strides = [1, 1]} : vector<16x512xf32> to vector<16x128xf32>
    %cst_49 = arith.constant 5.000000e-01 : f32
    %122 = vector.broadcast %cst_49 : f32 to vector<16x128xf32>
    %123 = arith.mulf %122, %121 : vector<16x128xf32>
    %124 = math.tanh %123 : vector<16x128xf32>
    %cst_50 = arith.constant 5.000000e-01 : f32
    %125 = vector.broadcast %cst_50 : f32 to vector<16x128xf32>
    %126 = arith.mulf %125, %124 : vector<16x128xf32>
    %cst_51 = arith.constant 5.000000e-01 : f32
    %127 = vector.broadcast %cst_51 : f32 to vector<16x128xf32>
    %128 = arith.addf %126, %127 : vector<16x128xf32>
    %129 = arith.mulf %118, %90 : vector<16x128xf32>
    %130 = arith.mulf %110, %120 : vector<16x128xf32>
    %131 = arith.addf %129, %130 : vector<16x128xf32>
    %132 = math.tanh %131 : vector<16x128xf32>
    %133 = arith.mulf %128, %132 : vector<16x128xf32>
    %134 = arith.truncf %133 : vector<16x128xf32> to vector<16x128xbf16>
    %135 = arith.index_cast %97 : i32 to index
    %c0_52 = arith.constant 0 : index
    %136 = vector.load %arg7[%135, %c0_52] : memref<128x128xbf16, #tpu.memory_space<vmem>>, vector<16x128xbf16>
    tpu.vector_store %arg7[%135, %c0_52], %134 {strides = array<i32>} : memref<128x128xbf16, #tpu.memory_space<vmem>>, vector<16x128xbf16>,
    %c3_i32 = arith.constant 3 : i32
    %c16_i32_53 = arith.constant 16 : i32
    %137 = arith.muli %c3_i32, %c16_i32_53 : i32
    %138 = tpu.assume_multiple %137, 16 : i32
    %139 = arith.index_cast %138 : i32 to index
    %c0_54 = arith.constant 0 : index
    %140 = vector.load %arg10[%139, %c0_54] : memref<128x512xf32, #tpu.memory_space<vmem>>, vector<16x512xf32>
    %141 = arith.truncf %133 : vector<16x128xf32> to vector<16x128xbf16>
    %cst_55 = arith.constant dense<0.000000e+00> : vector<16x512xf32>
    %142 = tpu.matmul %141, %11, %cst_55 {dimension_numbers = #tpu.dot_dimension_numbers<[1], [0], [0], [1], [0, 0, 1, 1], [], []>} : vector<16x128xbf16>, vector<128x512xbf16>, vector<16x512xf32> -> vector<16x512xf32>
    %143 = arith.addf %140, %142 : vector<16x512xf32>
    %144 = vector.extract_strided_slice %143 {offsets = [0, 0], sizes = [16, 128], strides = [1, 1]} : vector<16x512xf32> to vector<16x128xf32>
    %cst_56 = arith.constant 5.000000e-01 : f32
    %145 = vector.broadcast %cst_56 : f32 to vector<16x128xf32>
    %146 = arith.mulf %145, %144 : vector<16x128xf32>
    %147 = math.tanh %146 : vector<16x128xf32>
    %cst_57 = arith.constant 5.000000e-01 : f32
    %148 = vector.broadcast %cst_57 : f32 to vector<16x128xf32>
    %149 = arith.mulf %148, %147 : vector<16x128xf32>
    %cst_58 = arith.constant 5.000000e-01 : f32
    %150 = vector.broadcast %cst_58 : f32 to vector<16x128xf32>
    %151 = arith.addf %149, %150 : vector<16x128xf32>
    %152 = vector.extract_strided_slice %143 {offsets = [0, 128], sizes = [16, 128], strides = [1, 1]} : vector<16x512xf32> to vector<16x128xf32>
    %cst_59 = arith.constant 5.000000e-01 : f32
    %153 = vector.broadcast %cst_59 : f32 to vector<16x128xf32>
    %154 = arith.mulf %153, %152 : vector<16x128xf32>
    %155 = math.tanh %154 : vector<16x128xf32>
    %cst_60 = arith.constant 5.000000e-01 : f32
    %156 = vector.broadcast %cst_60 : f32 to vector<16x128xf32>
    %157 = arith.mulf %156, %155 : vector<16x128xf32>
    %cst_61 = arith.constant 5.000000e-01 : f32
    %158 = vector.broadcast %cst_61 : f32 to vector<16x128xf32>
    %159 = arith.addf %157, %158 : vector<16x128xf32>
    %160 = vector.extract_strided_slice %143 {offsets = [0, 256], sizes = [16, 128], strides = [1, 1]} : vector<16x512xf32> to vector<16x128xf32>
    %161 = math.tanh %160 : vector<16x128xf32>
    %162 = vector.extract_strided_slice %143 {offsets = [0, 384], sizes = [16, 128], strides = [1, 1]} : vector<16x512xf32> to vector<16x128xf32>
    %cst_62 = arith.constant 5.000000e-01 : f32
    %163 = vector.broadcast %cst_62 : f32 to vector<16x128xf32>
    %164 = arith.mulf %163, %162 : vector<16x128xf32>
    %165 = math.tanh %164 : vector<16x128xf32>
    %cst_63 = arith.constant 5.000000e-01 : f32
    %166 = vector.broadcast %cst_63 : f32 to vector<16x128xf32>
    %167 = arith.mulf %166, %165 : vector<16x128xf32>
    %cst_64 = arith.constant 5.000000e-01 : f32
    %168 = vector.broadcast %cst_64 : f32 to vector<16x128xf32>
    %169 = arith.addf %167, %168 : vector<16x128xf32>
    %170 = arith.mulf %159, %131 : vector<16x128xf32>
    %171 = arith.mulf %151, %161 : vector<16x128xf32>
    %172 = arith.addf %170, %171 : vector<16x128xf32>
    %173 = math.tanh %172 : vector<16x128xf32>
    %174 = arith.mulf %169, %173 : vector<16x128xf32>
    %175 = arith.truncf %174 : vector<16x128xf32> to vector<16x128xbf16>
    %176 = arith.index_cast %138 : i32 to index
    %c0_65 = arith.constant 0 : index
    %177 = vector.load %arg7[%176, %c0_65] : memref<128x128xbf16, #tpu.memory_space<vmem>>, vector<16x128xbf16>
    tpu.vector_store %arg7[%176, %c0_65], %175 {strides = array<i32>} : memref<128x128xbf16, #tpu.memory_space<vmem>>, vector<16x128xbf16>,
    %c4_i32 = arith.constant 4 : i32
    %c16_i32_66 = arith.constant 16 : i32
    %178 = arith.muli %c4_i32, %c16_i32_66 : i32
    %179 = tpu.assume_multiple %178, 16 : i32
    %180 = arith.index_cast %179 : i32 to index
    %c0_67 = arith.constant 0 : index
    %181 = vector.load %arg10[%180, %c0_67] : memref<128x512xf32, #tpu.memory_space<vmem>>, vector<16x512xf32>
    %182 = arith.truncf %174 : vector<16x128xf32> to vector<16x128xbf16>
    %cst_68 = arith.constant dense<0.000000e+00> : vector<16x512xf32>
    %183 = tpu.matmul %182, %11, %cst_68 {dimension_numbers = #tpu.dot_dimension_numbers<[1], [0], [0], [1], [0, 0, 1, 1], [], []>} : vector<16x128xbf16>, vector<128x512xbf16>, vector<16x512xf32> -> vector<16x512xf32>
    %184 = arith.addf %181, %183 : vector<16x512xf32>
    %185 = vector.extract_strided_slice %184 {offsets = [0, 0], sizes = [16, 128], strides = [1, 1]} : vector<16x512xf32> to vector<16x128xf32>
    %cst_69 = arith.constant 5.000000e-01 : f32
    %186 = vector.broadcast %cst_69 : f32 to vector<16x128xf32>
    %187 = arith.mulf %186, %185 : vector<16x128xf32>
    %188 = math.tanh %187 : vector<16x128xf32>
    %cst_70 = arith.constant 5.000000e-01 : f32
    %189 = vector.broadcast %cst_70 : f32 to vector<16x128xf32>
    %190 = arith.mulf %189, %188 : vector<16x128xf32>
    %cst_71 = arith.constant 5.000000e-01 : f32
    %191 = vector.broadcast %cst_71 : f32 to vector<16x128xf32>
    %192 = arith.addf %190, %191 : vector<16x128xf32>
    %193 = vector.extract_strided_slice %184 {offsets = [0, 128], sizes = [16, 128], strides = [1, 1]} : vector<16x512xf32> to vector<16x128xf32>
    %cst_72 = arith.constant 5.000000e-01 : f32
    %194 = vector.broadcast %cst_72 : f32 to vector<16x128xf32>
    %195 = arith.mulf %194, %193 : vector<16x128xf32>
    %196 = math.tanh %195 : vector<16x128xf32>
    %cst_73 = arith.constant 5.000000e-01 : f32
    %197 = vector.broadcast %cst_73 : f32 to vector<16x128xf32>
    %198 = arith.mulf %197, %196 : vector<16x128xf32>
    %cst_74 = arith.constant 5.000000e-01 : f32
    %199 = vector.broadcast %cst_74 : f32 to vector<16x128xf32>
    %200 = arith.addf %198, %199 : vector<16x128xf32>
    %201 = vector.extract_strided_slice %184 {offsets = [0, 256], sizes = [16, 128], strides = [1, 1]} : vector<16x512xf32> to vector<16x128xf32>
    %202 = math.tanh %201 : vector<16x128xf32>
    %203 = vector.extract_strided_slice %184 {offsets = [0, 384], sizes = [16, 128], strides = [1, 1]} : vector<16x512xf32> to vector<16x128xf32>
    %cst_75 = arith.constant 5.000000e-01 : f32
    %204 = vector.broadcast %cst_75 : f32 to vector<16x128xf32>
    %205 = arith.mulf %204, %203 : vector<16x128xf32>
    %206 = math.tanh %205 : vector<16x128xf32>
    %cst_76 = arith.constant 5.000000e-01 : f32
    %207 = vector.broadcast %cst_76 : f32 to vector<16x128xf32>
    %208 = arith.mulf %207, %206 : vector<16x128xf32>
    %cst_77 = arith.constant 5.000000e-01 : f32
    %209 = vector.broadcast %cst_77 : f32 to vector<16x128xf32>
    %210 = arith.addf %208, %209 : vector<16x128xf32>
    %211 = arith.mulf %200, %172 : vector<16x128xf32>
    %212 = arith.mulf %192, %202 : vector<16x128xf32>
    %213 = arith.addf %211, %212 : vector<16x128xf32>
    %214 = math.tanh %213 : vector<16x128xf32>
    %215 = arith.mulf %210, %214 : vector<16x128xf32>
    %216 = arith.truncf %215 : vector<16x128xf32> to vector<16x128xbf16>
    %217 = arith.index_cast %179 : i32 to index
    %c0_78 = arith.constant 0 : index
    %218 = vector.load %arg7[%217, %c0_78] : memref<128x128xbf16, #tpu.memory_space<vmem>>, vector<16x128xbf16>
    tpu.vector_store %arg7[%217, %c0_78], %216 {strides = array<i32>} : memref<128x128xbf16, #tpu.memory_space<vmem>>, vector<16x128xbf16>,
    %c5_i32 = arith.constant 5 : i32
    %c16_i32_79 = arith.constant 16 : i32
    %219 = arith.muli %c5_i32, %c16_i32_79 : i32
    %220 = tpu.assume_multiple %219, 16 : i32
    %221 = arith.index_cast %220 : i32 to index
    %c0_80 = arith.constant 0 : index
    %222 = vector.load %arg10[%221, %c0_80] : memref<128x512xf32, #tpu.memory_space<vmem>>, vector<16x512xf32>
    %223 = arith.truncf %215 : vector<16x128xf32> to vector<16x128xbf16>
    %cst_81 = arith.constant dense<0.000000e+00> : vector<16x512xf32>
    %224 = tpu.matmul %223, %11, %cst_81 {dimension_numbers = #tpu.dot_dimension_numbers<[1], [0], [0], [1], [0, 0, 1, 1], [], []>} : vector<16x128xbf16>, vector<128x512xbf16>, vector<16x512xf32> -> vector<16x512xf32>
    %225 = arith.addf %222, %224 : vector<16x512xf32>
    %226 = vector.extract_strided_slice %225 {offsets = [0, 0], sizes = [16, 128], strides = [1, 1]} : vector<16x512xf32> to vector<16x128xf32>
    %cst_82 = arith.constant 5.000000e-01 : f32
    %227 = vector.broadcast %cst_82 : f32 to vector<16x128xf32>
    %228 = arith.mulf %227, %226 : vector<16x128xf32>
    %229 = math.tanh %228 : vector<16x128xf32>
    %cst_83 = arith.constant 5.000000e-01 : f32
    %230 = vector.broadcast %cst_83 : f32 to vector<16x128xf32>
    %231 = arith.mulf %230, %229 : vector<16x128xf32>
    %cst_84 = arith.constant 5.000000e-01 : f32
    %232 = vector.broadcast %cst_84 : f32 to vector<16x128xf32>
    %233 = arith.addf %231, %232 : vector<16x128xf32>
    %234 = vector.extract_strided_slice %225 {offsets = [0, 128], sizes = [16, 128], strides = [1, 1]} : vector<16x512xf32> to vector<16x128xf32>
    %cst_85 = arith.constant 5.000000e-01 : f32
    %235 = vector.broadcast %cst_85 : f32 to vector<16x128xf32>
    %236 = arith.mulf %235, %234 : vector<16x128xf32>
    %237 = math.tanh %236 : vector<16x128xf32>
    %cst_86 = arith.constant 5.000000e-01 : f32
    %238 = vector.broadcast %cst_86 : f32 to vector<16x128xf32>
    %239 = arith.mulf %238, %237 : vector<16x128xf32>
    %cst_87 = arith.constant 5.000000e-01 : f32
    %240 = vector.broadcast %cst_87 : f32 to vector<16x128xf32>
    %241 = arith.addf %239, %240 : vector<16x128xf32>
    %242 = vector.extract_strided_slice %225 {offsets = [0, 256], sizes = [16, 128], strides = [1, 1]} : vector<16x512xf32> to vector<16x128xf32>
    %243 = math.tanh %242 : vector<16x128xf32>
    %244 = vector.extract_strided_slice %225 {offsets = [0, 384], sizes = [16, 128], strides = [1, 1]} : vector<16x512xf32> to vector<16x128xf32>
    %cst_88 = arith.constant 5.000000e-01 : f32
    %245 = vector.broadcast %cst_88 : f32 to vector<16x128xf32>
    %246 = arith.mulf %245, %244 : vector<16x128xf32>
    %247 = math.tanh %246 : vector<16x128xf32>
    %cst_89 = arith.constant 5.000000e-01 : f32
    %248 = vector.broadcast %cst_89 : f32 to vector<16x128xf32>
    %249 = arith.mulf %248, %247 : vector<16x128xf32>
    %cst_90 = arith.constant 5.000000e-01 : f32
    %250 = vector.broadcast %cst_90 : f32 to vector<16x128xf32>
    %251 = arith.addf %249, %250 : vector<16x128xf32>
    %252 = arith.mulf %241, %213 : vector<16x128xf32>
    %253 = arith.mulf %233, %243 : vector<16x128xf32>
    %254 = arith.addf %252, %253 : vector<16x128xf32>
    %255 = math.tanh %254 : vector<16x128xf32>
    %256 = arith.mulf %251, %255 : vector<16x128xf32>
    %257 = arith.truncf %256 : vector<16x128xf32> to vector<16x128xbf16>
    %258 = arith.index_cast %220 : i32 to index
    %c0_91 = arith.constant 0 : index
    %259 = vector.load %arg7[%258, %c0_91] : memref<128x128xbf16, #tpu.memory_space<vmem>>, vector<16x128xbf16>
    tpu.vector_store %arg7[%258, %c0_91], %257 {strides = array<i32>} : memref<128x128xbf16, #tpu.memory_space<vmem>>, vector<16x128xbf16>,
    %c6_i32 = arith.constant 6 : i32
    %c16_i32_92 = arith.constant 16 : i32
    %260 = arith.muli %c6_i32, %c16_i32_92 : i32
    %261 = tpu.assume_multiple %260, 16 : i32
    %262 = arith.index_cast %261 : i32 to index
    %c0_93 = arith.constant 0 : index
    %263 = vector.load %arg10[%262, %c0_93] : memref<128x512xf32, #tpu.memory_space<vmem>>, vector<16x512xf32>
    %264 = arith.truncf %256 : vector<16x128xf32> to vector<16x128xbf16>
    %cst_94 = arith.constant dense<0.000000e+00> : vector<16x512xf32>
    %265 = tpu.matmul %264, %11, %cst_94 {dimension_numbers = #tpu.dot_dimension_numbers<[1], [0], [0], [1], [0, 0, 1, 1], [], []>} : vector<16x128xbf16>, vector<128x512xbf16>, vector<16x512xf32> -> vector<16x512xf32>
    %266 = arith.addf %263, %265 : vector<16x512xf32>
    %267 = vector.extract_strided_slice %266 {offsets = [0, 0], sizes = [16, 128], strides = [1, 1]} : vector<16x512xf32> to vector<16x128xf32>
    %cst_95 = arith.constant 5.000000e-01 : f32
    %268 = vector.broadcast %cst_95 : f32 to vector<16x128xf32>
    %269 = arith.mulf %268, %267 : vector<16x128xf32>
    %270 = math.tanh %269 : vector<16x128xf32>
    %cst_96 = arith.constant 5.000000e-01 : f32
    %271 = vector.broadcast %cst_96 : f32 to vector<16x128xf32>
    %272 = arith.mulf %271, %270 : vector<16x128xf32>
    %cst_97 = arith.constant 5.000000e-01 : f32
    %273 = vector.broadcast %cst_97 : f32 to vector<16x128xf32>
    %274 = arith.addf %272, %273 : vector<16x128xf32>
    %275 = vector.extract_strided_slice %266 {offsets = [0, 128], sizes = [16, 128], strides = [1, 1]} : vector<16x512xf32> to vector<16x128xf32>
    %cst_98 = arith.constant 5.000000e-01 : f32
    %276 = vector.broadcast %cst_98 : f32 to vector<16x128xf32>
    %277 = arith.mulf %276, %275 : vector<16x128xf32>
    %278 = math.tanh %277 : vector<16x128xf32>
    %cst_99 = arith.constant 5.000000e-01 : f32
    %279 = vector.broadcast %cst_99 : f32 to vector<16x128xf32>
    %280 = arith.mulf %279, %278 : vector<16x128xf32>
    %cst_100 = arith.constant 5.000000e-01 : f32
    %281 = vector.broadcast %cst_100 : f32 to vector<16x128xf32>
    %282 = arith.addf %280, %281 : vector<16x128xf32>
    %283 = vector.extract_strided_slice %266 {offsets = [0, 256], sizes = [16, 128], strides = [1, 1]} : vector<16x512xf32> to vector<16x128xf32>
    %284 = math.tanh %283 : vector<16x128xf32>
    %285 = vector.extract_strided_slice %266 {offsets = [0, 384], sizes = [16, 128], strides = [1, 1]} : vector<16x512xf32> to vector<16x128xf32>
    %cst_101 = arith.constant 5.000000e-01 : f32
    %286 = vector.broadcast %cst_101 : f32 to vector<16x128xf32>
    %287 = arith.mulf %286, %285 : vector<16x128xf32>
    %288 = math.tanh %287 : vector<16x128xf32>
    %cst_102 = arith.constant 5.000000e-01 : f32
    %289 = vector.broadcast %cst_102 : f32 to vector<16x128xf32>
    %290 = arith.mulf %289, %288 : vector<16x128xf32>
    %cst_103 = arith.constant 5.000000e-01 : f32
    %291 = vector.broadcast %cst_103 : f32 to vector<16x128xf32>
    %292 = arith.addf %290, %291 : vector<16x128xf32>
    %293 = arith.mulf %282, %254 : vector<16x128xf32>
    %294 = arith.mulf %274, %284 : vector<16x128xf32>
    %295 = arith.addf %293, %294 : vector<16x128xf32>
    %296 = math.tanh %295 : vector<16x128xf32>
    %297 = arith.mulf %292, %296 : vector<16x128xf32>
    %298 = arith.truncf %297 : vector<16x128xf32> to vector<16x128xbf16>
    %299 = arith.index_cast %261 : i32 to index
    %c0_104 = arith.constant 0 : index
    %300 = vector.load %arg7[%299, %c0_104] : memref<128x128xbf16, #tpu.memory_space<vmem>>, vector<16x128xbf16>
    tpu.vector_store %arg7[%299, %c0_104], %298 {strides = array<i32>} : memref<128x128xbf16, #tpu.memory_space<vmem>>, vector<16x128xbf16>,
    %c7_i32 = arith.constant 7 : i32
    %c16_i32_105 = arith.constant 16 : i32
    %301 = arith.muli %c7_i32, %c16_i32_105 : i32
    %302 = tpu.assume_multiple %301, 16 : i32
    %303 = arith.index_cast %302 : i32 to index
    %c0_106 = arith.constant 0 : index
    %304 = vector.load %arg10[%303, %c0_106] : memref<128x512xf32, #tpu.memory_space<vmem>>, vector<16x512xf32>
    %305 = arith.truncf %297 : vector<16x128xf32> to vector<16x128xbf16>
    %cst_107 = arith.constant dense<0.000000e+00> : vector<16x512xf32>
    %306 = tpu.matmul %305, %11, %cst_107 {dimension_numbers = #tpu.dot_dimension_numbers<[1], [0], [0], [1], [0, 0, 1, 1], [], []>} : vector<16x128xbf16>, vector<128x512xbf16>, vector<16x512xf32> -> vector<16x512xf32>
    %307 = arith.addf %304, %306 : vector<16x512xf32>
    %308 = vector.extract_strided_slice %307 {offsets = [0, 0], sizes = [16, 128], strides = [1, 1]} : vector<16x512xf32> to vector<16x128xf32>
    %cst_108 = arith.constant 5.000000e-01 : f32
    %309 = vector.broadcast %cst_108 : f32 to vector<16x128xf32>
    %310 = arith.mulf %309, %308 : vector<16x128xf32>
    %311 = math.tanh %310 : vector<16x128xf32>
    %cst_109 = arith.constant 5.000000e-01 : f32
    %312 = vector.broadcast %cst_109 : f32 to vector<16x128xf32>
    %313 = arith.mulf %312, %311 : vector<16x128xf32>
    %cst_110 = arith.constant 5.000000e-01 : f32
    %314 = vector.broadcast %cst_110 : f32 to vector<16x128xf32>
    %315 = arith.addf %313, %314 : vector<16x128xf32>
    %316 = vector.extract_strided_slice %307 {offsets = [0, 128], sizes = [16, 128], strides = [1, 1]} : vector<16x512xf32> to vector<16x128xf32>
    %cst_111 = arith.constant 5.000000e-01 : f32
    %317 = vector.broadcast %cst_111 : f32 to vector<16x128xf32>
    %318 = arith.mulf %317, %316 : vector<16x128xf32>
    %319 = math.tanh %318 : vector<16x128xf32>
    %cst_112 = arith.constant 5.000000e-01 : f32
    %320 = vector.broadcast %cst_112 : f32 to vector<16x128xf32>
    %321 = arith.mulf %320, %319 : vector<16x128xf32>
    %cst_113 = arith.constant 5.000000e-01 : f32
    %322 = vector.broadcast %cst_113 : f32 to vector<16x128xf32>
    %323 = arith.addf %321, %322 : vector<16x128xf32>
    %324 = vector.extract_strided_slice %307 {offsets = [0, 256], sizes = [16, 128], strides = [1, 1]} : vector<16x512xf32> to vector<16x128xf32>
    %325 = math.tanh %324 : vector<16x128xf32>
    %326 = vector.extract_strided_slice %307 {offsets = [0, 384], sizes = [16, 128], strides = [1, 1]} : vector<16x512xf32> to vector<16x128xf32>
    %cst_114 = arith.constant 5.000000e-01 : f32
    %327 = vector.broadcast %cst_114 : f32 to vector<16x128xf32>
    %328 = arith.mulf %327, %326 : vector<16x128xf32>
    %329 = math.tanh %328 : vector<16x128xf32>
    %cst_115 = arith.constant 5.000000e-01 : f32
    %330 = vector.broadcast %cst_115 : f32 to vector<16x128xf32>
    %331 = arith.mulf %330, %329 : vector<16x128xf32>
    %cst_116 = arith.constant 5.000000e-01 : f32
    %332 = vector.broadcast %cst_116 : f32 to vector<16x128xf32>
    %333 = arith.addf %331, %332 : vector<16x128xf32>
    %334 = arith.mulf %323, %295 : vector<16x128xf32>
    %335 = arith.mulf %315, %325 : vector<16x128xf32>
    %336 = arith.addf %334, %335 : vector<16x128xf32>
    %337 = math.tanh %336 : vector<16x128xf32>
    %338 = arith.mulf %333, %337 : vector<16x128xf32>
    %339 = arith.truncf %338 : vector<16x128xf32> to vector<16x128xbf16>
    %340 = arith.index_cast %302 : i32 to index
    %c0_117 = arith.constant 0 : index
    %341 = vector.load %arg7[%340, %c0_117] : memref<128x128xbf16, #tpu.memory_space<vmem>>, vector<16x128xbf16>
    tpu.vector_store %arg7[%340, %c0_117], %339 {strides = array<i32>} : memref<128x128xbf16, #tpu.memory_space<vmem>>, vector<16x128xbf16>,
    %c8_i32 = arith.constant 8 : i32
    %c0_118 = arith.constant 0 : index
    %c0_119 = arith.constant 0 : index
    %342 = vector.load %arg11[%c0_118, %c0_119] : memref<16x128xf32, #tpu.memory_space<vmem>>, vector<16x128xf32>
    tpu.vector_store %arg11[%c0_118, %c0_119], %338 {strides = array<i32>} : memref<16x128xf32, #tpu.memory_space<vmem>>, vector<16x128xf32>,
    %c0_120 = arith.constant 0 : index
    %c0_121 = arith.constant 0 : index
    %343 = vector.load %arg12[%c0_120, %c0_121] : memref<16x128xf32, #tpu.memory_space<vmem>>, vector<16x128xf32>
    tpu.vector_store %arg12[%c0_120, %c0_121], %336 {strides = array<i32>} : memref<16x128xf32, #tpu.memory_space<vmem>>, vector<16x128xf32>,
    %c0_i32_122 = arith.constant 0 : i32
    %344 = arith.cmpi eq, %arg0, %c0_i32_122 : i32
    %345 = arith.extui %344 : i1 to i32
    %c0_i32_123 = arith.constant 0 : i32
    %346 = arith.cmpi ne, %345, %c0_i32_123 : i32
    scf.if %346 {
      %c0_124 = arith.constant 0 : index
      %c0_125 = arith.constant 0 : index
      %347 = vector.load %arg8[%c0_124, %c0_125] : memref<16x128xf32, #tpu.memory_space<vmem>>, vector<16x128xf32>
      tpu.vector_store %arg8[%c0_124, %c0_125], %338 {strides = array<i32>} : memref<16x128xf32, #tpu.memory_space<vmem>>, vector<16x128xf32>,
      %c0_126 = arith.constant 0 : index
      %c0_127 = arith.constant 0 : index
      %348 = vector.load %arg9[%c0_126, %c0_127] : memref<16x128xf32, #tpu.memory_space<vmem>>, vector<16x128xf32>
      tpu.vector_store %arg9[%c0_126, %c0_127], %336 {strides = array<i32>} : memref<16x128xf32, #tpu.memory_space<vmem>>, vector<16x128xf32>,
    } else {
    }
    return
  }
  func.func @transform_0(%arg0: i32) -> (i32, i32) {
    %c0_i32 = arith.constant 0 : i32
    %c0_i32_0 = arith.constant 0 : i32
    return %arg0, %c0_i32 : i32, i32
  }
  func.func @transform_1(%arg0: i32) -> (i32, i32) {
    %c0_i32 = arith.constant 0 : i32
    %c0_i32_0 = arith.constant 0 : i32
    %c0_i32_1 = arith.constant 0 : i32
    return %c0_i32, %c0_i32_0 : i32, i32
  }
  func.func @transform_2(%arg0: i32) -> (i32, i32) {
    %c0_i32 = arith.constant 0 : i32
    %c0_i32_0 = arith.constant 0 : i32
    %c0_i32_1 = arith.constant 0 : i32
    return %c0_i32, %c0_i32_0 : i32, i32
  }
  func.func @transform_3(%arg0: i32) -> (i32, i32) {
    %c0_i32 = arith.constant 0 : i32
    %c0_i32_0 = arith.constant 0 : i32
    %c0_i32_1 = arith.constant 0 : i32
    return %c0_i32, %c0_i32_0 : i32, i32
  }
  func.func @transform_4(%arg0: i32) -> (i32, i32) {
    %c0_i32 = arith.constant 0 : i32
    %c0_i32_0 = arith.constant 0 : i32
    %c0_i32_1 = arith.constant 0 : i32
    return %c0_i32, %c0_i32_0 : i32, i32
  }
  func.func @transform_5(%arg0: i32) -> (i32, i32) {
    %c0_i32 = arith.constant 0 : i32
    %c0_i32_0 = arith.constant 0 : i32
    %c0_i32_1 = arith.constant 0 : i32
    return %c0_i32, %c0_i32_0 : i32, i32
  }
  func.func @transform_6(%arg0: i32) -> (i32, i32) {
    %c0_i32 = arith.constant 0 : i32
    %c0_i32_0 = arith.constant 0 : i32
    return %arg0, %c0_i32 : i32, i32
  }
  func.func @transform_7(%arg0: i32) -> (i32, i32) {
    %c0_i32 = arith.constant 0 : i32
    %c0_i32_0 = arith.constant 0 : i32
    %c0_i32_1 = arith.constant 0 : i32
    return %c0_i32, %c0_i32_0 : i32, i32
  }
  func.func @transform_8(%arg0: i32) -> (i32, i32) {
    %c0_i32 = arith.constant 0 : i32
    %c0_i32_0 = arith.constant 0 : i32
    %c0_i32_1 = arith.constant 0 : i32
    return %c0_i32, %c0_i32_0 : i32, i32
  }
}

module attributes {stable_mosaic.version = 11 : i64} {
  func.func @_lstm_layer_kernel(%arg0: i32, %arg1: memref<128x128xbf16, #tpu.memory_space<vmem>>, %arg2: memref<128x512xbf16, #tpu.memory_space<vmem>>, %arg3: memref<128x512xbf16, #tpu.memory_space<vmem>>, %arg4: memref<1x512xf32, #tpu.memory_space<vmem>>, %arg5: memref<16x128xf32, #tpu.memory_space<vmem>>, %arg6: memref<16x128xf32, #tpu.memory_space<vmem>>, %arg7: memref<128x128xbf16, #tpu.memory_space<vmem>>, %arg8: memref<16x128xf32, #tpu.memory_space<vmem>>, %arg9: memref<16x128xf32, #tpu.memory_space<vmem>>, %arg10: memref<128x512xf32, #tpu.memory_space<vmem>>, %arg11: memref<16x128xf32, #tpu.memory_space<vmem>>, %arg12: memref<16x128xf32, #tpu.memory_space<vmem>>) attributes {dimension_semantics = [#tpu.dimension_semantics<arbitrary>], iteration_bounds = array<i64: 1>, scalar_prefetch = 0 : i64, scratch_operands = 3 : i64, tpu.core_type = #tpu.core_type<tc>, window_params = [{transform_indices = @transform_0, window_bounds = array<i64: 128, 128>}, {pipeline_mode = #tpu.pipeline_mode<synchronous>, transform_indices = @transform_1, window_bounds = array<i64: 128, 512>}, {pipeline_mode = #tpu.pipeline_mode<synchronous>, transform_indices = @transform_2, window_bounds = array<i64: 128, 512>}, {pipeline_mode = #tpu.pipeline_mode<synchronous>, transform_indices = @transform_3, window_bounds = array<i64: 1, 512>}, {pipeline_mode = #tpu.pipeline_mode<synchronous>, transform_indices = @transform_4, window_bounds = array<i64: 16, 128>}, {pipeline_mode = #tpu.pipeline_mode<synchronous>, transform_indices = @transform_5, window_bounds = array<i64: 16, 128>}, {transform_indices = @transform_6, window_bounds = array<i64: 128, 128>}, {pipeline_mode = #tpu.pipeline_mode<synchronous>, transform_indices = @transform_7, window_bounds = array<i64: 16, 128>}, {pipeline_mode = #tpu.pipeline_mode<synchronous>, transform_indices = @transform_8, window_bounds = array<i64: 16, 128>}]} {
    %c0_i32 = arith.constant 0 : i32
    %0 = arith.cmpi eq, %arg0, %c0_i32 : i32
    %1 = arith.extui %0 : i1 to i32
    %c0_i32_0 = arith.constant 0 : i32
    %2 = arith.cmpi ne, %1, %c0_i32_0 : i32
    scf.if %2 {
      %c0_124 = arith.constant 0 : index
      %c0_125 = arith.constant 0 : index
      %347 = vector.load %arg5[%c0_124, %c0_125] : memref<16x128xf32, #tpu.memory_space<vmem>>, vector<16x128xf32>
      %c0_126 = arith.constant 0 : index
      %c0_127 = arith.constant 0 : index
      %348 = vector.load %arg11[%c0_126, %c0_127] : memref<16x128xf32, #tpu.memory_space<vmem>>, vector<16x128xf32>
      tpu.vector_store %arg11[%c0_126, %c0_127], %347 {strides = array<i32>} : memref<16x128xf32, #tpu.memory_space<vmem>>, vector<16x128xf32>,
      %c0_128 = arith.constant 0 : index
      %c0_129 = arith.constant 0 : index
      %349 = vector.load %arg6[%c0_128, %c0_129] : memref<16x128xf32, #tpu.memory_space<vmem>>, vector<16x128xf32>
      %c0_130 = arith.constant 0 : index
      %c0_131 = arith.constant 0 : index
      %350 = vector.load %arg12[%c0_130, %c0_131] : memref<16x128xf32, #tpu.memory_space<vmem>>, vector<16x128xf32>
      tpu.vector_store %arg12[%c0_130, %c0_131], %349 {strides = array<i32>} : memref<16x128xf32, #tpu.memory_space<vmem>>, vector<16x128xf32>,
    } else {
    }
    %c0 = arith.constant 0 : index
    %c0_1 = arith.constant 0 : index
    %3 = vector.load %arg1[%c0, %c0_1] : memref<128x128xbf16, #tpu.memory_space<vmem>>, vector<128x128xbf16>
    %c0_2 = arith.constant 0 : index
    %c0_3 = arith.constant 0 : index
    %4 = vector.load %arg2[%c0_2, %c0_3] : memref<128x512xbf16, #tpu.memory_space<vmem>>, vector<128x512xbf16>
    %cst = arith.constant dense<0.000000e+00> : vector<128x512xf32>
    %5 = tpu.matmul %3, %4, %cst {dimension_numbers = #tpu.dot_dimension_numbers<[1], [0], [0], [1], [0, 0, 1, 1], [], []>} : vector<128x128xbf16>, vector<128x512xbf16>, vector<128x512xf32> -> vector<128x512xf32>
    %c0_4 = arith.constant 0 : index
    %c0_5 = arith.constant 0 : index
    %6 = vector.load %arg4[%c0_4, %c0_5] : memref<1x512xf32, #tpu.memory_space<vmem>>, vector<1x512xf32>
    %7 = vector.shape_cast %6 : vector<1x512xf32> to vector<1x512xf32>
    %8 = vector.broadcast %7 : vector<1x512xf32> to vector<128x512xf32>
    %9 = arith.addf %5, %8 : vector<128x512xf32>
    %c0_6 = arith.constant 0 : index
    %c0_7 = arith.constant 0 : index
    %10 = vector.load %arg10[%c0_6, %c0_7] : memref<128x512xf32, #tpu.memory_space<vmem>>, vector<128x512xf32>
    tpu.vector_store %arg10[%c0_6, %c0_7], %9 {strides = array<i32>} : memref<128x512xf32, #tpu.memory_space<vmem>>, vector<128x512xf32>,
    %c0_8 = arith.constant 0 : index
    %c0_9 = arith.constant 0 : index
    %11 = vector.load %arg3[%c0_8, %c0_9] : memref<128x512xbf16, #tpu.memory_space<vmem>>, vector<128x512xbf16>
    %c0_10 = arith.constant 0 : index
    %c0_11 = arith.constant 0 : index
    %12 = vector.load %arg11[%c0_10, %c0_11] : memref<16x128xf32, #tpu.memory_space<vmem>>, vector<16x128xf32>
    %c0_12 = arith.constant 0 : index
    %c0_13 = arith.constant 0 : index
    %13 = vector.load %arg12[%c0_12, %c0_13] : memref<16x128xf32, #tpu.memory_space<vmem>>, vector<16x128xf32>
    %c0_i32_14 = arith.constant 0 : i32
    %c16_i32 = arith.constant 16 : i32
    %14 = arith.muli %c0_i32_14, %c16_i32 : i32
    %15 = tpu.assume_multiple %14, 16 : i32
    %16 = arith.index_cast %15 : i32 to index
    %c0_15 = arith.constant 0 : index
    %17 = vector.load %arg10[%16, %c0_15] : memref<128x512xf32, #tpu.memory_space<vmem>>, vector<16x512xf32>
    %18 = arith.truncf %12 : vector<16x128xf32> to vector<16x128xbf16>
    %cst_16 = arith.constant dense<0.000000e+00> : vector<16x512xf32>
    %19 = tpu.matmul %18, %11, %cst_16 {dimension_numbers = #tpu.dot_dimension_numbers<[1], [0], [0], [1], [0, 0, 1, 1], [], []>} : vector<16x128xbf16>, vector<128x512xbf16>, vector<16x512xf32> -> vector<16x512xf32>
    %20 = arith.addf %17, %19 : vector<16x512xf32>
    %21 = vector.extract_strided_slice %20 {offsets = [0, 0], sizes = [16, 128], strides = [1, 1]} : vector<16x512xf32> to vector<16x128xf32>
    %cst_17 = arith.constant 5.000000e-01 : f32
    %22 = vector.broadcast %cst_17 : f32 to vector<16x128xf32>
    %23 = arith.mulf %22, %21 : vector<16x128xf32>
    %24 = math.tanh %23 : vector<16x128xf32>
    %cst_18 = arith.constant 5.000000e-01 : f32
    %25 = vector.broadcast %cst_18 : f32 to vector<16x128xf32>
    %26 = arith.mulf %25, %24 : vector<16x128xf32>
    %cst_19 = arith.constant 5.000000e-01 : f32
    %27 = vector.broadcast %cst_19 : f32 to vector<16x128xf32>
    %28 = arith.addf %26, %27 : vector<16x128xf32>
    %29 = vector.extract_strided_slice %20 {offsets = [0, 128], sizes = [16, 128], strides = [1, 1]} : vector<16x512xf32> to vector<16x128xf32>
    %cst_20 = arith.constant 5.000000e-01 : f32
    %30 = vector.broadcast %cst_20 : f32 to vector<16x128xf32>
    %31 = arith.mulf %30, %29 : vector<16x128xf32>
    %32 = math.tanh %31 : vector<16x128xf32>
    %cst_21 = arith.constant 5.000000e-01 : f32
    %33 = vector.broadcast %cst_21 : f32 to vector<16x128xf32>
    %34 = arith.mulf %33, %32 : vector<16x128xf32>
    %cst_22 = arith.constant 5.000000e-01 : f32
    %35 = vector.broadcast %cst_22 : f32 to vector<16x128xf32>
    %36 = arith.addf %34, %35 : vector<16x128xf32>
    %37 = vector.extract_strided_slice %20 {offsets = [0, 256], sizes = [16, 128], strides = [1, 1]} : vector<16x512xf32> to vector<16x128xf32>
    %38 = math.tanh %37 : vector<16x128xf32>
    %39 = vector.extract_strided_slice %20 {offsets = [0, 384], sizes = [16, 128], strides = [1, 1]} : vector<16x512xf32> to vector<16x128xf32>
    %cst_23 = arith.constant 5.000000e-01 : f32
    %40 = vector.broadcast %cst_23 : f32 to vector<16x128xf32>
    %41 = arith.mulf %40, %39 : vector<16x128xf32>
    %42 = math.tanh %41 : vector<16x128xf32>
    %cst_24 = arith.constant 5.000000e-01 : f32
    %43 = vector.broadcast %cst_24 : f32 to vector<16x128xf32>
    %44 = arith.mulf %43, %42 : vector<16x128xf32>
    %cst_25 = arith.constant 5.000000e-01 : f32
    %45 = vector.broadcast %cst_25 : f32 to vector<16x128xf32>
    %46 = arith.addf %44, %45 : vector<16x128xf32>
    %47 = arith.mulf %36, %13 : vector<16x128xf32>
    %48 = arith.mulf %28, %38 : vector<16x128xf32>
    %49 = arith.addf %47, %48 : vector<16x128xf32>
    %50 = math.tanh %49 : vector<16x128xf32>
    %51 = arith.mulf %46, %50 : vector<16x128xf32>
    %52 = arith.truncf %51 : vector<16x128xf32> to vector<16x128xbf16>
    %53 = arith.index_cast %15 : i32 to index
    %c0_26 = arith.constant 0 : index
    %54 = vector.load %arg7[%53, %c0_26] : memref<128x128xbf16, #tpu.memory_space<vmem>>, vector<16x128xbf16>
    tpu.vector_store %arg7[%53, %c0_26], %52 {strides = array<i32>} : memref<128x128xbf16, #tpu.memory_space<vmem>>, vector<16x128xbf16>,
    %c1_i32 = arith.constant 1 : i32
    %c16_i32_27 = arith.constant 16 : i32
    %55 = arith.muli %c1_i32, %c16_i32_27 : i32
    %56 = tpu.assume_multiple %55, 16 : i32
    %57 = arith.index_cast %56 : i32 to index
    %c0_28 = arith.constant 0 : index
    %58 = vector.load %arg10[%57, %c0_28] : memref<128x512xf32, #tpu.memory_space<vmem>>, vector<16x512xf32>
    %59 = arith.truncf %51 : vector<16x128xf32> to vector<16x128xbf16>
    %cst_29 = arith.constant dense<0.000000e+00> : vector<16x512xf32>
    %60 = tpu.matmul %59, %11, %cst_29 {dimension_numbers = #tpu.dot_dimension_numbers<[1], [0], [0], [1], [0, 0, 1, 1], [], []>} : vector<16x128xbf16>, vector<128x512xbf16>, vector<16x512xf32> -> vector<16x512xf32>
    %61 = arith.addf %58, %60 : vector<16x512xf32>
    %62 = vector.extract_strided_slice %61 {offsets = [0, 0], sizes = [16, 128], strides = [1, 1]} : vector<16x512xf32> to vector<16x128xf32>
    %cst_30 = arith.constant 5.000000e-01 : f32
    %63 = vector.broadcast %cst_30 : f32 to vector<16x128xf32>
    %64 = arith.mulf %63, %62 : vector<16x128xf32>
    %65 = math.tanh %64 : vector<16x128xf32>
    %cst_31 = arith.constant 5.000000e-01 : f32
    %66 = vector.broadcast %cst_31 : f32 to vector<16x128xf32>
    %67 = arith.mulf %66, %65 : vector<16x128xf32>
    %cst_32 = arith.constant 5.000000e-01 : f32
    %68 = vector.broadcast %cst_32 : f32 to vector<16x128xf32>
    %69 = arith.addf %67, %68 : vector<16x128xf32>
    %70 = vector.extract_strided_slice %61 {offsets = [0, 128], sizes = [16, 128], strides = [1, 1]} : vector<16x512xf32> to vector<16x128xf32>
    %cst_33 = arith.constant 5.000000e-01 : f32
    %71 = vector.broadcast %cst_33 : f32 to vector<16x128xf32>
    %72 = arith.mulf %71, %70 : vector<16x128xf32>
    %73 = math.tanh %72 : vector<16x128xf32>
    %cst_34 = arith.constant 5.000000e-01 : f32
    %74 = vector.broadcast %cst_34 : f32 to vector<16x128xf32>
    %75 = arith.mulf %74, %73 : vector<16x128xf32>
    %cst_35 = arith.constant 5.000000e-01 : f32
    %76 = vector.broadcast %cst_35 : f32 to vector<16x128xf32>
    %77 = arith.addf %75, %76 : vector<16x128xf32>
    %78 = vector.extract_strided_slice %61 {offsets = [0, 256], sizes = [16, 128], strides = [1, 1]} : vector<16x512xf32> to vector<16x128xf32>
    %79 = math.tanh %78 : vector<16x128xf32>
    %80 = vector.extract_strided_slice %61 {offsets = [0, 384], sizes = [16, 128], strides = [1, 1]} : vector<16x512xf32> to vector<16x128xf32>
    %cst_36 = arith.constant 5.000000e-01 : f32
    %81 = vector.broadcast %cst_36 : f32 to vector<16x128xf32>
    %82 = arith.mulf %81, %80 : vector<16x128xf32>
    %83 = math.tanh %82 : vector<16x128xf32>
    %cst_37 = arith.constant 5.000000e-01 : f32
    %84 = vector.broadcast %cst_37 : f32 to vector<16x128xf32>
    %85 = arith.mulf %84, %83 : vector<16x128xf32>
    %cst_38 = arith.constant 5.000000e-01 : f32
    %86 = vector.broadcast %cst_38 : f32 to vector<16x128xf32>
    %87 = arith.addf %85, %86 : vector<16x128xf32>
    %88 = arith.mulf %77, %49 : vector<16x128xf32>
    %89 = arith.mulf %69, %79 : vector<16x128xf32>
    %90 = arith.addf %88, %89 : vector<16x128xf32>
    %91 = math.tanh %90 : vector<16x128xf32>
    %92 = arith.mulf %87, %91 : vector<16x128xf32>
    %93 = arith.truncf %92 : vector<16x128xf32> to vector<16x128xbf16>
    %94 = arith.index_cast %56 : i32 to index
    %c0_39 = arith.constant 0 : index
    %95 = vector.load %arg7[%94, %c0_39] : memref<128x128xbf16, #tpu.memory_space<vmem>>, vector<16x128xbf16>
    tpu.vector_store %arg7[%94, %c0_39], %93 {strides = array<i32>} : memref<128x128xbf16, #tpu.memory_space<vmem>>, vector<16x128xbf16>,
    %c2_i32 = arith.constant 2 : i32
    %c16_i32_40 = arith.constant 16 : i32
    %96 = arith.muli %c2_i32, %c16_i32_40 : i32
    %97 = tpu.assume_multiple %96, 16 : i32
    %98 = arith.index_cast %97 : i32 to index
    %c0_41 = arith.constant 0 : index
    %99 = vector.load %arg10[%98, %c0_41] : memref<128x512xf32, #tpu.memory_space<vmem>>, vector<16x512xf32>
    %100 = arith.truncf %92 : vector<16x128xf32> to vector<16x128xbf16>
    %cst_42 = arith.constant dense<0.000000e+00> : vector<16x512xf32>
    %101 = tpu.matmul %100, %11, %cst_42 {dimension_numbers = #tpu.dot_dimension_numbers<[1], [0], [0], [1], [0, 0, 1, 1], [], []>} : vector<16x128xbf16>, vector<128x512xbf16>, vector<16x512xf32> -> vector<16x512xf32>
    %102 = arith.addf %99, %101 : vector<16x512xf32>
    %103 = vector.extract_strided_slice %102 {offsets = [0, 0], sizes = [16, 128], strides = [1, 1]} : vector<16x512xf32> to vector<16x128xf32>
    %cst_43 = arith.constant 5.000000e-01 : f32
    %104 = vector.broadcast %cst_43 : f32 to vector<16x128xf32>
    %105 = arith.mulf %104, %103 : vector<16x128xf32>
    %106 = math.tanh %105 : vector<16x128xf32>
    %cst_44 = arith.constant 5.000000e-01 : f32
    %107 = vector.broadcast %cst_44 : f32 to vector<16x128xf32>
    %108 = arith.mulf %107, %106 : vector<16x128xf32>
    %cst_45 = arith.constant 5.000000e-01 : f32
    %109 = vector.broadcast %cst_45 : f32 to vector<16x128xf32>
    %110 = arith.addf %108, %109 : vector<16x128xf32>
    %111 = vector.extract_strided_slice %102 {offsets = [0, 128], sizes = [16, 128], strides = [1, 1]} : vector<16x512xf32> to vector<16x128xf32>
    %cst_46 = arith.constant 5.000000e-01 : f32
    %112 = vector.broadcast %cst_46 : f32 to vector<16x128xf32>
    %113 = arith.mulf %112, %111 : vector<16x128xf32>
    %114 = math.tanh %113 : vector<16x128xf32>
    %cst_47 = arith.constant 5.000000e-01 : f32
    %115 = vector.broadcast %cst_47 : f32 to vector<16x128xf32>
    %116 = arith.mulf %115, %114 : vector<16x128xf32>
    %cst_48 = arith.constant 5.000000e-01 : f32
    %117 = vector.broadcast %cst_48 : f32 to vector<16x128xf32>
    %118 = arith.addf %116, %117 : vector<16x128xf32>
    %119 = vector.extract_strided_slice %102 {offsets = [0, 256], sizes = [16, 128], strides = [1, 1]} : vector<16x512xf32> to vector<16x128xf32>
    %120 = math.tanh %119 : vector<16x128xf32>
    %121 = vector.extract_strided_slice %102 {offsets = [0, 384], sizes = [16, 128], strides = [1, 1]} : vector<16x512xf32> to vector<16x128xf32>
    %cst_49 = arith.constant 5.000000e-01 : f32
    %122 = vector.broadcast %cst_49 : f32 to vector<16x128xf32>
    %123 = arith.mulf %122, %121 : vector<16x128xf32>
    %124 = math.tanh %123 : vector<16x128xf32>
    %cst_50 = arith.constant 5.000000e-01 : f32
    %125 = vector.broadcast %cst_50 : f32 to vector<16x128xf32>
    %126 = arith.mulf %125, %124 : vector<16x128xf32>
    %cst_51 = arith.constant 5.000000e-01 : f32
    %127 = vector.broadcast %cst_51 : f32 to vector<16x128xf32>
    %128 = arith.addf %126, %127 : vector<16x128xf32>
    %129 = arith.mulf %118, %90 : vector<16x128xf32>
    %130 = arith.mulf %110, %120 : vector<16x128xf32>
    %131 = arith.addf %129, %130 : vector<16x128xf32>
    %132 = math.tanh %131 : vector<16x128xf32>
    %133 = arith.mulf %128, %132 : vector<16x128xf32>
    %134 = arith.truncf %133 : vector<16x128xf32> to vector<16x128xbf16>
    %135 = arith.index_cast %97 : i32 to index
    %c0_52 = arith.constant 0 : index
    %136 = vector.load %arg7[%135, %c0_52] : memref<128x128xbf16, #tpu.memory_space<vmem>>, vector<16x128xbf16>
    tpu.vector_store %arg7[%135, %c0_52], %134 {strides = array<i32>} : memref<128x128xbf16, #tpu.memory_space<vmem>>, vector<16x128xbf16>,
    %c3_i32 = arith.constant 3 : i32
    %c16_i32_53 = arith.constant 16 : i32
    %137 = arith.muli %c3_i32, %c16_i32_53 : i32
    %138 = tpu.assume_multiple %137, 16 : i32
    %139 = arith.index_cast %138 : i32 to index
    %c0_54 = arith.constant 0 : index
    %140 = vector.load %arg10[%139, %c0_54] : memref<128x512xf32, #tpu.memory_space<vmem>>, vector<16x512xf32>
    %141 = arith.truncf %133 : vector<16x128xf32> to vector<16x128xbf16>
    %cst_55 = arith.constant dense<0.000000e+00> : vector<16x512xf32>
    %142 = tpu.matmul %141, %11, %cst_55 {dimension_numbers = #tpu.dot_dimension_numbers<[1], [0], [0], [1], [0, 0, 1, 1], [], []>} : vector<16x128xbf16>, vector<128x512xbf16>, vector<16x512xf32> -> vector<16x512xf32>
    %143 = arith.addf %140, %142 : vector<16x512xf32>
    %144 = vector.extract_strided_slice %143 {offsets = [0, 0], sizes = [16, 128], strides = [1, 1]} : vector<16x512xf32> to vector<16x128xf32>
    %cst_56 = arith.constant 5.000000e-01 : f32
    %145 = vector.broadcast %cst_56 : f32 to vector<16x128xf32>
    %146 = arith.mulf %145, %144 : vector<16x128xf32>
    %147 = math.tanh %146 : vector<16x128xf32>
    %cst_57 = arith.constant 5.000000e-01 : f32
    %148 = vector.broadcast %cst_57 : f32 to vector<16x128xf32>
    %149 = arith.mulf %148, %147 : vector<16x128xf32>
    %cst_58 = arith.constant 5.000000e-01 : f32
    %150 = vector.broadcast %cst_58 : f32 to vector<16x128xf32>
    %151 = arith.addf %149, %150 : vector<16x128xf32>
    %152 = vector.extract_strided_slice %143 {offsets = [0, 128], sizes = [16, 128], strides = [1, 1]} : vector<16x512xf32> to vector<16x128xf32>
    %cst_59 = arith.constant 5.000000e-01 : f32
    %153 = vector.broadcast %cst_59 : f32 to vector<16x128xf32>
    %154 = arith.mulf %153, %152 : vector<16x128xf32>
    %155 = math.tanh %154 : vector<16x128xf32>
    %cst_60 = arith.constant 5.000000e-01 : f32
    %156 = vector.broadcast %cst_60 : f32 to vector<16x128xf32>
    %157 = arith.mulf %156, %155 : vector<16x128xf32>
    %cst_61 = arith.constant 5.000000e-01 : f32
    %158 = vector.broadcast %cst_61 : f32 to vector<16x128xf32>
    %159 = arith.addf %157, %158 : vector<16x128xf32>
    %160 = vector.extract_strided_slice %143 {offsets = [0, 256], sizes = [16, 128], strides = [1, 1]} : vector<16x512xf32> to vector<16x128xf32>
    %161 = math.tanh %160 : vector<16x128xf32>
    %162 = vector.extract_strided_slice %143 {offsets = [0, 384], sizes = [16, 128], strides = [1, 1]} : vector<16x512xf32> to vector<16x128xf32>
    %cst_62 = arith.constant 5.000000e-01 : f32
    %163 = vector.broadcast %cst_62 : f32 to vector<16x128xf32>
    %164 = arith.mulf %163, %162 : vector<16x128xf32>
    %165 = math.tanh %164 : vector<16x128xf32>
    %cst_63 = arith.constant 5.000000e-01 : f32
    %166 = vector.broadcast %cst_63 : f32 to vector<16x128xf32>
    %167 = arith.mulf %166, %165 : vector<16x128xf32>
    %cst_64 = arith.constant 5.000000e-01 : f32
    %168 = vector.broadcast %cst_64 : f32 to vector<16x128xf32>
    %169 = arith.addf %167, %168 : vector<16x128xf32>
    %170 = arith.mulf %159, %131 : vector<16x128xf32>
    %171 = arith.mulf %151, %161 : vector<16x128xf32>
    %172 = arith.addf %170, %171 : vector<16x128xf32>
    %173 = math.tanh %172 : vector<16x128xf32>
    %174 = arith.mulf %169, %173 : vector<16x128xf32>
    %175 = arith.truncf %174 : vector<16x128xf32> to vector<16x128xbf16>
    %176 = arith.index_cast %138 : i32 to index
    %c0_65 = arith.constant 0 : index
    %177 = vector.load %arg7[%176, %c0_65] : memref<128x128xbf16, #tpu.memory_space<vmem>>, vector<16x128xbf16>
    tpu.vector_store %arg7[%176, %c0_65], %175 {strides = array<i32>} : memref<128x128xbf16, #tpu.memory_space<vmem>>, vector<16x128xbf16>,
    %c4_i32 = arith.constant 4 : i32
    %c16_i32_66 = arith.constant 16 : i32
    %178 = arith.muli %c4_i32, %c16_i32_66 : i32
    %179 = tpu.assume_multiple %178, 16 : i32
    %180 = arith.index_cast %179 : i32 to index
    %c0_67 = arith.constant 0 : index
    %181 = vector.load %arg10[%180, %c0_67] : memref<128x512xf32, #tpu.memory_space<vmem>>, vector<16x512xf32>
    %182 = arith.truncf %174 : vector<16x128xf32> to vector<16x128xbf16>
    %cst_68 = arith.constant dense<0.000000e+00> : vector<16x512xf32>
    %183 = tpu.matmul %182, %11, %cst_68 {dimension_numbers = #tpu.dot_dimension_numbers<[1], [0], [0], [1], [0, 0, 1, 1], [], []>} : vector<16x128xbf16>, vector<128x512xbf16>, vector<16x512xf32> -> vector<16x512xf32>
    %184 = arith.addf %181, %183 : vector<16x512xf32>
    %185 = vector.extract_strided_slice %184 {offsets = [0, 0], sizes = [16, 128], strides = [1, 1]} : vector<16x512xf32> to vector<16x128xf32>
    %cst_69 = arith.constant 5.000000e-01 : f32
    %186 = vector.broadcast %cst_69 : f32 to vector<16x128xf32>
    %187 = arith.mulf %186, %185 : vector<16x128xf32>
    %188 = math.tanh %187 : vector<16x128xf32>
    %cst_70 = arith.constant 5.000000e-01 : f32
    %189 = vector.broadcast %cst_70 : f32 to vector<16x128xf32>
    %190 = arith.mulf %189, %188 : vector<16x128xf32>
    %cst_71 = arith.constant 5.000000e-01 : f32
    %191 = vector.broadcast %cst_71 : f32 to vector<16x128xf32>
    %192 = arith.addf %190, %191 : vector<16x128xf32>
    %193 = vector.extract_strided_slice %184 {offsets = [0, 128], sizes = [16, 128], strides = [1, 1]} : vector<16x512xf32> to vector<16x128xf32>
    %cst_72 = arith.constant 5.000000e-01 : f32
    %194 = vector.broadcast %cst_72 : f32 to vector<16x128xf32>
    %195 = arith.mulf %194, %193 : vector<16x128xf32>
    %196 = math.tanh %195 : vector<16x128xf32>
    %cst_73 = arith.constant 5.000000e-01 : f32
    %197 = vector.broadcast %cst_73 : f32 to vector<16x128xf32>
    %198 = arith.mulf %197, %196 : vector<16x128xf32>
    %cst_74 = arith.constant 5.000000e-01 : f32
    %199 = vector.broadcast %cst_74 : f32 to vector<16x128xf32>
    %200 = arith.addf %198, %199 : vector<16x128xf32>
    %201 = vector.extract_strided_slice %184 {offsets = [0, 256], sizes = [16, 128], strides = [1, 1]} : vector<16x512xf32> to vector<16x128xf32>
    %202 = math.tanh %201 : vector<16x128xf32>
    %203 = vector.extract_strided_slice %184 {offsets = [0, 384], sizes = [16, 128], strides = [1, 1]} : vector<16x512xf32> to vector<16x128xf32>
    %cst_75 = arith.constant 5.000000e-01 : f32
    %204 = vector.broadcast %cst_75 : f32 to vector<16x128xf32>
    %205 = arith.mulf %204, %203 : vector<16x128xf32>
    %206 = math.tanh %205 : vector<16x128xf32>
    %cst_76 = arith.constant 5.000000e-01 : f32
    %207 = vector.broadcast %cst_76 : f32 to vector<16x128xf32>
    %208 = arith.mulf %207, %206 : vector<16x128xf32>
    %cst_77 = arith.constant 5.000000e-01 : f32
    %209 = vector.broadcast %cst_77 : f32 to vector<16x128xf32>
    %210 = arith.addf %208, %209 : vector<16x128xf32>
    %211 = arith.mulf %200, %172 : vector<16x128xf32>
    %212 = arith.mulf %192, %202 : vector<16x128xf32>
    %213 = arith.addf %211, %212 : vector<16x128xf32>
    %214 = math.tanh %213 : vector<16x128xf32>
    %215 = arith.mulf %210, %214 : vector<16x128xf32>
    %216 = arith.truncf %215 : vector<16x128xf32> to vector<16x128xbf16>
    %217 = arith.index_cast %179 : i32 to index
    %c0_78 = arith.constant 0 : index
    %218 = vector.load %arg7[%217, %c0_78] : memref<128x128xbf16, #tpu.memory_space<vmem>>, vector<16x128xbf16>
    tpu.vector_store %arg7[%217, %c0_78], %216 {strides = array<i32>} : memref<128x128xbf16, #tpu.memory_space<vmem>>, vector<16x128xbf16>,
    %c5_i32 = arith.constant 5 : i32
    %c16_i32_79 = arith.constant 16 : i32
    %219 = arith.muli %c5_i32, %c16_i32_79 : i32
    %220 = tpu.assume_multiple %219, 16 : i32
    %221 = arith.index_cast %220 : i32 to index
    %c0_80 = arith.constant 0 : index
    %222 = vector.load %arg10[%221, %c0_80] : memref<128x512xf32, #tpu.memory_space<vmem>>, vector<16x512xf32>
    %223 = arith.truncf %215 : vector<16x128xf32> to vector<16x128xbf16>
    %cst_81 = arith.constant dense<0.000000e+00> : vector<16x512xf32>
    %224 = tpu.matmul %223, %11, %cst_81 {dimension_numbers = #tpu.dot_dimension_numbers<[1], [0], [0], [1], [0, 0, 1, 1], [], []>} : vector<16x128xbf16>, vector<128x512xbf16>, vector<16x512xf32> -> vector<16x512xf32>
    %225 = arith.addf %222, %224 : vector<16x512xf32>
    %226 = vector.extract_strided_slice %225 {offsets = [0, 0], sizes = [16, 128], strides = [1, 1]} : vector<16x512xf32> to vector<16x128xf32>
    %cst_82 = arith.constant 5.000000e-01 : f32
    %227 = vector.broadcast %cst_82 : f32 to vector<16x128xf32>
    %228 = arith.mulf %227, %226 : vector<16x128xf32>
    %229 = math.tanh %228 : vector<16x128xf32>
    %cst_83 = arith.constant 5.000000e-01 : f32
    %230 = vector.broadcast %cst_83 : f32 to vector<16x128xf32>
    %231 = arith.mulf %230, %229 : vector<16x128xf32>
    %cst_84 = arith.constant 5.000000e-01 : f32
    %232 = vector.broadcast %cst_84 : f32 to vector<16x128xf32>
    %233 = arith.addf %231, %232 : vector<16x128xf32>
    %234 = vector.extract_strided_slice %225 {offsets = [0, 128], sizes = [16, 128], strides = [1, 1]} : vector<16x512xf32> to vector<16x128xf32>
    %cst_85 = arith.constant 5.000000e-01 : f32
    %235 = vector.broadcast %cst_85 : f32 to vector<16x128xf32>
    %236 = arith.mulf %235, %234 : vector<16x128xf32>
    %237 = math.tanh %236 : vector<16x128xf32>
    %cst_86 = arith.constant 5.000000e-01 : f32
    %238 = vector.broadcast %cst_86 : f32 to vector<16x128xf32>
    %239 = arith.mulf %238, %237 : vector<16x128xf32>
    %cst_87 = arith.constant 5.000000e-01 : f32
    %240 = vector.broadcast %cst_87 : f32 to vector<16x128xf32>
    %241 = arith.addf %239, %240 : vector<16x128xf32>
    %242 = vector.extract_strided_slice %225 {offsets = [0, 256], sizes = [16, 128], strides = [1, 1]} : vector<16x512xf32> to vector<16x128xf32>
    %243 = math.tanh %242 : vector<16x128xf32>
    %244 = vector.extract_strided_slice %225 {offsets = [0, 384], sizes = [16, 128], strides = [1, 1]} : vector<16x512xf32> to vector<16x128xf32>
    %cst_88 = arith.constant 5.000000e-01 : f32
    %245 = vector.broadcast %cst_88 : f32 to vector<16x128xf32>
    %246 = arith.mulf %245, %244 : vector<16x128xf32>
    %247 = math.tanh %246 : vector<16x128xf32>
    %cst_89 = arith.constant 5.000000e-01 : f32
    %248 = vector.broadcast %cst_89 : f32 to vector<16x128xf32>
    %249 = arith.mulf %248, %247 : vector<16x128xf32>
    %cst_90 = arith.constant 5.000000e-01 : f32
    %250 = vector.broadcast %cst_90 : f32 to vector<16x128xf32>
    %251 = arith.addf %249, %250 : vector<16x128xf32>
    %252 = arith.mulf %241, %213 : vector<16x128xf32>
    %253 = arith.mulf %233, %243 : vector<16x128xf32>
    %254 = arith.addf %252, %253 : vector<16x128xf32>
    %255 = math.tanh %254 : vector<16x128xf32>
    %256 = arith.mulf %251, %255 : vector<16x128xf32>
    %257 = arith.truncf %256 : vector<16x128xf32> to vector<16x128xbf16>
    %258 = arith.index_cast %220 : i32 to index
    %c0_91 = arith.constant 0 : index
    %259 = vector.load %arg7[%258, %c0_91] : memref<128x128xbf16, #tpu.memory_space<vmem>>, vector<16x128xbf16>
    tpu.vector_store %arg7[%258, %c0_91], %257 {strides = array<i32>} : memref<128x128xbf16, #tpu.memory_space<vmem>>, vector<16x128xbf16>,
    %c6_i32 = arith.constant 6 : i32
    %c16_i32_92 = arith.constant 16 : i32
    %260 = arith.muli %c6_i32, %c16_i32_92 : i32
    %261 = tpu.assume_multiple %260, 16 : i32
    %262 = arith.index_cast %261 : i32 to index
    %c0_93 = arith.constant 0 : index
    %263 = vector.load %arg10[%262, %c0_93] : memref<128x512xf32, #tpu.memory_space<vmem>>, vector<16x512xf32>
    %264 = arith.truncf %256 : vector<16x128xf32> to vector<16x128xbf16>
    %cst_94 = arith.constant dense<0.000000e+00> : vector<16x512xf32>
    %265 = tpu.matmul %264, %11, %cst_94 {dimension_numbers = #tpu.dot_dimension_numbers<[1], [0], [0], [1], [0, 0, 1, 1], [], []>} : vector<16x128xbf16>, vector<128x512xbf16>, vector<16x512xf32> -> vector<16x512xf32>
    %266 = arith.addf %263, %265 : vector<16x512xf32>
    %267 = vector.extract_strided_slice %266 {offsets = [0, 0], sizes = [16, 128], strides = [1, 1]} : vector<16x512xf32> to vector<16x128xf32>
    %cst_95 = arith.constant 5.000000e-01 : f32
    %268 = vector.broadcast %cst_95 : f32 to vector<16x128xf32>
    %269 = arith.mulf %268, %267 : vector<16x128xf32>
    %270 = math.tanh %269 : vector<16x128xf32>
    %cst_96 = arith.constant 5.000000e-01 : f32
    %271 = vector.broadcast %cst_96 : f32 to vector<16x128xf32>
    %272 = arith.mulf %271, %270 : vector<16x128xf32>
    %cst_97 = arith.constant 5.000000e-01 : f32
    %273 = vector.broadcast %cst_97 : f32 to vector<16x128xf32>
    %274 = arith.addf %272, %273 : vector<16x128xf32>
    %275 = vector.extract_strided_slice %266 {offsets = [0, 128], sizes = [16, 128], strides = [1, 1]} : vector<16x512xf32> to vector<16x128xf32>
    %cst_98 = arith.constant 5.000000e-01 : f32
    %276 = vector.broadcast %cst_98 : f32 to vector<16x128xf32>
    %277 = arith.mulf %276, %275 : vector<16x128xf32>
    %278 = math.tanh %277 : vector<16x128xf32>
    %cst_99 = arith.constant 5.000000e-01 : f32
    %279 = vector.broadcast %cst_99 : f32 to vector<16x128xf32>
    %280 = arith.mulf %279, %278 : vector<16x128xf32>
    %cst_100 = arith.constant 5.000000e-01 : f32
    %281 = vector.broadcast %cst_100 : f32 to vector<16x128xf32>
    %282 = arith.addf %280, %281 : vector<16x128xf32>
    %283 = vector.extract_strided_slice %266 {offsets = [0, 256], sizes = [16, 128], strides = [1, 1]} : vector<16x512xf32> to vector<16x128xf32>
    %284 = math.tanh %283 : vector<16x128xf32>
    %285 = vector.extract_strided_slice %266 {offsets = [0, 384], sizes = [16, 128], strides = [1, 1]} : vector<16x512xf32> to vector<16x128xf32>
    %cst_101 = arith.constant 5.000000e-01 : f32
    %286 = vector.broadcast %cst_101 : f32 to vector<16x128xf32>
    %287 = arith.mulf %286, %285 : vector<16x128xf32>
    %288 = math.tanh %287 : vector<16x128xf32>
    %cst_102 = arith.constant 5.000000e-01 : f32
    %289 = vector.broadcast %cst_102 : f32 to vector<16x128xf32>
    %290 = arith.mulf %289, %288 : vector<16x128xf32>
    %cst_103 = arith.constant 5.000000e-01 : f32
    %291 = vector.broadcast %cst_103 : f32 to vector<16x128xf32>
    %292 = arith.addf %290, %291 : vector<16x128xf32>
    %293 = arith.mulf %282, %254 : vector<16x128xf32>
    %294 = arith.mulf %274, %284 : vector<16x128xf32>
    %295 = arith.addf %293, %294 : vector<16x128xf32>
    %296 = math.tanh %295 : vector<16x128xf32>
    %297 = arith.mulf %292, %296 : vector<16x128xf32>
    %298 = arith.truncf %297 : vector<16x128xf32> to vector<16x128xbf16>
    %299 = arith.index_cast %261 : i32 to index
    %c0_104 = arith.constant 0 : index
    %300 = vector.load %arg7[%299, %c0_104] : memref<128x128xbf16, #tpu.memory_space<vmem>>, vector<16x128xbf16>
    tpu.vector_store %arg7[%299, %c0_104], %298 {strides = array<i32>} : memref<128x128xbf16, #tpu.memory_space<vmem>>, vector<16x128xbf16>,
    %c7_i32 = arith.constant 7 : i32
    %c16_i32_105 = arith.constant 16 : i32
    %301 = arith.muli %c7_i32, %c16_i32_105 : i32
    %302 = tpu.assume_multiple %301, 16 : i32
    %303 = arith.index_cast %302 : i32 to index
    %c0_106 = arith.constant 0 : index
    %304 = vector.load %arg10[%303, %c0_106] : memref<128x512xf32, #tpu.memory_space<vmem>>, vector<16x512xf32>
    %305 = arith.truncf %297 : vector<16x128xf32> to vector<16x128xbf16>
    %cst_107 = arith.constant dense<0.000000e+00> : vector<16x512xf32>
    %306 = tpu.matmul %305, %11, %cst_107 {dimension_numbers = #tpu.dot_dimension_numbers<[1], [0], [0], [1], [0, 0, 1, 1], [], []>} : vector<16x128xbf16>, vector<128x512xbf16>, vector<16x512xf32> -> vector<16x512xf32>
    %307 = arith.addf %304, %306 : vector<16x512xf32>
    %308 = vector.extract_strided_slice %307 {offsets = [0, 0], sizes = [16, 128], strides = [1, 1]} : vector<16x512xf32> to vector<16x128xf32>
    %cst_108 = arith.constant 5.000000e-01 : f32
    %309 = vector.broadcast %cst_108 : f32 to vector<16x128xf32>
    %310 = arith.mulf %309, %308 : vector<16x128xf32>
    %311 = math.tanh %310 : vector<16x128xf32>
    %cst_109 = arith.constant 5.000000e-01 : f32
    %312 = vector.broadcast %cst_109 : f32 to vector<16x128xf32>
    %313 = arith.mulf %312, %311 : vector<16x128xf32>
    %cst_110 = arith.constant 5.000000e-01 : f32
    %314 = vector.broadcast %cst_110 : f32 to vector<16x128xf32>
    %315 = arith.addf %313, %314 : vector<16x128xf32>
    %316 = vector.extract_strided_slice %307 {offsets = [0, 128], sizes = [16, 128], strides = [1, 1]} : vector<16x512xf32> to vector<16x128xf32>
    %cst_111 = arith.constant 5.000000e-01 : f32
    %317 = vector.broadcast %cst_111 : f32 to vector<16x128xf32>
    %318 = arith.mulf %317, %316 : vector<16x128xf32>
    %319 = math.tanh %318 : vector<16x128xf32>
    %cst_112 = arith.constant 5.000000e-01 : f32
    %320 = vector.broadcast %cst_112 : f32 to vector<16x128xf32>
    %321 = arith.mulf %320, %319 : vector<16x128xf32>
    %cst_113 = arith.constant 5.000000e-01 : f32
    %322 = vector.broadcast %cst_113 : f32 to vector<16x128xf32>
    %323 = arith.addf %321, %322 : vector<16x128xf32>
    %324 = vector.extract_strided_slice %307 {offsets = [0, 256], sizes = [16, 128], strides = [1, 1]} : vector<16x512xf32> to vector<16x128xf32>
    %325 = math.tanh %324 : vector<16x128xf32>
    %326 = vector.extract_strided_slice %307 {offsets = [0, 384], sizes = [16, 128], strides = [1, 1]} : vector<16x512xf32> to vector<16x128xf32>
    %cst_114 = arith.constant 5.000000e-01 : f32
    %327 = vector.broadcast %cst_114 : f32 to vector<16x128xf32>
    %328 = arith.mulf %327, %326 : vector<16x128xf32>
    %329 = math.tanh %328 : vector<16x128xf32>
    %cst_115 = arith.constant 5.000000e-01 : f32
    %330 = vector.broadcast %cst_115 : f32 to vector<16x128xf32>
    %331 = arith.mulf %330, %329 : vector<16x128xf32>
    %cst_116 = arith.constant 5.000000e-01 : f32
    %332 = vector.broadcast %cst_116 : f32 to vector<16x128xf32>
    %333 = arith.addf %331, %332 : vector<16x128xf32>
    %334 = arith.mulf %323, %295 : vector<16x128xf32>
    %335 = arith.mulf %315, %325 : vector<16x128xf32>
    %336 = arith.addf %334, %335 : vector<16x128xf32>
    %337 = math.tanh %336 : vector<16x128xf32>
    %338 = arith.mulf %333, %337 : vector<16x128xf32>
    %339 = arith.truncf %338 : vector<16x128xf32> to vector<16x128xbf16>
    %340 = arith.index_cast %302 : i32 to index
    %c0_117 = arith.constant 0 : index
    %341 = vector.load %arg7[%340, %c0_117] : memref<128x128xbf16, #tpu.memory_space<vmem>>, vector<16x128xbf16>
    tpu.vector_store %arg7[%340, %c0_117], %339 {strides = array<i32>} : memref<128x128xbf16, #tpu.memory_space<vmem>>, vector<16x128xbf16>,
    %c8_i32 = arith.constant 8 : i32
    %c0_118 = arith.constant 0 : index
    %c0_119 = arith.constant 0 : index
    %342 = vector.load %arg11[%c0_118, %c0_119] : memref<16x128xf32, #tpu.memory_space<vmem>>, vector<16x128xf32>
    tpu.vector_store %arg11[%c0_118, %c0_119], %338 {strides = array<i32>} : memref<16x128xf32, #tpu.memory_space<vmem>>, vector<16x128xf32>,
    %c0_120 = arith.constant 0 : index
    %c0_121 = arith.constant 0 : index
    %343 = vector.load %arg12[%c0_120, %c0_121] : memref<16x128xf32, #tpu.memory_space<vmem>>, vector<16x128xf32>
    tpu.vector_store %arg12[%c0_120, %c0_121], %336 {strides = array<i32>} : memref<16x128xf32, #tpu.memory_space<vmem>>, vector<16x128xf32>,
    %c0_i32_122 = arith.constant 0 : i32
    %344 = arith.cmpi eq, %arg0, %c0_i32_122 : i32
    %345 = arith.extui %344 : i1 to i32
    %c0_i32_123 = arith.constant 0 : i32
    %346 = arith.cmpi ne, %345, %c0_i32_123 : i32
    scf.if %346 {
      %c0_124 = arith.constant 0 : index
      %c0_125 = arith.constant 0 : index
      %347 = vector.load %arg8[%c0_124, %c0_125] : memref<16x128xf32, #tpu.memory_space<vmem>>, vector<16x128xf32>
      tpu.vector_store %arg8[%c0_124, %c0_125], %338 {strides = array<i32>} : memref<16x128xf32, #tpu.memory_space<vmem>>, vector<16x128xf32>,
      %c0_126 = arith.constant 0 : index
      %c0_127 = arith.constant 0 : index
      %348 = vector.load %arg9[%c0_126, %c0_127] : memref<16x128xf32, #tpu.memory_space<vmem>>, vector<16x128xf32>
      tpu.vector_store %arg9[%c0_126, %c0_127], %336 {strides = array<i32>} : memref<16x128xf32, #tpu.memory_space<vmem>>, vector<16x128xf32>,
    } else {
    }
    return
  }
  func.func @transform_0(%arg0: i32) -> (i32, i32) {
    %c0_i32 = arith.constant 0 : i32
    %c0_i32_0 = arith.constant 0 : i32
    return %arg0, %c0_i32 : i32, i32
  }
  func.func @transform_1(%arg0: i32) -> (i32, i32) {
    %c0_i32 = arith.constant 0 : i32
    %c0_i32_0 = arith.constant 0 : i32
    %c0_i32_1 = arith.constant 0 : i32
    return %c0_i32, %c0_i32_0 : i32, i32
  }
  func.func @transform_2(%arg0: i32) -> (i32, i32) {
    %c0_i32 = arith.constant 0 : i32
    %c0_i32_0 = arith.constant 0 : i32
    %c0_i32_1 = arith.constant 0 : i32
    return %c0_i32, %c0_i32_0 : i32, i32
  }
  func.func @transform_3(%arg0: i32) -> (i32, i32) {
    %c0_i32 = arith.constant 0 : i32
    %c0_i32_0 = arith.constant 0 : i32
    %c0_i32_1 = arith.constant 0 : i32
    return %c0_i32, %c0_i32_0 : i32, i32
  }
  func.func @transform_4(%arg0: i32) -> (i32, i32) {
    %c0_i32 = arith.constant 0 : i32
    %c0_i32_0 = arith.constant 0 : i32
    %c0_i32_1 = arith.constant 0 : i32
    return %c0_i32, %c0_i32_0 : i32, i32
  }
  func.func @transform_5(%arg0: i32) -> (i32, i32) {
    %c0_i32 = arith.constant 0 : i32
    %c0_i32_0 = arith.constant 0 : i32
    %c0_i32_1 = arith.constant 0 : i32
    return %c0_i32, %c0_i32_0 : i32, i32
  }
  func.func @transform_6(%arg0: i32) -> (i32, i32) {
    %c0_i32 = arith.constant 0 : i32
    %c0_i32_0 = arith.constant 0 : i32
    return %arg0, %c0_i32 : i32, i32
  }
  func.func @transform_7(%arg0: i32) -> (i32, i32) {
    %c0_i32 = arith.constant 0 : i32
    %c0_i32_0 = arith.constant 0 : i32
    %c0_i32_1 = arith.constant 0 : i32
    return %c0_i32, %c0_i32_0 : i32, i32
  }
  func.func @transform_8(%arg0: i32) -> (i32, i32) {
    %c0_i32 = arith.constant 0 : i32
    %c0_i32_0 = arith.constant 0 : i32
    %c0_i32_1 = arith.constant 0 : i32
    return %c0_i32, %c0_i32_0 : i32, i32
  }
}

</mosaic_0001>

<llo_original>
// kernel: tpu_custom_call.1
$region0: #{tpu_custom_call.1}
  #allocation0 [shape = 'u32[]', space=smem, size = 0x4, offset = 0x4, fixed_abs, tag = 'smem constant byte address 0x4 - core index']
  #allocation1 [shape = 'u32[72,128]{1,0:T(1,128)}', space=vmem, size = 0x9000, scoped, tag = 'internal scratch']
  #allocation2 [shape = 'f32[128,512]{1,0:T(8,128)}', space=vmem, size = 0x40000, scoped, tag = 'scratch operand']
  #allocation3 [shape = 'f32[16,128]{1,0:T(8,128)}', space=vmem, size = 0x2000, scoped, tag = 'scratch operand']
  #allocation4 [shape = 'f32[16,128]{1,0:T(8,128)}', space=vmem, size = 0x2000, scoped, tag = 'scratch operand']
  %s0 = inlined_call_operand.hbm [shape: bf16[128,128], index: 0, kind: input, shape index: {}]
  %s1 = inlined_call_operand.hbm [shape: bf16[128,512], index: 1, kind: input, shape index: {}]
  %s2 = inlined_call_operand.hbm [shape: bf16[128,512], index: 2, kind: input, shape index: {}]
  %s3 = inlined_call_operand.hbm [shape: f32[1,512], index: 3, kind: input, shape index: {}]
  %s4 = inlined_call_operand.hbm [shape: f32[16,128], index: 4, kind: input, shape index: {}]
  %s5 = inlined_call_operand.hbm [shape: f32[16,128], index: 5, kind: input, shape index: {}]
  %s6 = inlined_call_operand.hbm [shape: bf16[128,128], index: 6, kind: output, shape index: {0}]
  %s7 = inlined_call_operand.hbm [shape: f32[16,128], index: 7, kind: output, shape index: {1}]
  %s8 = inlined_call_operand.hbm [shape: f32[16,128], index: 8, kind: output, shape index: {2}]
  %9 = xla_tuple %s6, %s7, %s8
  %s10 = sld [smem:[#allocation0]]
  $region82: #{tpu_custom_call.1} parent=0
    _
  %s12 = ssub.s32 1, %s10
  %s13 = scalar_select 0, %s12, %s10
  $region1: #{tpu_custom_call.1} parent=0
    #allocation5 [shape = 'u8[32768]{0}', space=vmem, size = 0x8000, scoped, tag = 'input window, operand 0, single buffered']
    #allocation6 [shape = 's32[1]{0}', space=sflag, size = 0x4, scoped, tag = 'scoped memory for tpu_custom_call.1']
    #allocation7 [shape = 's32[1]{0}', space=sflag, size = 0x4, scoped, tag = 'scoped memory for tpu_custom_call.1']
    #allocation8 [shape = 'u8[131072]{0}', space=vmem, size = 0x20000, scoped, tag = 'input window, operand 1, single buffered']
    #allocation9 [shape = 's32[1]{0}', space=sflag, size = 0x4, scoped, tag = 'scoped memory for tpu_custom_call.1']
    #allocation10 [shape = 'u8[131072]{0}', space=vmem, size = 0x20000, scoped, tag = 'input window, operand 2, single buffered']
    #allocation11 [shape = 'u8[2048]{0}', space=vmem, size = 0x800, scoped, tag = 'input window, operand 3, single buffered']
    #allocation12 [shape = 's32[1]{0}', space=sflag, size = 0x4, scoped, tag = 'scoped memory for tpu_custom_call.1']
    #allocation13 [shape = 'u8[8192]{0}', space=vmem, size = 0x2000, scoped, tag = 'input window, operand 4, single buffered']
    #allocation14 [shape = 'u8[8192]{0}', space=vmem, size = 0x2000, scoped, tag = 'input window, operand 5, single buffered']
    #allocation15 [shape = 's32[1]{0}', space=sflag, size = 0x4, scoped, tag = 'scoped memory for tpu_custom_call.1']
    #allocation16 [shape = 'u8[32768]{0}', space=vmem, size = 0x8000, scoped, tag = 'output window, operand 0, single buffered']
    #allocation17 [shape = 'u8[8192]{0}', space=vmem, size = 0x2000, scoped, tag = 'output window, operand 1, single buffered']
    #allocation18 [shape = 's32[1]{0}', space=sflag, size = 0x4, scoped, tag = 'scoped memory for tpu_custom_call.1']
    #allocation19 [shape = 'u8[8192]{0}', space=vmem, size = 0x2000, scoped, tag = 'output window, operand 2, single buffered']
    %14 = vsyncpa [#allocation6], 0
    %15 = vsyncpa [#allocation9], 0
    %16 = vsyncpa [#allocation12], 0
    %17 = vsyncpa [#allocation15], 0
    %18 = vsyncpa [#allocation7], 0
    %19 = vsyncpa [#allocation18], 0
    // Predicated region
    $region2: #{tpu_custom_call.1} parent=1 // pred_check
      _
    $region3: #{tpu_custom_call.1} parent=1 // pred_check_branch
      %21 = sbr.rel (0) target = $region5
    $region4: #{tpu_custom_call.1} parent=1 // pred_region
      %23 = vsyncadd [#allocation6], 0
      %s24 = sshll.u32 %s0, 4
      %s25 = int_to_ptr.hbm [resolvable:$true] %s24
      %s26 = sshll.u32 [#allocation5], 4
      %s27 = int_to_ptr.vmem [resolvable:$true] %s26
      %32 = dma.hbm_to_vmem [thread:$0]  %s25, 1024, %s27, [#allocation6], 64, 64, 4
    $region5: #{tpu_custom_call.1} parent=1 // pred_fallthru
      _
    // Predicated region
    $region6: #{tpu_custom_call.1} parent=1 // pred_check
      _
    $region7: #{tpu_custom_call.1} parent=1 // pred_check_branch
      %34 = sbr.rel (0) target = $region9
    $region8: #{tpu_custom_call.1} parent=1 // pred_region
      %36 = vsyncadd [#allocation9], 0
      %s37 = sshll.u32 %s1, 4
      %s38 = int_to_ptr.hbm [resolvable:$true] %s37
      %s39 = sshll.u32 [#allocation8], 4
      %s40 = int_to_ptr.vmem [resolvable:$true] %s39
      %45 = dma.hbm_to_vmem [thread:$0]  %s38, 4096, %s40, [#allocation9], 256, 256, 16
    $region9: #{tpu_custom_call.1} parent=1 // pred_fallthru
      _
    // Predicated region
    $region10: #{tpu_custom_call.1} parent=1 // pred_check
      _
    $region11: #{tpu_custom_call.1} parent=1 // pred_check_branch
      %47 = sbr.rel (0) target = $region13
    $region12: #{tpu_custom_call.1} parent=1 // pred_region
      %49 = vsyncadd [#allocation9], 0
      %s50 = sshll.u32 %s2, 4
      %s51 = int_to_ptr.hbm [resolvable:$true] %s50
      %s52 = sshll.u32 [#allocation10], 4
      %s53 = int_to_ptr.vmem [resolvable:$true] %s52
      %58 = dma.hbm_to_vmem [thread:$0]  %s51, 4096, %s53, [#allocation9], 256, 256, 16
    $region13: #{tpu_custom_call.1} parent=1 // pred_fallthru
      _
    // Predicated region
    $region14: #{tpu_custom_call.1} parent=1 // pred_check
      _
    $region15: #{tpu_custom_call.1} parent=1 // pred_check_branch
      %60 = sbr.rel (0) target = $region17
    $region16: #{tpu_custom_call.1} parent=1 // pred_region
      %62 = vsyncadd [#allocation12], 0
      %s64 = sshll.u32 %s3, 4
      %s65 = int_to_ptr.hbm [resolvable:$true] %s64
      %s66 = sshll.u32 [#allocation11], 4
      %s67 = int_to_ptr.vmem [resolvable:$true] %s66
      %69 = dma.hbm_to_vmem [thread:$0]  %s65, 64, %s67, [#allocation12]
    $region17: #{tpu_custom_call.1} parent=1 // pred_fallthru
      _
    // Predicated region
    $region18: #{tpu_custom_call.1} parent=1 // pred_check
      _
    $region19: #{tpu_custom_call.1} parent=1 // pred_check_branch
      %71 = sbr.rel (0) target = $region21
    $region20: #{tpu_custom_call.1} parent=1 // pred_region
      %73 = vsyncadd [#allocation12], 0
      %s74 = sshll.u32 %s4, 4
      %s75 = int_to_ptr.hbm [resolvable:$true] %s74
      %s76 = sshll.u32 [#allocation13], 4
      %s77 = int_to_ptr.vmem [resolvable:$true] %s76
      %82 = dma.hbm_to_vmem [thread:$0]  %s75, 256, %s77, [#allocation12], 128, 128, 8
    $region21: #{tpu_custom_call.1} parent=1 // pred_fallthru
      _
    // Predicated region
    $region22: #{tpu_custom_call.1} parent=1 // pred_check
      _
    $region23: #{tpu_custom_call.1} parent=1 // pred_check_branch
      %84 = sbr.rel (0) target = $region25
    $region24: #{tpu_custom_call.1} parent=1 // pred_region
      %86 = vsyncadd [#allocation15], 0
      %s87 = sshll.u32 %s5, 4
      %s88 = int_to_ptr.hbm [resolvable:$true] %s87
      %s89 = sshll.u32 [#allocation14], 4
      %s90 = int_to_ptr.vmem [resolvable:$true] %s89
      %95 = dma.hbm_to_vmem [thread:$0]  %s88, 256, %s90, [#allocation15], 128, 128, 8
    $region25: #{tpu_custom_call.1} parent=1 // pred_fallthru
      _
    // Predicated region
    $region26: #{tpu_custom_call.1} parent=1 // pred_check
      _
    $region27: #{tpu_custom_call.1} parent=1 // pred_check_branch
      %97 = sbr.rel (0) target = $region29
    $region28: #{tpu_custom_call.1} parent=1 // pred_region
      %99 = dma.done [#allocation6], 1024
    $region29: #{tpu_custom_call.1} parent=1 // pred_fallthru
      _
    // Predicated region
    $region30: #{tpu_custom_call.1} parent=1 // pred_check
      _
    $region31: #{tpu_custom_call.1} parent=1 // pred_check_branch
      %101 = sbr.rel (0) target = $region33
    $region32: #{tpu_custom_call.1} parent=1 // pred_region
      %103 = dma.done [#allocation9], 4096
    $region33: #{tpu_custom_call.1} parent=1 // pred_fallthru
      _
    // Predicated region
    $region34: #{tpu_custom_call.1} parent=1 // pred_check
      _
    $region35: #{tpu_custom_call.1} parent=1 // pred_check_branch
      %105 = sbr.rel (0) target = $region37
    $region36: #{tpu_custom_call.1} parent=1 // pred_region
      %107 = dma.done [#allocation9], 4096
    $region37: #{tpu_custom_call.1} parent=1 // pred_fallthru
      _
    // Predicated region
    $region38: #{tpu_custom_call.1} parent=1 // pred_check
      _
    $region39: #{tpu_custom_call.1} parent=1 // pred_check_branch
      %109 = sbr.rel (0) target = $region41
    $region40: #{tpu_custom_call.1} parent=1 // pred_region
      %111 = dma.done [#allocation12], 64
    $region41: #{tpu_custom_call.1} parent=1 // pred_fallthru
      _
    // Predicated region
    $region42: #{tpu_custom_call.1} parent=1 // pred_check
      _
    $region43: #{tpu_custom_call.1} parent=1 // pred_check_branch
      %113 = sbr.rel (0) target = $region45
    $region44: #{tpu_custom_call.1} parent=1 // pred_region
      %115 = dma.done [#allocation12], 256
    $region45: #{tpu_custom_call.1} parent=1 // pred_fallthru
      _
    // Predicated region
    $region46: #{tpu_custom_call.1} parent=1 // pred_check
      _
    $region47: #{tpu_custom_call.1} parent=1 // pred_check_branch
      %117 = sbr.rel (0) target = $region49
    $region48: #{tpu_custom_call.1} parent=1 // pred_region
      %119 = dma.done [#allocation15], 256
    $region49: #{tpu_custom_call.1} parent=1 // pred_fallthru
      _
    %p120 = scmp.eq.s32.totalorder 0, 0
    // Predicated region
    $region50: #{tpu_custom_call.1} parent=1 // pred_check
      %p121 = pneg %p120
    $region51: #{tpu_custom_call.1} parent=1 // pred_check_branch
      %123 = sbr.rel (%p121) target = $region53
    $region52: #{tpu_custom_call.1} parent=1 // pred_region
      %v124 = vld [vmem:[#allocation13] sm:$0xff]
      %v125 = vld [vmem:[#allocation13 + $0x8] sm:$0xff]
      %126 = vst [vmem:[#allocation3] sm:$0xff] %v124
      %127 = vst [vmem:[#allocation3 + $0x8] sm:$0xff] %v125
      %v128 = vld [vmem:[#allocation14] sm:$0xff]
      %v129 = vld [vmem:[#allocation14 + $0x8] sm:$0xff]
      %130 = vst [vmem:[#allocation4] sm:$0xff] %v128
      %131 = vst [vmem:[#allocation4 + $0x8] sm:$0xff] %v129
    $region53: #{tpu_custom_call.1} parent=1 // pred_fallthru
      _
    %v132 = vld [vmem:[#allocation5] sm:$0xf]
    %v133 = vld [vmem:[#allocation5 + $0x4] sm:$0xf]
    %v134 = vld [vmem:[#allocation5 + $0x8] sm:$0xf]
    %v135 = vld [vmem:[#allocation5 + $0xc] sm:$0xf]
    %v136 = vld [vmem:[#allocation5 + $0x10] sm:$0xf]
    %v137 = vld [vmem:[#allocation5 + $0x14] sm:$0xf]
    %v138 = vld [vmem:[#allocation5 + $0x18] sm:$0xf]
    %v139 = vld [vmem:[#allocation5 + $0x1c] sm:$0xf]
    %v140 = vld [vmem:[#allocation5 + $0x20] sm:$0xf]
    %v141 = vld [vmem:[#allocation5 + $0x24] sm:$0xf]
    %v142 = vld [vmem:[#allocation5 + $0x28] sm:$0xf]
    %v143 = vld [vmem:[#allocation5 + $0x2c] sm:$0xf]
    %v144 = vld [vmem:[#allocation5 + $0x30] sm:$0xf]
    %v145 = vld [vmem:[#allocation5 + $0x34] sm:$0xf]
    %v146 = vld [vmem:[#allocation5 + $0x38] sm:$0xf]
    %v147 = vld [vmem:[#allocation5 + $0x3c] sm:$0xf]
    %v148 = vld [vmem:[#allocation8] sm:$0xff]
    %v149 = vld [vmem:[#allocation8 + $0x8] sm:$0xff]
    %v150 = vld [vmem:[#allocation8 + $0x10] sm:$0xff]
    %v151 = vld [vmem:[#allocation8 + $0x18] sm:$0xff]
    %v152 = vld [vmem:[#allocation8 + $0x20] sm:$0xff]
    %v153 = vld [vmem:[#allocation8 + $0x28] sm:$0xff]
    %v154 = vld [vmem:[#allocation8 + $0x30] sm:$0xff]
    %v155 = vld [vmem:[#allocation8 + $0x38] sm:$0xff]
    %v156 = vld [vmem:[#allocation8 + $0x40] sm:$0xff]
    %v157 = vld [vmem:[#allocation8 + $0x48] sm:$0xff]
    %v158 = vld [vmem:[#allocation8 + $0x50] sm:$0xff]
    %v159 = vld [vmem:[#allocation8 + $0x58] sm:$0xff]
    %v160 = vld [vmem:[#allocation8 + $0x60] sm:$0xff]
    %v161 = vld [vmem:[#allocation8 + $0x68] sm:$0xff]
    %v162 = vld [vmem:[#allocation8 + $0x70] sm:$0xff]
    %v163 = vld [vmem:[#allocation8 + $0x78] sm:$0xff]
    %v164 = vld [vmem:[#allocation8 + $0x80] sm:$0xff]
    %v165 = vld [vmem:[#allocation8 + $0x88] sm:$0xff]
    %v166 = vld [vmem:[#allocation8 + $0x90] sm:$0xff]
    %v167 = vld [vmem:[#allocation8 + $0x98] sm:$0xff]
    %v168 = vld [vmem:[#allocation8 + $0xa0] sm:$0xff]
    %v169 = vld [vmem:[#allocation8 + $0xa8] sm:$0xff]
    %v170 = vld [vmem:[#allocation8 + $0xb0] sm:$0xff]
    %v171 = vld [vmem:[#allocation8 + $0xb8] sm:$0xff]
    %v172 = vld [vmem:[#allocation8 + $0xc0] sm:$0xff]
    %v173 = vld [vmem:[#allocation8 + $0xc8] sm:$0xff]
    %v174 = vld [vmem:[#allocation8 + $0xd0] sm:$0xff]
    %v175 = vld [vmem:[#allocation8 + $0xd8] sm:$0xff]
    %v176 = vld [vmem:[#allocation8 + $0xe0] sm:$0xff]
    %v177 = vld [vmem:[#allocation8 + $0xe8] sm:$0xff]
    %v178 = vld [vmem:[#allocation8 + $0xf0] sm:$0xff]
    %v179 = vld [vmem:[#allocation8 + $0xf8] sm:$0xff]
    %v180 = vld [vmem:[#allocation11] sm:$0xf]
    %v182 = vperm.slane %v180, 0
    %v183 = vperm.slane %v180, 1
    %v184 = vperm.slane %v180, 2
    %v185 = vperm.slane %v180, 3
    %v206 = vunpack.c.l.b16 %v132
    %v207 = vunpack.c.l.b16 %v133
    %v208 = vunpack.c.l.b16 %v134
    %v209 = vunpack.c.l.b16 %v135
    %v210 = vunpack.c.l.b16 %v136
    %v211 = vunpack.c.l.b16 %v137
    %v212 = vunpack.c.l.b16 %v138
    %v213 = vunpack.c.l.b16 %v139
    %v214 = vunpack.c.l.b16 %v140
    %v215 = vunpack.c.l.b16 %v141
    %v216 = vunpack.c.l.b16 %v142
    %v217 = vunpack.c.l.b16 %v143
    %v218 = vunpack.c.l.b16 %v144
    %v219 = vunpack.c.l.b16 %v145
    %v220 = vunpack.c.l.b16 %v146
    %v221 = vunpack.c.l.b16 %v147
    %v222 = vpack.c.b16 %v207, %v206
    %v223 = vpack.c.b16 %v209, %v208
    %v224 = vpack.c.b16 %v211, %v210
    %v225 = vpack.c.b16 %v213, %v212
    %v226 = vpack.c.b16 %v215, %v214
    %v227 = vpack.c.b16 %v217, %v216
    %v228 = vpack.c.b16 %v219, %v218
    %v229 = vpack.c.b16 %v221, %v220
    %v270 = vunpack.c.l.b16 %v148
    %v271 = vunpack.c.h.b16 %v148
    %v272 = vunpack.c.l.b16 %v149
    %v273 = vunpack.c.h.b16 %v149
    %v274 = vunpack.c.l.b16 %v150
    %v275 = vunpack.c.h.b16 %v150
    %v276 = vunpack.c.l.b16 %v151
    %v277 = vunpack.c.h.b16 %v151
    %v278 = vunpack.c.l.b16 %v152
    %v279 = vunpack.c.h.b16 %v152
    %v280 = vunpack.c.l.b16 %v153
    %v281 = vunpack.c.h.b16 %v153
    %v282 = vunpack.c.l.b16 %v154
    %v283 = vunpack.c.h.b16 %v154
    %v284 = vunpack.c.l.b16 %v155
    %v285 = vunpack.c.h.b16 %v155
    %v286 = vunpack.c.l.b16 %v156
    %v287 = vunpack.c.h.b16 %v156
    %v288 = vunpack.c.l.b16 %v157
    %v289 = vunpack.c.h.b16 %v157
    %v290 = vunpack.c.l.b16 %v158
    %v291 = vunpack.c.h.b16 %v158
    %v292 = vunpack.c.l.b16 %v159
    %v293 = vunpack.c.h.b16 %v159
    %v294 = vunpack.c.l.b16 %v160
    %v295 = vunpack.c.h.b16 %v160
    %v296 = vunpack.c.l.b16 %v161
    %v297 = vunpack.c.h.b16 %v161
    %v298 = vunpack.c.l.b16 %v162
    %v299 = vunpack.c.h.b16 %v162
    %v300 = vunpack.c.l.b16 %v163
    %v301 = vunpack.c.h.b16 %v163
    %v302 = vunpack.c.l.b16 %v164
    %v303 = vunpack.c.h.b16 %v164
    %v304 = vunpack.c.l.b16 %v165
    %v305 = vunpack.c.h.b16 %v165
    %v306 = vunpack.c.l.b16 %v166
    %v307 = vunpack.c.h.b16 %v166
    %v308 = vunpack.c.l.b16 %v167
    %v309 = vunpack.c.h.b16 %v167
    %v310 = vunpack.c.l.b16 %v168
    %v311 = vunpack.c.h.b16 %v168
    %v312 = vunpack.c.l.b16 %v169
    %v313 = vunpack.c.h.b16 %v169
    %v314 = vunpack.c.l.b16 %v170
    %v315 = vunpack.c.h.b16 %v170
    %v316 = vunpack.c.l.b16 %v171
    %v317 = vunpack.c.h.b16 %v171
    %v318 = vunpack.c.l.b16 %v172
    %v319 = vunpack.c.h.b16 %v172
    %v320 = vunpack.c.l.b16 %v173
    %v321 = vunpack.c.h.b16 %v173
    %v322 = vunpack.c.l.b16 %v174
    %v323 = vunpack.c.h.b16 %v174
    %v324 = vunpack.c.l.b16 %v175
    %v325 = vunpack.c.h.b16 %v175
    %v326 = vunpack.c.l.b16 %v176
    %v327 = vunpack.c.h.b16 %v176
    %v328 = vunpack.c.l.b16 %v177
    %v329 = vunpack.c.h.b16 %v177
    %v330 = vunpack.c.l.b16 %v178
    %v331 = vunpack.c.h.b16 %v178
    %v332 = vunpack.c.l.b16 %v179
    %v333 = vunpack.c.h.b16 %v179
    %v334 = vpack.c.b16 %v274, %v270
    %v335 = vpack.c.b16 %v275, %v271
    %v336 = vpack.c.b16 %v276, %v272
    %v337 = vpack.c.b16 %v277, %v273
    %v338 = vpack.c.b16 %v282, %v278
    %v339 = vpack.c.b16 %v283, %v279
    %v340 = vpack.c.b16 %v284, %v280
    %v341 = vpack.c.b16 %v285, %v281
    %v342 = vpack.c.b16 %v290, %v286
    %v343 = vpack.c.b16 %v291, %v287
    %v344 = vpack.c.b16 %v292, %v288
    %v345 = vpack.c.b16 %v293, %v289
    %v346 = vpack.c.b16 %v298, %v294
    %v347 = vpack.c.b16 %v299, %v295
    %v348 = vpack.c.b16 %v300, %v296
    %v349 = vpack.c.b16 %v301, %v297
    %v350 = vpack.c.b16 %v306, %v302
    %v351 = vpack.c.b16 %v307, %v303
    %v352 = vpack.c.b16 %v308, %v304
    %v353 = vpack.c.b16 %v309, %v305
    %v354 = vpack.c.b16 %v314, %v310
    %v355 = vpack.c.b16 %v315, %v311
    %v356 = vpack.c.b16 %v316, %v312
    %v357 = vpack.c.b16 %v317, %v313
    %v358 = vpack.c.b16 %v322, %v318
    %v359 = vpack.c.b16 %v323, %v319
    %v360 = vpack.c.b16 %v324, %v320
    %v361 = vpack.c.b16 %v325, %v321
    %v362 = vpack.c.b16 %v330, %v326
    %v363 = vpack.c.b16 %v331, %v327
    %v364 = vpack.c.b16 %v332, %v328
    %v365 = vpack.c.b16 %v333, %v329
    %398 = vmatpush.bf16.msra.mxu0 %v362
    %399 = vmatpush.bf16.msra.mxu0 %v358
    %400 = vmatpush.bf16.msra.mxu0 %v354
    %401 = vmatpush.bf16.msra.mxu0 %v350
    %402 = vmatpush.bf16.msra.mxu0 %v346
    %403 = vmatpush.bf16.msra.mxu0 %v342
    %404 = vmatpush.bf16.msra.mxu0 %v338
    %405 = vmatpush.bf16.msra.mxu0 %v334
    %406 = vmatmul.bf16.gmra.mxu0 %v222
    %v407 = vpop.f32.mrf.mxu0
    %v408 = vadd.f32 %v182, %v407
    %v409 = vpop.f32.mrf.mxu0
    %v410 = vadd.f32 %v182, %v409
    %411 = vmatmul.bf16.gmra.mxu0 %v223
    %v412 = vpop.f32.mrf.mxu0
    %v413 = vadd.f32 %v182, %v412
    %v414 = vpop.f32.mrf.mxu0
    %v415 = vadd.f32 %v182, %v414
    %416 = vmatmul.bf16.gmra.mxu0 %v224
    %v417 = vpop.f32.mrf.mxu0
    %v418 = vadd.f32 %v182, %v417
    %v419 = vpop.f32.mrf.mxu0
    %v420 = vadd.f32 %v182, %v419
    %421 = vmatmul.bf16.gmra.mxu0 %v225
    %v422 = vpop.f32.mrf.mxu0
    %v423 = vadd.f32 %v182, %v422
    %v424 = vpop.f32.mrf.mxu0
    %v425 = vadd.f32 %v182, %v424
    %426 = vmatmul.bf16.gmra.mxu0 %v226
    %v427 = vpop.f32.mrf.mxu0
    %v428 = vadd.f32 %v182, %v427
    %v429 = vpop.f32.mrf.mxu0
    %v430 = vadd.f32 %v182, %v429
    %431 = vmatmul.bf16.gmra.mxu0 %v227
    %v432 = vpop.f32.mrf.mxu0
    %v433 = vadd.f32 %v182, %v432
    %v434 = vpop.f32.mrf.mxu0
    %v435 = vadd.f32 %v182, %v434
    %436 = vmatmul.bf16.gmra.mxu0 %v228
    %v437 = vpop.f32.mrf.mxu0
    %v438 = vadd.f32 %v182, %v437
    %v439 = vpop.f32.mrf.mxu0
    %v440 = vadd.f32 %v182, %v439
    %441 = vmatmul.bf16.gmra.mxu0 %v229
    %v442 = vpop.f32.mrf.mxu0
    %v443 = vadd.f32 %v182, %v442
    %v444 = vpop.f32.mrf.mxu0
    %v445 = vadd.f32 %v182, %v444
    %446 = vdwg.mxu0
    %447 = vmatpush.bf16.msra.mxu0 %v363
    %448 = vmatpush.bf16.msra.mxu0 %v359
    %449 = vmatpush.bf16.msra.mxu0 %v355
    %450 = vmatpush.bf16.msra.mxu0 %v351
    %451 = vmatpush.bf16.msra.mxu0 %v347
    %452 = vmatpush.bf16.msra.mxu0 %v343
    %453 = vmatpush.bf16.msra.mxu0 %v339
    %454 = vmatpush.bf16.msra.mxu0 %v335
    %455 = vmatmul.bf16.gmra.mxu0 %v222
    %v456 = vpop.f32.mrf.mxu0
    %v457 = vadd.f32 %v183, %v456
    %v458 = vpop.f32.mrf.mxu0
    %v459 = vadd.f32 %v183, %v458
    %460 = vmatmul.bf16.gmra.mxu0 %v223
    %v461 = vpop.f32.mrf.mxu0
    %v462 = vadd.f32 %v183, %v461
    %v463 = vpop.f32.mrf.mxu0
    %v464 = vadd.f32 %v183, %v463
    %465 = vmatmul.bf16.gmra.mxu0 %v224
    %v466 = vpop.f32.mrf.mxu0
    %v467 = vadd.f32 %v183, %v466
    %v468 = vpop.f32.mrf.mxu0
    %v469 = vadd.f32 %v183, %v468
    %470 = vmatmul.bf16.gmra.mxu0 %v225
    %v471 = vpop.f32.mrf.mxu0
    %v472 = vadd.f32 %v183, %v471
    %v473 = vpop.f32.mrf.mxu0
    %v474 = vadd.f32 %v183, %v473
    %475 = vmatmul.bf16.gmra.mxu0 %v226
    %v476 = vpop.f32.mrf.mxu0
    %v477 = vadd.f32 %v183, %v476
    %v478 = vpop.f32.mrf.mxu0
    %v479 = vadd.f32 %v183, %v478
    %480 = vmatmul.bf16.gmra.mxu0 %v227
    %v481 = vpop.f32.mrf.mxu0
    %v482 = vadd.f32 %v183, %v481
    %v483 = vpop.f32.mrf.mxu0
    %v484 = vadd.f32 %v183, %v483
    %485 = vmatmul.bf16.gmra.mxu0 %v228
    %v486 = vpop.f32.mrf.mxu0
    %v487 = vadd.f32 %v183, %v486
    %v488 = vpop.f32.mrf.mxu0
    %v489 = vadd.f32 %v183, %v488
    %490 = vmatmul.bf16.gmra.mxu0 %v229
    %v491 = vpop.f32.mrf.mxu0
    %v492 = vadd.f32 %v183, %v491
    %v493 = vpop.f32.mrf.mxu0
    %v494 = vadd.f32 %v183, %v493
    %495 = vdwg.mxu0
    %496 = vmatpush.bf16.msra.mxu0 %v364
    %497 = vmatpush.bf16.msra.mxu0 %v360
    %498 = vmatpush.bf16.msra.mxu0 %v356
    %499 = vmatpush.bf16.msra.mxu0 %v352
    %500 = vmatpush.bf16.msra.mxu0 %v348
    %501 = vmatpush.bf16.msra.mxu0 %v344
    %502 = vmatpush.bf16.msra.mxu0 %v340
    %503 = vmatpush.bf16.msra.mxu0 %v336
    %504 = vmatmul.bf16.gmra.mxu0 %v222
    %v505 = vpop.f32.mrf.mxu0
    %v506 = vadd.f32 %v184, %v505
    %v507 = vpop.f32.mrf.mxu0
    %v508 = vadd.f32 %v184, %v507
    %509 = vmatmul.bf16.gmra.mxu0 %v223
    %v510 = vpop.f32.mrf.mxu0
    %v511 = vadd.f32 %v184, %v510
    %v512 = vpop.f32.mrf.mxu0
    %v513 = vadd.f32 %v184, %v512
    %514 = vmatmul.bf16.gmra.mxu0 %v224
    %v515 = vpop.f32.mrf.mxu0
    %v516 = vadd.f32 %v184, %v515
    %v517 = vpop.f32.mrf.mxu0
    %v518 = vadd.f32 %v184, %v517
    %519 = vmatmul.bf16.gmra.mxu0 %v225
    %v520 = vpop.f32.mrf.mxu0
    %v521 = vadd.f32 %v184, %v520
    %v522 = vpop.f32.mrf.mxu0
    %v523 = vadd.f32 %v184, %v522
    %524 = vmatmul.bf16.gmra.mxu0 %v226
    %v525 = vpop.f32.mrf.mxu0
    %v526 = vadd.f32 %v184, %v525
    %v527 = vpop.f32.mrf.mxu0
    %v528 = vadd.f32 %v184, %v527
    %529 = vmatmul.bf16.gmra.mxu0 %v227
    %v530 = vpop.f32.mrf.mxu0
    %v531 = vadd.f32 %v184, %v530
    %v532 = vpop.f32.mrf.mxu0
    %v533 = vadd.f32 %v184, %v532
    %534 = vmatmul.bf16.gmra.mxu0 %v228
    %v535 = vpop.f32.mrf.mxu0
    %v536 = vadd.f32 %v184, %v535
    %v537 = vpop.f32.mrf.mxu0
    %v538 = vadd.f32 %v184, %v537
    %539 = vmatmul.bf16.gmra.mxu0 %v229
    %v540 = vpop.f32.mrf.mxu0
    %v541 = vadd.f32 %v184, %v540
    %v542 = vpop.f32.mrf.mxu0
    %v543 = vadd.f32 %v184, %v542
    %544 = vdwg.mxu0
    %545 = vmatpush.bf16.msra.mxu0 %v365
    %546 = vmatpush.bf16.msra.mxu0 %v361
    %547 = vmatpush.bf16.msra.mxu0 %v357
    %548 = vmatpush.bf16.msra.mxu0 %v353
    %549 = vmatpush.bf16.msra.mxu0 %v349
    %550 = vmatpush.bf16.msra.mxu0 %v345
    %551 = vmatpush.bf16.msra.mxu0 %v341
    %552 = vmatpush.bf16.msra.mxu0 %v337
    %553 = vmatmul.bf16.gmra.mxu0 %v222
    %v554 = vpop.f32.mrf.mxu0
    %v555 = vadd.f32 %v185, %v554
    %v556 = vpop.f32.mrf.mxu0
    %v557 = vadd.f32 %v185, %v556
    %558 = vmatmul.bf16.gmra.mxu0 %v223
    %v559 = vpop.f32.mrf.mxu0
    %v560 = vadd.f32 %v185, %v559
    %v561 = vpop.f32.mrf.mxu0
    %v562 = vadd.f32 %v185, %v561
    %563 = vmatmul.bf16.gmra.mxu0 %v224
    %v564 = vpop.f32.mrf.mxu0
    %v565 = vadd.f32 %v185, %v564
    %v566 = vpop.f32.mrf.mxu0
    %v567 = vadd.f32 %v185, %v566
    %568 = vmatmul.bf16.gmra.mxu0 %v225
    %v569 = vpop.f32.mrf.mxu0
    %v570 = vadd.f32 %v185, %v569
    %v571 = vpop.f32.mrf.mxu0
    %v572 = vadd.f32 %v185, %v571
    %573 = vmatmul.bf16.gmra.mxu0 %v226
    %v574 = vpop.f32.mrf.mxu0
    %v575 = vadd.f32 %v185, %v574
    %v576 = vpop.f32.mrf.mxu0
    %v577 = vadd.f32 %v185, %v576
    %578 = vmatmul.bf16.gmra.mxu0 %v227
    %v579 = vpop.f32.mrf.mxu0
    %v580 = vadd.f32 %v185, %v579
    %v581 = vpop.f32.mrf.mxu0
    %v582 = vadd.f32 %v185, %v581
    %583 = vmatmul.bf16.gmra.mxu0 %v228
    %v584 = vpop.f32.mrf.mxu0
    %v585 = vadd.f32 %v185, %v584
    %v586 = vpop.f32.mrf.mxu0
    %v587 = vadd.f32 %v185, %v586
    %588 = vmatmul.bf16.gmra.mxu0 %v229
    %v589 = vpop.f32.mrf.mxu0
    %v590 = vadd.f32 %v185, %v589
    %v591 = vpop.f32.mrf.mxu0
    %v592 = vadd.f32 %v185, %v591
    %593 = vdwg.mxu0
    %594 = vst [vmem:[#allocation2] sm:$0xff] %v408
    %595 = vst [vmem:[#allocation2 + $0x8] sm:$0xff] %v457
    %596 = vst [vmem:[#allocation2 + $0x10] sm:$0xff] %v506
    %597 = vst [vmem:[#allocation2 + $0x18] sm:$0xff] %v555
    %598 = vst [vmem:[#allocation2 + $0x20] sm:$0xff] %v410
    %599 = vst [vmem:[#allocation2 + $0x28] sm:$0xff] %v459
    %600 = vst [vmem:[#allocation2 + $0x30] sm:$0xff] %v508
    %601 = vst [vmem:[#allocation2 + $0x38] sm:$0xff] %v557
    %602 = vst [vmem:[#allocation2 + $0x40] sm:$0xff] %v413
    %603 = vst [vmem:[#allocation2 + $0x48] sm:$0xff] %v462
    %604 = vst [vmem:[#allocation2 + $0x50] sm:$0xff] %v511
    %605 = vst [vmem:[#allocation2 + $0x58] sm:$0xff] %v560
    %606 = vst [vmem:[#allocation2 + $0x60] sm:$0xff] %v415
    %607 = vst [vmem:[#allocation2 + $0x68] sm:$0xff] %v464
    %608 = vst [vmem:[#allocation2 + $0x70] sm:$0xff] %v513
    %609 = vst [vmem:[#allocation2 + $0x78] sm:$0xff] %v562
    %610 = vst [vmem:[#allocation2 + $0x80] sm:$0xff] %v418
    %611 = vst [vmem:[#allocation2 + $0x88] sm:$0xff] %v467
    %612 = vst [vmem:[#allocation2 + $0x90] sm:$0xff] %v516
    %613 = vst [vmem:[#allocation2 + $0x98] sm:$0xff] %v565
    %614 = vst [vmem:[#allocation2 + $0xa0] sm:$0xff] %v420
    %615 = vst [vmem:[#allocation2 + $0xa8] sm:$0xff] %v469
    %616 = vst [vmem:[#allocation2 + $0xb0] sm:$0xff] %v518
    %617 = vst [vmem:[#allocation2 + $0xb8] sm:$0xff] %v567
    %618 = vst [vmem:[#allocation2 + $0xc0] sm:$0xff] %v423
    %619 = vst [vmem:[#allocation2 + $0xc8] sm:$0xff] %v472
    %620 = vst [vmem:[#allocation2 + $0xd0] sm:$0xff] %v521
    %621 = vst [vmem:[#allocation2 + $0xd8] sm:$0xff] %v570
    %622 = vst [vmem:[#allocation2 + $0xe0] sm:$0xff] %v425
    %623 = vst [vmem:[#allocation2 + $0xe8] sm:$0xff] %v474
    %624 = vst [vmem:[#allocation2 + $0xf0] sm:$0xff] %v523
    %625 = vst [vmem:[#allocation2 + $0xf8] sm:$0xff] %v572
    %626 = vst [vmem:[#allocation2 + $0x100] sm:$0xff] %v428
    %627 = vst [vmem:[#allocation2 + $0x108] sm:$0xff] %v477
    %628 = vst [vmem:[#allocation2 + $0x110] sm:$0xff] %v526
    %629 = vst [vmem:[#allocation2 + $0x118] sm:$0xff] %v575
    %630 = vst [vmem:[#allocation2 + $0x120] sm:$0xff] %v430
    %631 = vst [vmem:[#allocation2 + $0x128] sm:$0xff] %v479
    %632 = vst [vmem:[#allocation2 + $0x130] sm:$0xff] %v528
    %633 = vst [vmem:[#allocation2 + $0x138] sm:$0xff] %v577
    %634 = vst [vmem:[#allocation2 + $0x140] sm:$0xff] %v433
    %635 = vst [vmem:[#allocation2 + $0x148] sm:$0xff] %v482
    %636 = vst [vmem:[#allocation2 + $0x150] sm:$0xff] %v531
    %637 = vst [vmem:[#allocation2 + $0x158] sm:$0xff] %v580
    %638 = vst [vmem:[#allocation2 + $0x160] sm:$0xff] %v435
    %639 = vst [vmem:[#allocation2 + $0x168] sm:$0xff] %v484
    %640 = vst [vmem:[#allocation2 + $0x170] sm:$0xff] %v533
    %641 = vst [vmem:[#allocation2 + $0x178] sm:$0xff] %v582
    %642 = vst [vmem:[#allocation2 + $0x180] sm:$0xff] %v438
    %643 = vst [vmem:[#allocation2 + $0x188] sm:$0xff] %v487
    %644 = vst [vmem:[#allocation2 + $0x190] sm:$0xff] %v536
    %645 = vst [vmem:[#allocation2 + $0x198] sm:$0xff] %v585
    %646 = vst [vmem:[#allocation2 + $0x1a0] sm:$0xff] %v440
    %647 = vst [vmem:[#allocation2 + $0x1a8] sm:$0xff] %v489
    %648 = vst [vmem:[#allocation2 + $0x1b0] sm:$0xff] %v538
    %649 = vst [vmem:[#allocation2 + $0x1b8] sm:$0xff] %v587
    %650 = vst [vmem:[#allocation2 + $0x1c0] sm:$0xff] %v443
    %651 = vst [vmem:[#allocation2 + $0x1c8] sm:$0xff] %v492
    %652 = vst [vmem:[#allocation2 + $0x1d0] sm:$0xff] %v541
    %653 = vst [vmem:[#allocation2 + $0x1d8] sm:$0xff] %v590
    %654 = vst [vmem:[#allocation2 + $0x1e0] sm:$0xff] %v445
    %655 = vst [vmem:[#allocation2 + $0x1e8] sm:$0xff] %v494
    %656 = vst [vmem:[#allocation2 + $0x1f0] sm:$0xff] %v543
    %657 = vst [vmem:[#allocation2 + $0x1f8] sm:$0xff] %v592
    %v658 = vld [vmem:[#allocation10] sm:$0xff]
    %v659 = vld [vmem:[#allocation10 + $0x8] sm:$0xff]
    %v660 = vld [vmem:[#allocation10 + $0x10] sm:$0xff]
    %v661 = vld [vmem:[#allocation10 + $0x18] sm:$0xff]
    %v662 = vld [vmem:[#allocation10 + $0x20] sm:$0xff]
    %v663 = vld [vmem:[#allocation10 + $0x28] sm:$0xff]
    %v664 = vld [vmem:[#allocation10 + $0x30] sm:$0xff]
    %v665 = vld [vmem:[#allocation10 + $0x38] sm:$0xff]
    %v666 = vld [vmem:[#allocation10 + $0x40] sm:$0xff]
    %v667 = vld [vmem:[#allocation10 + $0x48] sm:$0xff]
    %v668 = vld [vmem:[#allocation10 + $0x50] sm:$0xff]
    %v669 = vld [vmem:[#allocation10 + $0x58] sm:$0xff]
    %v670 = vld [vmem:[#allocation10 + $0x60] sm:$0xff]
    %v671 = vld [vmem:[#allocation10 + $0x68] sm:$0xff]
    %v672 = vld [vmem:[#allocation10 + $0x70] sm:$0xff]
    %v673 = vld [vmem:[#allocation10 + $0x78] sm:$0xff]
    %v674 = vld [vmem:[#allocation10 + $0x80] sm:$0xff]
    %v675 = vld [vmem:[#allocation10 + $0x88] sm:$0xff]
    %v676 = vld [vmem:[#allocation10 + $0x90] sm:$0xff]
    %v677 = vld [vmem:[#allocation10 + $0x98] sm:$0xff]
    %v678 = vld [vmem:[#allocation10 + $0xa0] sm:$0xff]
    %v679 = vld [vmem:[#allocation10 + $0xa8] sm:$0xff]
    %v680 = vld [vmem:[#allocation10 + $0xb0] sm:$0xff]
    %v681 = vld [vmem:[#allocation10 + $0xb8] sm:$0xff]
    %v682 = vld [vmem:[#allocation10 + $0xc0] sm:$0xff]
    %v683 = vld [vmem:[#allocation10 + $0xc8] sm:$0xff]
    %v684 = vld [vmem:[#allocation10 + $0xd0] sm:$0xff]
    %v685 = vld [vmem:[#allocation10 + $0xd8] sm:$0xff]
    %v686 = vld [vmem:[#allocation10 + $0xe0] sm:$0xff]
    %v687 = vld [vmem:[#allocation10 + $0xe8] sm:$0xff]
    %v688 = vld [vmem:[#allocation10 + $0xf0] sm:$0xff]
    %v689 = vld [vmem:[#allocation10 + $0xf8] sm:$0xff]
    %v690 = vld [vmem:[#allocation3] sm:$0xff]
    %v691 = vld [vmem:[#allocation3 + $0x8] sm:$0xff]
    %v692 = vld [vmem:[#allocation4] sm:$0xff]
    %v693 = vld [vmem:[#allocation4 + $0x8] sm:$0xff]
    %s694 = smul.u32 0, 4
    %s695 = smul.addr %s694, 8
    %s696 = scalar_lea.vmem [#allocation2], %s695
    %v697 = vld [vmem:[%s696] sm:$0xff]
    %v698 = vld [vmem:[%s696 + $0x8] sm:$0xff]
    %v699 = vld [vmem:[%s696 + $0x10] sm:$0xff]
    %v700 = vld [vmem:[%s696 + $0x18] sm:$0xff]
    %v701 = vld [vmem:[%s696 + $0x20] sm:$0xff]
    %v702 = vld [vmem:[%s696 + $0x28] sm:$0xff]
    %v703 = vld [vmem:[%s696 + $0x30] sm:$0xff]
    %v704 = vld [vmem:[%s696 + $0x38] sm:$0xff]
    %v705 = vpack.c.bf16 %v691, %v690
    %v738 = vunpack.c.l.b16 %v658
    %v739 = vunpack.c.h.b16 %v658
    %v740 = vunpack.c.l.b16 %v659
    %v741 = vunpack.c.h.b16 %v659
    %v742 = vunpack.c.l.b16 %v660
    %v743 = vunpack.c.h.b16 %v660
    %v744 = vunpack.c.l.b16 %v661
    %v745 = vunpack.c.h.b16 %v661
    %v746 = vunpack.c.l.b16 %v662
    %v747 = vunpack.c.h.b16 %v662
    %v748 = vunpack.c.l.b16 %v663
    %v749 = vunpack.c.h.b16 %v663
    %v750 = vunpack.c.l.b16 %v664
    %v751 = vunpack.c.h.b16 %v664
    %v752 = vunpack.c.l.b16 %v665
    %v753 = vunpack.c.h.b16 %v665
    %v754 = vunpack.c.l.b16 %v666
    %v755 = vunpack.c.h.b16 %v666
    %v756 = vunpack.c.l.b16 %v667
    %v757 = vunpack.c.h.b16 %v667
    %v758 = vunpack.c.l.b16 %v668
    %v759 = vunpack.c.h.b16 %v668
    %v760 = vunpack.c.l.b16 %v669
    %v761 = vunpack.c.h.b16 %v669
    %v762 = vunpack.c.l.b16 %v670
    %v763 = vunpack.c.h.b16 %v670
    %v764 = vunpack.c.l.b16 %v671
    %v765 = vunpack.c.h.b16 %v671
    %v766 = vunpack.c.l.b16 %v672
    %v767 = vunpack.c.h.b16 %v672
    %v768 = vunpack.c.l.b16 %v673
    %v769 = vunpack.c.h.b16 %v673
    %v770 = vunpack.c.l.b16 %v674
    %v771 = vunpack.c.h.b16 %v674
    %v772 = vunpack.c.l.b16 %v675
    %v773 = vunpack.c.h.b16 %v675
    %v774 = vunpack.c.l.b16 %v676
    %v775 = vunpack.c.h.b16 %v676
    %v776 = vunpack.c.l.b16 %v677
    %v777 = vunpack.c.h.b16 %v677
    %v778 = vunpack.c.l.b16 %v678
    %v779 = vunpack.c.h.b16 %v678
    %v780 = vunpack.c.l.b16 %v679
    %v781 = vunpack.c.h.b16 %v679
    %v782 = vunpack.c.l.b16 %v680
    %v783 = vunpack.c.h.b16 %v680
    %v784 = vunpack.c.l.b16 %v681
    %v785 = vunpack.c.h.b16 %v681
    %v786 = vunpack.c.l.b16 %v682
    %v787 = vunpack.c.h.b16 %v682
    %v788 = vunpack.c.l.b16 %v683
    %v789 = vunpack.c.h.b16 %v683
    %v790 = vunpack.c.l.b16 %v684
    %v791 = vunpack.c.h.b16 %v684
    %v792 = vunpack.c.l.b16 %v685
    %v793 = vunpack.c.h.b16 %v685
    %v794 = vunpack.c.l.b16 %v686
    %v795 = vunpack.c.h.b16 %v686
    %v796 = vunpack.c.l.b16 %v687
    %v797 = vunpack.c.h.b16 %v687
    %v798 = vunpack.c.l.b16 %v688
    %v799 = vunpack.c.h.b16 %v688
    %v800 = vunpack.c.l.b16 %v689
    %v801 = vunpack.c.h.b16 %v689
    %v802 = vpack.c.b16 %v742, %v738
    %v803 = vpack.c.b16 %v743, %v739
    %v804 = vpack.c.b16 %v744, %v740
    %v805 = vpack.c.b16 %v745, %v741
    %v806 = vpack.c.b16 %v750, %v746
    %v807 = vpack.c.b16 %v751, %v747
    %v808 = vpack.c.b16 %v752, %v748
    %v809 = vpack.c.b16 %v753, %v749
    %v810 = vpack.c.b16 %v758, %v754
    %v811 = vpack.c.b16 %v759, %v755
    %v812 = vpack.c.b16 %v760, %v756
    %v813 = vpack.c.b16 %v761, %v757
    %v814 = vpack.c.b16 %v766, %v762
    %v815 = vpack.c.b16 %v767, %v763
    %v816 = vpack.c.b16 %v768, %v764
    %v817 = vpack.c.b16 %v769, %v765
    %v818 = vpack.c.b16 %v774, %v770
    %v819 = vpack.c.b16 %v775, %v771
    %v820 = vpack.c.b16 %v776, %v772
    %v821 = vpack.c.b16 %v777, %v773
    %v822 = vpack.c.b16 %v782, %v778
    %v823 = vpack.c.b16 %v783, %v779
    %v824 = vpack.c.b16 %v784, %v780
    %v825 = vpack.c.b16 %v785, %v781
    %v826 = vpack.c.b16 %v790, %v786
    %v827 = vpack.c.b16 %v791, %v787
    %v828 = vpack.c.b16 %v792, %v788
    %v829 = vpack.c.b16 %v793, %v789
    %v830 = vpack.c.b16 %v798, %v794
    %v831 = vpack.c.b16 %v799, %v795
    %v832 = vpack.c.b16 %v800, %v796
    %v833 = vpack.c.b16 %v801, %v797
    %866 = vmatpush.bf16.msra.mxu0 %v830
    %867 = vmatpush.bf16.msra.mxu0 %v826
    %868 = vmatpush.bf16.msra.mxu0 %v822
    %869 = vmatpush.bf16.msra.mxu0 %v818
    %870 = vmatpush.bf16.msra.mxu0 %v814
    %871 = vmatpush.bf16.msra.mxu0 %v810
    %872 = vmatpush.bf16.msra.mxu0 %v806
    %873 = vmatpush.bf16.msra.mxu0 %v802
    %874 = vmatmul.bf16.gmra.mxu0 %v705
    %v875 = vpop.f32.mrf.mxu0
    %v876 = vadd.f32 0.0, %v875
    %v877 = vpop.f32.mrf.mxu0
    %v878 = vadd.f32 0.0, %v877
    %879 = vdwg.mxu0
    %880 = vmatpush.bf16.msra.mxu0 %v831
    %881 = vmatpush.bf16.msra.mxu0 %v827
    %882 = vmatpush.bf16.msra.mxu0 %v823
    %883 = vmatpush.bf16.msra.mxu0 %v819
    %884 = vmatpush.bf16.msra.mxu0 %v815
    %885 = vmatpush.bf16.msra.mxu0 %v811
    %886 = vmatpush.bf16.msra.mxu0 %v807
    %887 = vmatpush.bf16.msra.mxu0 %v803
    %888 = vmatmul.bf16.gmra.mxu0 %v705
    %v889 = vpop.f32.mrf.mxu0
    %v890 = vadd.f32 0.0, %v889
    %v891 = vpop.f32.mrf.mxu0
    %v892 = vadd.f32 0.0, %v891
    %893 = vdwg.mxu0
    %894 = vmatpush.bf16.msra.mxu0 %v832
    %895 = vmatpush.bf16.msra.mxu0 %v828
    %896 = vmatpush.bf16.msra.mxu0 %v824
    %897 = vmatpush.bf16.msra.mxu0 %v820
    %898 = vmatpush.bf16.msra.mxu0 %v816
    %899 = vmatpush.bf16.msra.mxu0 %v812
    %900 = vmatpush.bf16.msra.mxu0 %v808
    %901 = vmatpush.bf16.msra.mxu0 %v804
    %902 = vmatmul.bf16.gmra.mxu0 %v705
    %v903 = vpop.f32.mrf.mxu0
    %v904 = vadd.f32 0.0, %v903
    %v905 = vpop.f32.mrf.mxu0
    %v906 = vadd.f32 0.0, %v905
    %907 = vdwg.mxu0
    %908 = vmatpush.bf16.msra.mxu0 %v833
    %909 = vmatpush.bf16.msra.mxu0 %v829
    %910 = vmatpush.bf16.msra.mxu0 %v825
    %911 = vmatpush.bf16.msra.mxu0 %v821
    %912 = vmatpush.bf16.msra.mxu0 %v817
    %913 = vmatpush.bf16.msra.mxu0 %v813
    %914 = vmatpush.bf16.msra.mxu0 %v809
    %915 = vmatpush.bf16.msra.mxu0 %v805
    %916 = vmatmul.bf16.gmra.mxu0 %v705
    %v917 = vpop.f32.mrf.mxu0
    %v918 = vadd.f32 0.0, %v917
    %v919 = vpop.f32.mrf.mxu0
    %v920 = vadd.f32 0.0, %v919
    %921 = vdwg.mxu0
    %v922 = vadd.f32 %v697, %v876
    %v923 = vadd.f32 %v698, %v890
    %v924 = vadd.f32 %v699, %v904
    %v925 = vadd.f32 %v700, %v918
    %v926 = vadd.f32 %v701, %v878
    %v927 = vadd.f32 %v702, %v892
    %v928 = vadd.f32 %v703, %v906
    %v929 = vadd.f32 %v704, %v920
    %v930 = vmul.f32 %v922, 0.5
    %v931 = vmul.f32 %v926, 0.5
    %v932 = vtanh.pop %v930
    %v933 = vtanh.pop %v931
    %v934 = vmul.f32 %v932, 0.5
    %v935 = vmul.f32 %v933, 0.5
    %v936 = vadd.f32 %v934, 0.5
    %v937 = vadd.f32 %v935, 0.5
    %v938 = vmul.f32 %v923, 0.5
    %v939 = vmul.f32 %v927, 0.5
    %v940 = vtanh.pop %v938
    %v941 = vtanh.pop %v939
    %v942 = vmul.f32 %v940, 0.5
    %v943 = vmul.f32 %v941, 0.5
    %v944 = vadd.f32 %v942, 0.5
    %v945 = vadd.f32 %v943, 0.5
    %v946 = vtanh.pop %v924
    %v947 = vtanh.pop %v928
    %v948 = vmul.f32 %v925, 0.5
    %v949 = vmul.f32 %v929, 0.5
    %v950 = vtanh.pop %v948
    %v951 = vtanh.pop %v949
    %v952 = vmul.f32 %v950, 0.5
    %v953 = vmul.f32 %v951, 0.5
    %v954 = vadd.f32 %v952, 0.5
    %v955 = vadd.f32 %v953, 0.5
    %v956 = vmul.f32 %v944, %v692
    %v957 = vmul.f32 %v945, %v693
    %v958 = vmul.f32 %v936, %v946
    %v959 = vmul.f32 %v937, %v947
    %v960 = vadd.f32 %v956, %v958
    %v961 = vadd.f32 %v957, %v959
    %v962 = vtanh.pop %v960
    %v963 = vtanh.pop %v961
    %v964 = vmul.f32 %v954, %v962
    %v965 = vmul.f32 %v955, %v963
    %v966 = vpack.c.bf16 %v964, %v964
    %v967 = vpack.c.bf16 %v965, %v965
    %968 = vst [vmem:[#allocation16] sm:$0xf] %v966
    %969 = vst [vmem:[#allocation16 + $0x4] sm:$0xf] %v967
    %s970 = smul.u32 2, 4
    %s971 = smul.addr %s970, 8
    %s972 = scalar_lea.vmem [#allocation2], %s971
    %v973 = vld [vmem:[%s972] sm:$0xff]
    %v974 = vld [vmem:[%s972 + $0x8] sm:$0xff]
    %v975 = vld [vmem:[%s972 + $0x10] sm:$0xff]
    %v976 = vld [vmem:[%s972 + $0x18] sm:$0xff]
    %v977 = vld [vmem:[%s972 + $0x20] sm:$0xff]
    %v978 = vld [vmem:[%s972 + $0x28] sm:$0xff]
    %v979 = vld [vmem:[%s972 + $0x30] sm:$0xff]
    %v980 = vld [vmem:[%s972 + $0x38] sm:$0xff]
    %v983 = vunpack.c.l.b16 %v966
    %v984 = vunpack.c.l.b16 %v967
    %v985 = vpack.c.b16 %v984, %v983
    %987 = vmatpush.bf16.msra.mxu0 %v830
    %988 = vmatpush.bf16.msra.mxu0 %v826
    %989 = vmatpush.bf16.msra.mxu0 %v822
    %990 = vmatpush.bf16.msra.mxu0 %v818
    %991 = vmatpush.bf16.msra.mxu0 %v814
    %992 = vmatpush.bf16.msra.mxu0 %v810
    %993 = vmatpush.bf16.msra.mxu0 %v806
    %994 = vmatpush.bf16.msra.mxu0 %v802
    %995 = vmatmul.bf16.gmra.mxu0 %v985
    %v996 = vpop.f32.mrf.mxu0
    %v997 = vadd.f32 0.0, %v996
    %v998 = vpop.f32.mrf.mxu0
    %v999 = vadd.f32 0.0, %v998
    %1000 = vdwg.mxu0
    %1001 = vmatpush.bf16.msra.mxu0 %v831
    %1002 = vmatpush.bf16.msra.mxu0 %v827
    %1003 = vmatpush.bf16.msra.mxu0 %v823
    %1004 = vmatpush.bf16.msra.mxu0 %v819
    %1005 = vmatpush.bf16.msra.mxu0 %v815
    %1006 = vmatpush.bf16.msra.mxu0 %v811
    %1007 = vmatpush.bf16.msra.mxu0 %v807
    %1008 = vmatpush.bf16.msra.mxu0 %v803
    %1009 = vmatmul.bf16.gmra.mxu0 %v985
    %v1010 = vpop.f32.mrf.mxu0
    %v1011 = vadd.f32 0.0, %v1010
    %v1012 = vpop.f32.mrf.mxu0
    %v1013 = vadd.f32 0.0, %v1012
    %1014 = vdwg.mxu0
    %1015 = vmatpush.bf16.msra.mxu0 %v832
    %1016 = vmatpush.bf16.msra.mxu0 %v828
    %1017 = vmatpush.bf16.msra.mxu0 %v824
    %1018 = vmatpush.bf16.msra.mxu0 %v820
    %1019 = vmatpush.bf16.msra.mxu0 %v816
    %1020 = vmatpush.bf16.msra.mxu0 %v812
    %1021 = vmatpush.bf16.msra.mxu0 %v808
    %1022 = vmatpush.bf16.msra.mxu0 %v804
    %1023 = vmatmul.bf16.gmra.mxu0 %v985
    %v1024 = vpop.f32.mrf.mxu0
    %v1025 = vadd.f32 0.0, %v1024
    %v1026 = vpop.f32.mrf.mxu0
    %v1027 = vadd.f32 0.0, %v1026
    %1028 = vdwg.mxu0
    %1029 = vmatpush.bf16.msra.mxu0 %v833
    %1030 = vmatpush.bf16.msra.mxu0 %v829
    %1031 = vmatpush.bf16.msra.mxu0 %v825
    %1032 = vmatpush.bf16.msra.mxu0 %v821
    %1033 = vmatpush.bf16.msra.mxu0 %v817
    %1034 = vmatpush.bf16.msra.mxu0 %v813
    %1035 = vmatpush.bf16.msra.mxu0 %v809
    %1036 = vmatpush.bf16.msra.mxu0 %v805
    %1037 = vmatmul.bf16.gmra.mxu0 %v985
    %v1038 = vpop.f32.mrf.mxu0
    %v1039 = vadd.f32 0.0, %v1038
    %v1040 = vpop.f32.mrf.mxu0
    %v1041 = vadd.f32 0.0, %v1040
    %1042 = vdwg.mxu0
    %v1043 = vadd.f32 %v973, %v997
    %v1044 = vadd.f32 %v974, %v1011
    %v1045 = vadd.f32 %v975, %v1025
    %v1046 = vadd.f32 %v976, %v1039
    %v1047 = vadd.f32 %v977, %v999
    %v1048 = vadd.f32 %v978, %v1013
    %v1049 = vadd.f32 %v979, %v1027
    %v1050 = vadd.f32 %v980, %v1041
    %v1051 = vmul.f32 %v1043, 0.5
    %v1052 = vmul.f32 %v1047, 0.5
    %v1053 = vtanh.pop %v1051
    %v1054 = vtanh.pop %v1052
    %v1055 = vmul.f32 %v1053, 0.5
    %v1056 = vmul.f32 %v1054, 0.5
    %v1057 = vadd.f32 %v1055, 0.5
    %v1058 = vadd.f32 %v1056, 0.5
    %v1059 = vmul.f32 %v1044, 0.5
    %v1060 = vmul.f32 %v1048, 0.5
    %v1061 = vtanh.pop %v1059
    %v1062 = vtanh.pop %v1060
    %v1063 = vmul.f32 %v1061, 0.5
    %v1064 = vmul.f32 %v1062, 0.5
    %v1065 = vadd.f32 %v1063, 0.5
    %v1066 = vadd.f32 %v1064, 0.5
    %v1067 = vtanh.pop %v1045
    %v1068 = vtanh.pop %v1049
    %v1069 = vmul.f32 %v1046, 0.5
    %v1070 = vmul.f32 %v1050, 0.5
    %v1071 = vtanh.pop %v1069
    %v1072 = vtanh.pop %v1070
    %v1073 = vmul.f32 %v1071, 0.5
    %v1074 = vmul.f32 %v1072, 0.5
    %v1075 = vadd.f32 %v1073, 0.5
    %v1076 = vadd.f32 %v1074, 0.5
    %v1077 = vmul.f32 %v1065, %v960
    %v1078 = vmul.f32 %v1066, %v961
    %v1079 = vmul.f32 %v1057, %v1067
    %v1080 = vmul.f32 %v1058, %v1068
    %v1081 = vadd.f32 %v1077, %v1079
    %v1082 = vadd.f32 %v1078, %v1080
    %v1083 = vtanh.pop %v1081
    %v1084 = vtanh.pop %v1082
    %v1085 = vmul.f32 %v1075, %v1083
    %v1086 = vmul.f32 %v1076, %v1084
    %v1087 = vpack.c.bf16 %v1085, %v1085
    %v1088 = vpack.c.bf16 %v1086, %v1086
    %s1089 = scalar_lea.vmem [#allocation16], 8
    %1090 = vst [vmem:[%s1089] sm:$0xf] %v1087
    %1091 = vst [vmem:[%s1089 + $0x4] sm:$0xf] %v1088
    %s1092 = smul.u32 4, 4
    %s1093 = smul.addr %s1092, 8
    %s1094 = scalar_lea.vmem [#allocation2], %s1093
    %v1095 = vld [vmem:[%s1094] sm:$0xff]
    %v1096 = vld [vmem:[%s1094 + $0x8] sm:$0xff]
    %v1097 = vld [vmem:[%s1094 + $0x10] sm:$0xff]
    %v1098 = vld [vmem:[%s1094 + $0x18] sm:$0xff]
    %v1099 = vld [vmem:[%s1094 + $0x20] sm:$0xff]
    %v1100 = vld [vmem:[%s1094 + $0x28] sm:$0xff]
    %v1101 = vld [vmem:[%s1094 + $0x30] sm:$0xff]
    %v1102 = vld [vmem:[%s1094 + $0x38] sm:$0xff]
    %v1105 = vunpack.c.l.b16 %v1087
    %v1106 = vunpack.c.l.b16 %v1088
    %v1107 = vpack.c.b16 %v1106, %v1105
    %1109 = vmatpush.bf16.msra.mxu0 %v830
    %1110 = vmatpush.bf16.msra.mxu0 %v826
    %1111 = vmatpush.bf16.msra.mxu0 %v822
    %1112 = vmatpush.bf16.msra.mxu0 %v818
    %1113 = vmatpush.bf16.msra.mxu0 %v814
    %1114 = vmatpush.bf16.msra.mxu0 %v810
    %1115 = vmatpush.bf16.msra.mxu0 %v806
    %1116 = vmatpush.bf16.msra.mxu0 %v802
    %1117 = vmatmul.bf16.gmra.mxu0 %v1107
    %v1118 = vpop.f32.mrf.mxu0
    %v1119 = vadd.f32 0.0, %v1118
    %v1120 = vpop.f32.mrf.mxu0
    %v1121 = vadd.f32 0.0, %v1120
    %1122 = vdwg.mxu0
    %1123 = vmatpush.bf16.msra.mxu0 %v831
    %1124 = vmatpush.bf16.msra.mxu0 %v827
    %1125 = vmatpush.bf16.msra.mxu0 %v823
    %1126 = vmatpush.bf16.msra.mxu0 %v819
    %1127 = vmatpush.bf16.msra.mxu0 %v815
    %1128 = vmatpush.bf16.msra.mxu0 %v811
    %1129 = vmatpush.bf16.msra.mxu0 %v807
    %1130 = vmatpush.bf16.msra.mxu0 %v803
    %1131 = vmatmul.bf16.gmra.mxu0 %v1107
    %v1132 = vpop.f32.mrf.mxu0
    %v1133 = vadd.f32 0.0, %v1132
    %v1134 = vpop.f32.mrf.mxu0
    %v1135 = vadd.f32 0.0, %v1134
    %1136 = vdwg.mxu0
    %1137 = vmatpush.bf16.msra.mxu0 %v832
    %1138 = vmatpush.bf16.msra.mxu0 %v828
    %1139 = vmatpush.bf16.msra.mxu0 %v824
    %1140 = vmatpush.bf16.msra.mxu0 %v820
    %1141 = vmatpush.bf16.msra.mxu0 %v816
    %1142 = vmatpush.bf16.msra.mxu0 %v812
    %1143 = vmatpush.bf16.msra.mxu0 %v808
    %1144 = vmatpush.bf16.msra.mxu0 %v804
    %1145 = vmatmul.bf16.gmra.mxu0 %v1107
    %v1146 = vpop.f32.mrf.mxu0
    %v1147 = vadd.f32 0.0, %v1146
    %v1148 = vpop.f32.mrf.mxu0
    %v1149 = vadd.f32 0.0, %v1148
    %1150 = vdwg.mxu0
    %1151 = vmatpush.bf16.msra.mxu0 %v833
    %1152 = vmatpush.bf16.msra.mxu0 %v829
    %1153 = vmatpush.bf16.msra.mxu0 %v825
    %1154 = vmatpush.bf16.msra.mxu0 %v821
    %1155 = vmatpush.bf16.msra.mxu0 %v817
    %1156 = vmatpush.bf16.msra.mxu0 %v813
    %1157 = vmatpush.bf16.msra.mxu0 %v809
    %1158 = vmatpush.bf16.msra.mxu0 %v805
    %1159 = vmatmul.bf16.gmra.mxu0 %v1107
    %v1160 = vpop.f32.mrf.mxu0
    %v1161 = vadd.f32 0.0, %v1160
    %v1162 = vpop.f32.mrf.mxu0
    %v1163 = vadd.f32 0.0, %v1162
    %1164 = vdwg.mxu0
    %v1165 = vadd.f32 %v1095, %v1119
    %v1166 = vadd.f32 %v1096, %v1133
    %v1167 = vadd.f32 %v1097, %v1147
    %v1168 = vadd.f32 %v1098, %v1161
    %v1169 = vadd.f32 %v1099, %v1121
    %v1170 = vadd.f32 %v1100, %v1135
    %v1171 = vadd.f32 %v1101, %v1149
    %v1172 = vadd.f32 %v1102, %v1163
    %v1173 = vmul.f32 %v1165, 0.5
    %v1174 = vmul.f32 %v1169, 0.5
    %v1175 = vtanh.pop %v1173
    %v1176 = vtanh.pop %v1174
    %v1177 = vmul.f32 %v1175, 0.5
    %v1178 = vmul.f32 %v1176, 0.5
    %v1179 = vadd.f32 %v1177, 0.5
    %v1180 = vadd.f32 %v1178, 0.5
    %v1181 = vmul.f32 %v1166, 0.5
    %v1182 = vmul.f32 %v1170, 0.5
    %v1183 = vtanh.pop %v1181
    %v1184 = vtanh.pop %v1182
    %v1185 = vmul.f32 %v1183, 0.5
    %v1186 = vmul.f32 %v1184, 0.5
    %v1187 = vadd.f32 %v1185, 0.5
    %v1188 = vadd.f32 %v1186, 0.5
    %v1189 = vtanh.pop %v1167
    %v1190 = vtanh.pop %v1171
    %v1191 = vmul.f32 %v1168, 0.5
    %v1192 = vmul.f32 %v1172, 0.5
    %v1193 = vtanh.pop %v1191
    %v1194 = vtanh.pop %v1192
    %v1195 = vmul.f32 %v1193, 0.5
    %v1196 = vmul.f32 %v1194, 0.5
    %v1197 = vadd.f32 %v1195, 0.5
    %v1198 = vadd.f32 %v1196, 0.5
    %v1199 = vmul.f32 %v1187, %v1081
    %v1200 = vmul.f32 %v1188, %v1082
    %v1201 = vmul.f32 %v1179, %v1189
    %v1202 = vmul.f32 %v1180, %v1190
    %v1203 = vadd.f32 %v1199, %v1201
    %v1204 = vadd.f32 %v1200, %v1202
    %v1205 = vtanh.pop %v1203
    %v1206 = vtanh.pop %v1204
    %v1207 = vmul.f32 %v1197, %v1205
    %v1208 = vmul.f32 %v1198, %v1206
    %v1209 = vpack.c.bf16 %v1207, %v1207
    %v1210 = vpack.c.bf16 %v1208, %v1208
    %s1211 = scalar_lea.vmem [#allocation16], 16
    %1212 = vst [vmem:[%s1211] sm:$0xf] %v1209
    %1213 = vst [vmem:[%s1211 + $0x4] sm:$0xf] %v1210
    %s1214 = smul.u32 6, 4
    %s1215 = smul.addr %s1214, 8
    %s1216 = scalar_lea.vmem [#allocation2], %s1215
    %v1217 = vld [vmem:[%s1216] sm:$0xff]
    %v1218 = vld [vmem:[%s1216 + $0x8] sm:$0xff]
    %v1219 = vld [vmem:[%s1216 + $0x10] sm:$0xff]
    %v1220 = vld [vmem:[%s1216 + $0x18] sm:$0xff]
    %v1221 = vld [vmem:[%s1216 + $0x20] sm:$0xff]
    %v1222 = vld [vmem:[%s1216 + $0x28] sm:$0xff]
    %v1223 = vld [vmem:[%s1216 + $0x30] sm:$0xff]
    %v1224 = vld [vmem:[%s1216 + $0x38] sm:$0xff]
    %v1227 = vunpack.c.l.b16 %v1209
    %v1228 = vunpack.c.l.b16 %v1210
    %v1229 = vpack.c.b16 %v1228, %v1227
    %1231 = vmatpush.bf16.msra.mxu0 %v830
    %1232 = vmatpush.bf16.msra.mxu0 %v826
    %1233 = vmatpush.bf16.msra.mxu0 %v822
    %1234 = vmatpush.bf16.msra.mxu0 %v818
    %1235 = vmatpush.bf16.msra.mxu0 %v814
    %1236 = vmatpush.bf16.msra.mxu0 %v810
    %1237 = vmatpush.bf16.msra.mxu0 %v806
    %1238 = vmatpush.bf16.msra.mxu0 %v802
    %1239 = vmatmul.bf16.gmra.mxu0 %v1229
    %v1240 = vpop.f32.mrf.mxu0
    %v1241 = vadd.f32 0.0, %v1240
    %v1242 = vpop.f32.mrf.mxu0
    %v1243 = vadd.f32 0.0, %v1242
    %1244 = vdwg.mxu0
    %1245 = vmatpush.bf16.msra.mxu0 %v831
    %1246 = vmatpush.bf16.msra.mxu0 %v827
    %1247 = vmatpush.bf16.msra.mxu0 %v823
    %1248 = vmatpush.bf16.msra.mxu0 %v819
    %1249 = vmatpush.bf16.msra.mxu0 %v815
    %1250 = vmatpush.bf16.msra.mxu0 %v811
    %1251 = vmatpush.bf16.msra.mxu0 %v807
    %1252 = vmatpush.bf16.msra.mxu0 %v803
    %1253 = vmatmul.bf16.gmra.mxu0 %v1229
    %v1254 = vpop.f32.mrf.mxu0
    %v1255 = vadd.f32 0.0, %v1254
    %v1256 = vpop.f32.mrf.mxu0
    %v1257 = vadd.f32 0.0, %v1256
    %1258 = vdwg.mxu0
    %1259 = vmatpush.bf16.msra.mxu0 %v832
    %1260 = vmatpush.bf16.msra.mxu0 %v828
    %1261 = vmatpush.bf16.msra.mxu0 %v824
    %1262 = vmatpush.bf16.msra.mxu0 %v820
    %1263 = vmatpush.bf16.msra.mxu0 %v816
    %1264 = vmatpush.bf16.msra.mxu0 %v812
    %1265 = vmatpush.bf16.msra.mxu0 %v808
    %1266 = vmatpush.bf16.msra.mxu0 %v804
    %1267 = vmatmul.bf16.gmra.mxu0 %v1229
    %v1268 = vpop.f32.mrf.mxu0
    %v1269 = vadd.f32 0.0, %v1268
    %v1270 = vpop.f32.mrf.mxu0
    %v1271 = vadd.f32 0.0, %v1270
    %1272 = vdwg.mxu0
    %1273 = vmatpush.bf16.msra.mxu0 %v833
    %1274 = vmatpush.bf16.msra.mxu0 %v829
    %1275 = vmatpush.bf16.msra.mxu0 %v825
    %1276 = vmatpush.bf16.msra.mxu0 %v821
    %1277 = vmatpush.bf16.msra.mxu0 %v817
    %1278 = vmatpush.bf16.msra.mxu0 %v813
    %1279 = vmatpush.bf16.msra.mxu0 %v809
    %1280 = vmatpush.bf16.msra.mxu0 %v805
    %1281 = vmatmul.bf16.gmra.mxu0 %v1229
    %v1282 = vpop.f32.mrf.mxu0
    %v1283 = vadd.f32 0.0, %v1282
    %v1284 = vpop.f32.mrf.mxu0
    %v1285 = vadd.f32 0.0, %v1284
    %1286 = vdwg.mxu0
    %v1287 = vadd.f32 %v1217, %v1241
    %v1288 = vadd.f32 %v1218, %v1255
    %v1289 = vadd.f32 %v1219, %v1269
    %v1290 = vadd.f32 %v1220, %v1283
    %v1291 = vadd.f32 %v1221, %v1243
    %v1292 = vadd.f32 %v1222, %v1257
    %v1293 = vadd.f32 %v1223, %v1271
    %v1294 = vadd.f32 %v1224, %v1285
    %v1295 = vmul.f32 %v1287, 0.5
    %v1296 = vmul.f32 %v1291, 0.5
    %v1297 = vtanh.pop %v1295
    %v1298 = vtanh.pop %v1296
    %v1299 = vmul.f32 %v1297, 0.5
    %v1300 = vmul.f32 %v1298, 0.5
    %v1301 = vadd.f32 %v1299, 0.5
    %v1302 = vadd.f32 %v1300, 0.5
    %v1303 = vmul.f32 %v1288, 0.5
    %v1304 = vmul.f32 %v1292, 0.5
    %v1305 = vtanh.pop %v1303
    %v1306 = vtanh.pop %v1304
    %v1307 = vmul.f32 %v1305, 0.5
    %v1308 = vmul.f32 %v1306, 0.5
    %v1309 = vadd.f32 %v1307, 0.5
    %v1310 = vadd.f32 %v1308, 0.5
    %v1311 = vtanh.pop %v1289
    %v1312 = vtanh.pop %v1293
    %v1313 = vmul.f32 %v1290, 0.5
    %v1314 = vmul.f32 %v1294, 0.5
    %v1315 = vtanh.pop %v1313
    %v1316 = vtanh.pop %v1314
    %v1317 = vmul.f32 %v1315, 0.5
    %v1318 = vmul.f32 %v1316, 0.5
    %v1319 = vadd.f32 %v1317, 0.5
    %v1320 = vadd.f32 %v1318, 0.5
    %v1321 = vmul.f32 %v1309, %v1203
    %v1322 = vmul.f32 %v1310, %v1204
    %v1323 = vmul.f32 %v1301, %v1311
    %v1324 = vmul.f32 %v1302, %v1312
    %v1325 = vadd.f32 %v1321, %v1323
    %v1326 = vadd.f32 %v1322, %v1324
    %v1327 = vtanh.pop %v1325
    %v1328 = vtanh.pop %v1326
    %v1329 = vmul.f32 %v1319, %v1327
    %v1330 = vmul.f32 %v1320, %v1328
    %v1331 = vpack.c.bf16 %v1329, %v1329
    %v1332 = vpack.c.bf16 %v1330, %v1330
    %s1333 = scalar_lea.vmem [#allocation16], 24
    %1334 = vst [vmem:[%s1333] sm:$0xf] %v1331
    %1335 = vst [vmem:[%s1333 + $0x4] sm:$0xf] %v1332
    %s1336 = smul.u32 8, 4
    %s1337 = smul.addr %s1336, 8
    %s1338 = scalar_lea.vmem [#allocation2], %s1337
    %v1339 = vld [vmem:[%s1338] sm:$0xff]
    %v1340 = vld [vmem:[%s1338 + $0x8] sm:$0xff]
    %v1341 = vld [vmem:[%s1338 + $0x10] sm:$0xff]
    %v1342 = vld [vmem:[%s1338 + $0x18] sm:$0xff]
    %v1343 = vld [vmem:[%s1338 + $0x20] sm:$0xff]
    %v1344 = vld [vmem:[%s1338 + $0x28] sm:$0xff]
    %v1345 = vld [vmem:[%s1338 + $0x30] sm:$0xff]
    %v1346 = vld [vmem:[%s1338 + $0x38] sm:$0xff]
    %v1349 = vunpack.c.l.b16 %v1331
    %v1350 = vunpack.c.l.b16 %v1332
    %v1351 = vpack.c.b16 %v1350, %v1349
    %1353 = vmatpush.bf16.msra.mxu0 %v830
    %1354 = vmatpush.bf16.msra.mxu0 %v826
    %1355 = vmatpush.bf16.msra.mxu0 %v822
    %1356 = vmatpush.bf16.msra.mxu0 %v818
    %1357 = vmatpush.bf16.msra.mxu0 %v814
    %1358 = vmatpush.bf16.msra.mxu0 %v810
    %1359 = vmatpush.bf16.msra.mxu0 %v806
    %1360 = vmatpush.bf16.msra.mxu0 %v802
    %1361 = vmatmul.bf16.gmra.mxu0 %v1351
    %v1362 = vpop.f32.mrf.mxu0
    %v1363 = vadd.f32 0.0, %v1362
    %v1364 = vpop.f32.mrf.mxu0
    %v1365 = vadd.f32 0.0, %v1364
    %1366 = vdwg.mxu0
    %1367 = vmatpush.bf16.msra.mxu0 %v831
    %1368 = vmatpush.bf16.msra.mxu0 %v827
    %1369 = vmatpush.bf16.msra.mxu0 %v823
    %1370 = vmatpush.bf16.msra.mxu0 %v819
    %1371 = vmatpush.bf16.msra.mxu0 %v815
    %1372 = vmatpush.bf16.msra.mxu0 %v811
    %1373 = vmatpush.bf16.msra.mxu0 %v807
    %1374 = vmatpush.bf16.msra.mxu0 %v803
    %1375 = vmatmul.bf16.gmra.mxu0 %v1351
    %v1376 = vpop.f32.mrf.mxu0
    %v1377 = vadd.f32 0.0, %v1376
    %v1378 = vpop.f32.mrf.mxu0
    %v1379 = vadd.f32 0.0, %v1378
    %1380 = vdwg.mxu0
    %1381 = vmatpush.bf16.msra.mxu0 %v832
    %1382 = vmatpush.bf16.msra.mxu0 %v828
    %1383 = vmatpush.bf16.msra.mxu0 %v824
    %1384 = vmatpush.bf16.msra.mxu0 %v820
    %1385 = vmatpush.bf16.msra.mxu0 %v816
    %1386 = vmatpush.bf16.msra.mxu0 %v812
    %1387 = vmatpush.bf16.msra.mxu0 %v808
    %1388 = vmatpush.bf16.msra.mxu0 %v804
    %1389 = vmatmul.bf16.gmra.mxu0 %v1351
    %v1390 = vpop.f32.mrf.mxu0
    %v1391 = vadd.f32 0.0, %v1390
    %v1392 = vpop.f32.mrf.mxu0
    %v1393 = vadd.f32 0.0, %v1392
    %1394 = vdwg.mxu0
    %1395 = vmatpush.bf16.msra.mxu0 %v833
    %1396 = vmatpush.bf16.msra.mxu0 %v829
    %1397 = vmatpush.bf16.msra.mxu0 %v825
    %1398 = vmatpush.bf16.msra.mxu0 %v821
    %1399 = vmatpush.bf16.msra.mxu0 %v817
    %1400 = vmatpush.bf16.msra.mxu0 %v813
    %1401 = vmatpush.bf16.msra.mxu0 %v809
    %1402 = vmatpush.bf16.msra.mxu0 %v805
    %1403 = vmatmul.bf16.gmra.mxu0 %v1351
    %v1404 = vpop.f32.mrf.mxu0
    %v1405 = vadd.f32 0.0, %v1404
    %v1406 = vpop.f32.mrf.mxu0
    %v1407 = vadd.f32 0.0, %v1406
    %1408 = vdwg.mxu0
    %v1409 = vadd.f32 %v1339, %v1363
    %v1410 = vadd.f32 %v1340, %v1377
    %v1411 = vadd.f32 %v1341, %v1391
    %v1412 = vadd.f32 %v1342, %v1405
    %v1413 = vadd.f32 %v1343, %v1365
    %v1414 = vadd.f32 %v1344, %v1379
    %v1415 = vadd.f32 %v1345, %v1393
    %v1416 = vadd.f32 %v1346, %v1407
    %v1417 = vmul.f32 %v1409, 0.5
    %v1418 = vmul.f32 %v1413, 0.5
    %v1419 = vtanh.pop %v1417
    %v1420 = vtanh.pop %v1418
    %v1421 = vmul.f32 %v1419, 0.5
    %v1422 = vmul.f32 %v1420, 0.5
    %v1423 = vadd.f32 %v1421, 0.5
    %v1424 = vadd.f32 %v1422, 0.5
    %v1425 = vmul.f32 %v1410, 0.5
    %v1426 = vmul.f32 %v1414, 0.5
    %v1427 = vtanh.pop %v1425
    %v1428 = vtanh.pop %v1426
    %v1429 = vmul.f32 %v1427, 0.5
    %v1430 = vmul.f32 %v1428, 0.5
    %v1431 = vadd.f32 %v1429, 0.5
    %v1432 = vadd.f32 %v1430, 0.5
    %v1433 = vtanh.pop %v1411
    %v1434 = vtanh.pop %v1415
    %v1435 = vmul.f32 %v1412, 0.5
    %v1436 = vmul.f32 %v1416, 0.5
    %v1437 = vtanh.pop %v1435
    %v1438 = vtanh.pop %v1436
    %v1439 = vmul.f32 %v1437, 0.5
    %v1440 = vmul.f32 %v1438, 0.5
    %v1441 = vadd.f32 %v1439, 0.5
    %v1442 = vadd.f32 %v1440, 0.5
    %v1443 = vmul.f32 %v1431, %v1325
    %v1444 = vmul.f32 %v1432, %v1326
    %v1445 = vmul.f32 %v1423, %v1433
    %v1446 = vmul.f32 %v1424, %v1434
    %v1447 = vadd.f32 %v1443, %v1445
    %v1448 = vadd.f32 %v1444, %v1446
    %v1449 = vtanh.pop %v1447
    %v1450 = vtanh.pop %v1448
    %v1451 = vmul.f32 %v1441, %v1449
    %v1452 = vmul.f32 %v1442, %v1450
    %v1453 = vpack.c.bf16 %v1451, %v1451
    %v1454 = vpack.c.bf16 %v1452, %v1452
    %s1455 = scalar_lea.vmem [#allocation16], 32
    %1456 = vst [vmem:[%s1455] sm:$0xf] %v1453
    %1457 = vst [vmem:[%s1455 + $0x4] sm:$0xf] %v1454
    %s1458 = smul.u32 10, 4
    %s1459 = smul.addr %s1458, 8
    %s1460 = scalar_lea.vmem [#allocation2], %s1459
    %v1461 = vld [vmem:[%s1460] sm:$0xff]
    %v1462 = vld [vmem:[%s1460 + $0x8] sm:$0xff]
    %v1463 = vld [vmem:[%s1460 + $0x10] sm:$0xff]
    %v1464 = vld [vmem:[%s1460 + $0x18] sm:$0xff]
    %v1465 = vld [vmem:[%s1460 + $0x20] sm:$0xff]
    %v1466 = vld [vmem:[%s1460 + $0x28] sm:$0xff]
    %v1467 = vld [vmem:[%s1460 + $0x30] sm:$0xff]
    %v1468 = vld [vmem:[%s1460 + $0x38] sm:$0xff]
    %v1471 = vunpack.c.l.b16 %v1453
    %v1472 = vunpack.c.l.b16 %v1454
    %v1473 = vpack.c.b16 %v1472, %v1471
    %1475 = vmatpush.bf16.msra.mxu0 %v830
    %1476 = vmatpush.bf16.msra.mxu0 %v826
    %1477 = vmatpush.bf16.msra.mxu0 %v822
    %1478 = vmatpush.bf16.msra.mxu0 %v818
    %1479 = vmatpush.bf16.msra.mxu0 %v814
    %1480 = vmatpush.bf16.msra.mxu0 %v810
    %1481 = vmatpush.bf16.msra.mxu0 %v806
    %1482 = vmatpush.bf16.msra.mxu0 %v802
    %1483 = vmatmul.bf16.gmra.mxu0 %v1473
    %v1484 = vpop.f32.mrf.mxu0
    %v1485 = vadd.f32 0.0, %v1484
    %v1486 = vpop.f32.mrf.mxu0
    %v1487 = vadd.f32 0.0, %v1486
    %1488 = vdwg.mxu0
    %1489 = vmatpush.bf16.msra.mxu0 %v831
    %1490 = vmatpush.bf16.msra.mxu0 %v827
    %1491 = vmatpush.bf16.msra.mxu0 %v823
    %1492 = vmatpush.bf16.msra.mxu0 %v819
    %1493 = vmatpush.bf16.msra.mxu0 %v815
    %1494 = vmatpush.bf16.msra.mxu0 %v811
    %1495 = vmatpush.bf16.msra.mxu0 %v807
    %1496 = vmatpush.bf16.msra.mxu0 %v803
    %1497 = vmatmul.bf16.gmra.mxu0 %v1473
    %v1498 = vpop.f32.mrf.mxu0
    %v1499 = vadd.f32 0.0, %v1498
    %v1500 = vpop.f32.mrf.mxu0
    %v1501 = vadd.f32 0.0, %v1500
    %1502 = vdwg.mxu0
    %1503 = vmatpush.bf16.msra.mxu0 %v832
    %1504 = vmatpush.bf16.msra.mxu0 %v828
    %1505 = vmatpush.bf16.msra.mxu0 %v824
    %1506 = vmatpush.bf16.msra.mxu0 %v820
    %1507 = vmatpush.bf16.msra.mxu0 %v816
    %1508 = vmatpush.bf16.msra.mxu0 %v812
    %1509 = vmatpush.bf16.msra.mxu0 %v808
    %1510 = vmatpush.bf16.msra.mxu0 %v804
    %1511 = vmatmul.bf16.gmra.mxu0 %v1473
    %v1512 = vpop.f32.mrf.mxu0
    %v1513 = vadd.f32 0.0, %v1512
    %v1514 = vpop.f32.mrf.mxu0
    %v1515 = vadd.f32 0.0, %v1514
    %1516 = vdwg.mxu0
    %1517 = vmatpush.bf16.msra.mxu0 %v833
    %1518 = vmatpush.bf16.msra.mxu0 %v829
    %1519 = vmatpush.bf16.msra.mxu0 %v825
    %1520 = vmatpush.bf16.msra.mxu0 %v821
    %1521 = vmatpush.bf16.msra.mxu0 %v817
    %1522 = vmatpush.bf16.msra.mxu0 %v813
    %1523 = vmatpush.bf16.msra.mxu0 %v809
    %1524 = vmatpush.bf16.msra.mxu0 %v805
    %1525 = vmatmul.bf16.gmra.mxu0 %v1473
    %v1526 = vpop.f32.mrf.mxu0
    %v1527 = vadd.f32 0.0, %v1526
    %v1528 = vpop.f32.mrf.mxu0
    %v1529 = vadd.f32 0.0, %v1528
    %1530 = vdwg.mxu0
    %v1531 = vadd.f32 %v1461, %v1485
    %v1532 = vadd.f32 %v1462, %v1499
    %v1533 = vadd.f32 %v1463, %v1513
    %v1534 = vadd.f32 %v1464, %v1527
    %v1535 = vadd.f32 %v1465, %v1487
    %v1536 = vadd.f32 %v1466, %v1501
    %v1537 = vadd.f32 %v1467, %v1515
    %v1538 = vadd.f32 %v1468, %v1529
    %v1539 = vmul.f32 %v1531, 0.5
    %v1540 = vmul.f32 %v1535, 0.5
    %v1541 = vtanh.pop %v1539
    %v1542 = vtanh.pop %v1540
    %v1543 = vmul.f32 %v1541, 0.5
    %v1544 = vmul.f32 %v1542, 0.5
    %v1545 = vadd.f32 %v1543, 0.5
    %v1546 = vadd.f32 %v1544, 0.5
    %v1547 = vmul.f32 %v1532, 0.5
    %v1548 = vmul.f32 %v1536, 0.5
    %v1549 = vtanh.pop %v1547
    %v1550 = vtanh.pop %v1548
    %v1551 = vmul.f32 %v1549, 0.5
    %v1552 = vmul.f32 %v1550, 0.5
    %v1553 = vadd.f32 %v1551, 0.5
    %v1554 = vadd.f32 %v1552, 0.5
    %v1555 = vtanh.pop %v1533
    %v1556 = vtanh.pop %v1537
    %v1557 = vmul.f32 %v1534, 0.5
    %v1558 = vmul.f32 %v1538, 0.5
    %v1559 = vtanh.pop %v1557
    %v1560 = vtanh.pop %v1558
    %v1561 = vmul.f32 %v1559, 0.5
    %v1562 = vmul.f32 %v1560, 0.5
    %v1563 = vadd.f32 %v1561, 0.5
    %v1564 = vadd.f32 %v1562, 0.5
    %v1565 = vmul.f32 %v1553, %v1447
    %v1566 = vmul.f32 %v1554, %v1448
    %v1567 = vmul.f32 %v1545, %v1555
    %v1568 = vmul.f32 %v1546, %v1556
    %v1569 = vadd.f32 %v1565, %v1567
    %v1570 = vadd.f32 %v1566, %v1568
    %v1571 = vtanh.pop %v1569
    %v1572 = vtanh.pop %v1570
    %v1573 = vmul.f32 %v1563, %v1571
    %v1574 = vmul.f32 %v1564, %v1572
    %v1575 = vpack.c.bf16 %v1573, %v1573
    %v1576 = vpack.c.bf16 %v1574, %v1574
    %s1577 = scalar_lea.vmem [#allocation16], 40
    %1578 = vst [vmem:[%s1577] sm:$0xf] %v1575
    %1579 = vst [vmem:[%s1577 + $0x4] sm:$0xf] %v1576
    %s1580 = smul.u32 12, 4
    %s1581 = smul.addr %s1580, 8
    %s1582 = scalar_lea.vmem [#allocation2], %s1581
    %v1583 = vld [vmem:[%s1582] sm:$0xff]
    %v1584 = vld [vmem:[%s1582 + $0x8] sm:$0xff]
    %v1585 = vld [vmem:[%s1582 + $0x10] sm:$0xff]
    %v1586 = vld [vmem:[%s1582 + $0x18] sm:$0xff]
    %v1587 = vld [vmem:[%s1582 + $0x20] sm:$0xff]
    %v1588 = vld [vmem:[%s1582 + $0x28] sm:$0xff]
    %v1589 = vld [vmem:[%s1582 + $0x30] sm:$0xff]
    %v1590 = vld [vmem:[%s1582 + $0x38] sm:$0xff]
    %v1593 = vunpack.c.l.b16 %v1575
    %v1594 = vunpack.c.l.b16 %v1576
    %v1595 = vpack.c.b16 %v1594, %v1593
    %1597 = vmatpush.bf16.msra.mxu0 %v830
    %1598 = vmatpush.bf16.msra.mxu0 %v826
    %1599 = vmatpush.bf16.msra.mxu0 %v822
    %1600 = vmatpush.bf16.msra.mxu0 %v818
    %1601 = vmatpush.bf16.msra.mxu0 %v814
    %1602 = vmatpush.bf16.msra.mxu0 %v810
    %1603 = vmatpush.bf16.msra.mxu0 %v806
    %1604 = vmatpush.bf16.msra.mxu0 %v802
    %1605 = vmatmul.bf16.gmra.mxu0 %v1595
    %v1606 = vpop.f32.mrf.mxu0
    %v1607 = vadd.f32 0.0, %v1606
    %v1608 = vpop.f32.mrf.mxu0
    %v1609 = vadd.f32 0.0, %v1608
    %1610 = vdwg.mxu0
    %1611 = vmatpush.bf16.msra.mxu0 %v831
    %1612 = vmatpush.bf16.msra.mxu0 %v827
    %1613 = vmatpush.bf16.msra.mxu0 %v823
    %1614 = vmatpush.bf16.msra.mxu0 %v819
    %1615 = vmatpush.bf16.msra.mxu0 %v815
    %1616 = vmatpush.bf16.msra.mxu0 %v811
    %1617 = vmatpush.bf16.msra.mxu0 %v807
    %1618 = vmatpush.bf16.msra.mxu0 %v803
    %1619 = vmatmul.bf16.gmra.mxu0 %v1595
    %v1620 = vpop.f32.mrf.mxu0
    %v1621 = vadd.f32 0.0, %v1620
    %v1622 = vpop.f32.mrf.mxu0
    %v1623 = vadd.f32 0.0, %v1622
    %1624 = vdwg.mxu0
    %1625 = vmatpush.bf16.msra.mxu0 %v832
    %1626 = vmatpush.bf16.msra.mxu0 %v828
    %1627 = vmatpush.bf16.msra.mxu0 %v824
    %1628 = vmatpush.bf16.msra.mxu0 %v820
    %1629 = vmatpush.bf16.msra.mxu0 %v816
    %1630 = vmatpush.bf16.msra.mxu0 %v812
    %1631 = vmatpush.bf16.msra.mxu0 %v808
    %1632 = vmatpush.bf16.msra.mxu0 %v804
    %1633 = vmatmul.bf16.gmra.mxu0 %v1595
    %v1634 = vpop.f32.mrf.mxu0
    %v1635 = vadd.f32 0.0, %v1634
    %v1636 = vpop.f32.mrf.mxu0
    %v1637 = vadd.f32 0.0, %v1636
    %1638 = vdwg.mxu0
    %1639 = vmatpush.bf16.msra.mxu0 %v833
    %1640 = vmatpush.bf16.msra.mxu0 %v829
    %1641 = vmatpush.bf16.msra.mxu0 %v825
    %1642 = vmatpush.bf16.msra.mxu0 %v821
    %1643 = vmatpush.bf16.msra.mxu0 %v817
    %1644 = vmatpush.bf16.msra.mxu0 %v813
    %1645 = vmatpush.bf16.msra.mxu0 %v809
    %1646 = vmatpush.bf16.msra.mxu0 %v805
    %1647 = vmatmul.bf16.gmra.mxu0 %v1595
    %v1648 = vpop.f32.mrf.mxu0
    %v1649 = vadd.f32 0.0, %v1648
    %v1650 = vpop.f32.mrf.mxu0
    %v1651 = vadd.f32 0.0, %v1650
    %1652 = vdwg.mxu0
    %v1653 = vadd.f32 %v1583, %v1607
    %v1654 = vadd.f32 %v1584, %v1621
    %v1655 = vadd.f32 %v1585, %v1635
    %v1656 = vadd.f32 %v1586, %v1649
    %v1657 = vadd.f32 %v1587, %v1609
    %v1658 = vadd.f32 %v1588, %v1623
    %v1659 = vadd.f32 %v1589, %v1637
    %v1660 = vadd.f32 %v1590, %v1651
    %v1661 = vmul.f32 %v1653, 0.5
    %v1662 = vmul.f32 %v1657, 0.5
    %v1663 = vtanh.pop %v1661
    %v1664 = vtanh.pop %v1662
    %v1665 = vmul.f32 %v1663, 0.5
    %v1666 = vmul.f32 %v1664, 0.5
    %v1667 = vadd.f32 %v1665, 0.5
    %v1668 = vadd.f32 %v1666, 0.5
    %v1669 = vmul.f32 %v1654, 0.5
    %v1670 = vmul.f32 %v1658, 0.5
    %v1671 = vtanh.pop %v1669
    %v1672 = vtanh.pop %v1670
    %v1673 = vmul.f32 %v1671, 0.5
    %v1674 = vmul.f32 %v1672, 0.5
    %v1675 = vadd.f32 %v1673, 0.5
    %v1676 = vadd.f32 %v1674, 0.5
    %v1677 = vtanh.pop %v1655
    %v1678 = vtanh.pop %v1659
    %v1679 = vmul.f32 %v1656, 0.5
    %v1680 = vmul.f32 %v1660, 0.5
    %v1681 = vtanh.pop %v1679
    %v1682 = vtanh.pop %v1680
    %v1683 = vmul.f32 %v1681, 0.5
    %v1684 = vmul.f32 %v1682, 0.5
    %v1685 = vadd.f32 %v1683, 0.5
    %v1686 = vadd.f32 %v1684, 0.5
    %v1687 = vmul.f32 %v1675, %v1569
    %v1688 = vmul.f32 %v1676, %v1570
    %v1689 = vmul.f32 %v1667, %v1677
    %v1690 = vmul.f32 %v1668, %v1678
    %v1691 = vadd.f32 %v1687, %v1689
    %v1692 = vadd.f32 %v1688, %v1690
    %v1693 = vtanh.pop %v1691
    %v1694 = vtanh.pop %v1692
    %v1695 = vmul.f32 %v1685, %v1693
    %v1696 = vmul.f32 %v1686, %v1694
    %v1697 = vpack.c.bf16 %v1695, %v1695
    %v1698 = vpack.c.bf16 %v1696, %v1696
    %s1699 = scalar_lea.vmem [#allocation16], 48
    %1700 = vst [vmem:[%s1699] sm:$0xf] %v1697
    %1701 = vst [vmem:[%s1699 + $0x4] sm:$0xf] %v1698
    %s1702 = smul.u32 14, 4
    %s1703 = smul.addr %s1702, 8
    %s1704 = scalar_lea.vmem [#allocation2], %s1703
    %v1705 = vld [vmem:[%s1704] sm:$0xff]
    %v1706 = vld [vmem:[%s1704 + $0x8] sm:$0xff]
    %v1707 = vld [vmem:[%s1704 + $0x10] sm:$0xff]
    %v1708 = vld [vmem:[%s1704 + $0x18] sm:$0xff]
    %v1709 = vld [vmem:[%s1704 + $0x20] sm:$0xff]
    %v1710 = vld [vmem:[%s1704 + $0x28] sm:$0xff]
    %v1711 = vld [vmem:[%s1704 + $0x30] sm:$0xff]
    %v1712 = vld [vmem:[%s1704 + $0x38] sm:$0xff]
    %v1715 = vunpack.c.l.b16 %v1697
    %v1716 = vunpack.c.l.b16 %v1698
    %v1717 = vpack.c.b16 %v1716, %v1715
    %1719 = vmatpush.bf16.msra.mxu0 %v830
    %1720 = vmatpush.bf16.msra.mxu0 %v826
    %1721 = vmatpush.bf16.msra.mxu0 %v822
    %1722 = vmatpush.bf16.msra.mxu0 %v818
    %1723 = vmatpush.bf16.msra.mxu0 %v814
    %1724 = vmatpush.bf16.msra.mxu0 %v810
    %1725 = vmatpush.bf16.msra.mxu0 %v806
    %1726 = vmatpush.bf16.msra.mxu0 %v802
    %1727 = vmatmul.bf16.gmra.mxu0 %v1717
    %v1728 = vpop.f32.mrf.mxu0
    %v1729 = vadd.f32 0.0, %v1728
    %v1730 = vpop.f32.mrf.mxu0
    %v1731 = vadd.f32 0.0, %v1730
    %1732 = vdwg.mxu0
    %1733 = vmatpush.bf16.msra.mxu0 %v831
    %1734 = vmatpush.bf16.msra.mxu0 %v827
    %1735 = vmatpush.bf16.msra.mxu0 %v823
    %1736 = vmatpush.bf16.msra.mxu0 %v819
    %1737 = vmatpush.bf16.msra.mxu0 %v815
    %1738 = vmatpush.bf16.msra.mxu0 %v811
    %1739 = vmatpush.bf16.msra.mxu0 %v807
    %1740 = vmatpush.bf16.msra.mxu0 %v803
    %1741 = vmatmul.bf16.gmra.mxu0 %v1717
    %v1742 = vpop.f32.mrf.mxu0
    %v1743 = vadd.f32 0.0, %v1742
    %v1744 = vpop.f32.mrf.mxu0
    %v1745 = vadd.f32 0.0, %v1744
    %1746 = vdwg.mxu0
    %1747 = vmatpush.bf16.msra.mxu0 %v832
    %1748 = vmatpush.bf16.msra.mxu0 %v828
    %1749 = vmatpush.bf16.msra.mxu0 %v824
    %1750 = vmatpush.bf16.msra.mxu0 %v820
    %1751 = vmatpush.bf16.msra.mxu0 %v816
    %1752 = vmatpush.bf16.msra.mxu0 %v812
    %1753 = vmatpush.bf16.msra.mxu0 %v808
    %1754 = vmatpush.bf16.msra.mxu0 %v804
    %1755 = vmatmul.bf16.gmra.mxu0 %v1717
    %v1756 = vpop.f32.mrf.mxu0
    %v1757 = vadd.f32 0.0, %v1756
    %v1758 = vpop.f32.mrf.mxu0
    %v1759 = vadd.f32 0.0, %v1758
    %1760 = vdwg.mxu0
    %1761 = vmatpush.bf16.msra.mxu0 %v833
    %1762 = vmatpush.bf16.msra.mxu0 %v829
    %1763 = vmatpush.bf16.msra.mxu0 %v825
    %1764 = vmatpush.bf16.msra.mxu0 %v821
    %1765 = vmatpush.bf16.msra.mxu0 %v817
    %1766 = vmatpush.bf16.msra.mxu0 %v813
    %1767 = vmatpush.bf16.msra.mxu0 %v809
    %1768 = vmatpush.bf16.msra.mxu0 %v805
    %1769 = vmatmul.bf16.gmra.mxu0 %v1717
    %v1770 = vpop.f32.mrf.mxu0
    %v1771 = vadd.f32 0.0, %v1770
    %v1772 = vpop.f32.mrf.mxu0
    %v1773 = vadd.f32 0.0, %v1772
    %1774 = vdwg.mxu0
    %v1775 = vadd.f32 %v1705, %v1729
    %v1776 = vadd.f32 %v1706, %v1743
    %v1777 = vadd.f32 %v1707, %v1757
    %v1778 = vadd.f32 %v1708, %v1771
    %v1779 = vadd.f32 %v1709, %v1731
    %v1780 = vadd.f32 %v1710, %v1745
    %v1781 = vadd.f32 %v1711, %v1759
    %v1782 = vadd.f32 %v1712, %v1773
    %v1783 = vmul.f32 %v1775, 0.5
    %v1784 = vmul.f32 %v1779, 0.5
    %v1785 = vtanh.pop %v1783
    %v1786 = vtanh.pop %v1784
    %v1787 = vmul.f32 %v1785, 0.5
    %v1788 = vmul.f32 %v1786, 0.5
    %v1789 = vadd.f32 %v1787, 0.5
    %v1790 = vadd.f32 %v1788, 0.5
    %v1791 = vmul.f32 %v1776, 0.5
    %v1792 = vmul.f32 %v1780, 0.5
    %v1793 = vtanh.pop %v1791
    %v1794 = vtanh.pop %v1792
    %v1795 = vmul.f32 %v1793, 0.5
    %v1796 = vmul.f32 %v1794, 0.5
    %v1797 = vadd.f32 %v1795, 0.5
    %v1798 = vadd.f32 %v1796, 0.5
    %v1799 = vtanh.pop %v1777
    %v1800 = vtanh.pop %v1781
    %v1801 = vmul.f32 %v1778, 0.5
    %v1802 = vmul.f32 %v1782, 0.5
    %v1803 = vtanh.pop %v1801
    %v1804 = vtanh.pop %v1802
    %v1805 = vmul.f32 %v1803, 0.5
    %v1806 = vmul.f32 %v1804, 0.5
    %v1807 = vadd.f32 %v1805, 0.5
    %v1808 = vadd.f32 %v1806, 0.5
    %v1809 = vmul.f32 %v1797, %v1691
    %v1810 = vmul.f32 %v1798, %v1692
    %v1811 = vmul.f32 %v1789, %v1799
    %v1812 = vmul.f32 %v1790, %v1800
    %v1813 = vadd.f32 %v1809, %v1811
    %v1814 = vadd.f32 %v1810, %v1812
    %v1815 = vtanh.pop %v1813
    %v1816 = vtanh.pop %v1814
    %v1817 = vmul.f32 %v1807, %v1815
    %v1818 = vmul.f32 %v1808, %v1816
    %v1819 = vpack.c.bf16 %v1817, %v1817
    %v1820 = vpack.c.bf16 %v1818, %v1818
    %s1821 = scalar_lea.vmem [#allocation16], 56
    %1822 = vst [vmem:[%s1821] sm:$0xf] %v1819
    %1823 = vst [vmem:[%s1821 + $0x4] sm:$0xf] %v1820
    %1824 = vst [vmem:[#allocation3] sm:$0xff] %v1817
    %1825 = vst [vmem:[#allocation3 + $0x8] sm:$0xff] %v1818
    %1826 = vst [vmem:[#allocation4] sm:$0xff] %v1813
    %1827 = vst [vmem:[#allocation4 + $0x8] sm:$0xff] %v1814
    // Predicated region
    $region54: #{tpu_custom_call.1} parent=1 // pred_check
      %p1828 = pneg %p120
    $region55: #{tpu_custom_call.1} parent=1 // pred_check_branch
      %1830 = sbr.rel (%p1828) target = $region57
    $region56: #{tpu_custom_call.1} parent=1 // pred_region
      %1831 = vst [vmem:[#allocation17] sm:$0xff] %v1817
      %1832 = vst [vmem:[#allocation17 + $0x8] sm:$0xff] %v1818
      %1833 = vst [vmem:[#allocation19] sm:$0xff] %v1813
      %1834 = vst [vmem:[#allocation19 + $0x8] sm:$0xff] %v1814
    $region57: #{tpu_custom_call.1} parent=1 // pred_fallthru
      _
    // Predicated region
    $region58: #{tpu_custom_call.1} parent=1 // pred_check
      _
    $region59: #{tpu_custom_call.1} parent=1 // pred_check_branch
      %1836 = sbr.rel (0) target = $region61
    $region60: #{tpu_custom_call.1} parent=1 // pred_region
      %1838 = vsyncadd [#allocation7], 0
      %s1839 = sshll.u32 [#allocation16], 4
      %s1840 = int_to_ptr.vmem [resolvable:$true] %s1839
      %s1841 = sshll.u32 %s6, 4
      %s1842 = int_to_ptr.hbm [resolvable:$true] %s1841
      %1847 = dma.vmem_to_hbm [thread:$0]  %s1840, 1024, %s1842, [#allocation7], 64, 64, 4
    $region61: #{tpu_custom_call.1} parent=1 // pred_fallthru
      _
    // Predicated region
    $region62: #{tpu_custom_call.1} parent=1 // pred_check
      _
    $region63: #{tpu_custom_call.1} parent=1 // pred_check_branch
      %1849 = sbr.rel (0) target = $region65
    $region64: #{tpu_custom_call.1} parent=1 // pred_region
      %1851 = vsyncadd [#allocation18], 0
      %s1852 = sshll.u32 [#allocation17], 4
      %s1853 = int_to_ptr.vmem [resolvable:$true] %s1852
      %s1854 = sshll.u32 %s7, 4
      %s1855 = int_to_ptr.hbm [resolvable:$true] %s1854
      %1860 = dma.vmem_to_hbm [thread:$0]  %s1853, 256, %s1855, [#allocation18], 128, 128, 8
    $region65: #{tpu_custom_call.1} parent=1 // pred_fallthru
      _
    // Predicated region
    $region66: #{tpu_custom_call.1} parent=1 // pred_check
      _
    $region67: #{tpu_custom_call.1} parent=1 // pred_check_branch
      %1862 = sbr.rel (0) target = $region69
    $region68: #{tpu_custom_call.1} parent=1 // pred_region
      %1864 = vsyncadd [#allocation18], 0
      %s1865 = sshll.u32 [#allocation19], 4
      %s1866 = int_to_ptr.vmem [resolvable:$true] %s1865
      %s1867 = sshll.u32 %s8, 4
      %s1868 = int_to_ptr.hbm [resolvable:$true] %s1867
      %1873 = dma.vmem_to_hbm [thread:$0]  %s1866, 256, %s1868, [#allocation18], 128, 128, 8
    $region69: #{tpu_custom_call.1} parent=1 // pred_fallthru
      _
    // Predicated region
    $region70: #{tpu_custom_call.1} parent=1 // pred_check
      _
    $region71: #{tpu_custom_call.1} parent=1 // pred_check_branch
      %1875 = sbr.rel (0) target = $region73
    $region72: #{tpu_custom_call.1} parent=1 // pred_region
      %1877 = dma.done [#allocation7], 1024
    $region73: #{tpu_custom_call.1} parent=1 // pred_fallthru
      _
    // Predicated region
    $region74: #{tpu_custom_call.1} parent=1 // pred_check
      _
    $region75: #{tpu_custom_call.1} parent=1 // pred_check_branch
      %1879 = sbr.rel (0) target = $region77
    $region76: #{tpu_custom_call.1} parent=1 // pred_region
      %1881 = dma.done [#allocation18], 256
    $region77: #{tpu_custom_call.1} parent=1 // pred_fallthru
      _
    // Predicated region
    $region78: #{tpu_custom_call.1} parent=1 // pred_check
      _
    $region79: #{tpu_custom_call.1} parent=1 // pred_check_branch
      %1883 = sbr.rel (0) target = $region81
    $region80: #{tpu_custom_call.1} parent=1 // pred_region
      %1885 = dma.done [#allocation18], 256
    $region81: #{tpu_custom_call.1} parent=1 // pred_fallthru
      _
    %1886 = vsyncpa [#allocation6], 1
    %1887 = vsyncpa [#allocation9], 1
    %1888 = vsyncpa [#allocation12], 1
    %1889 = vsyncpa [#allocation15], 1
    %1890 = vsyncpa [#allocation7], 1
    %1891 = vsyncpa [#allocation18], 1

// kernel: tpu_custom_call.1
$region0: #{tpu_custom_call.1}
  #allocation0 [shape = 'u32[]', space=smem, size = 0x4, offset = 0x4, fixed_abs, tag = 'smem constant byte address 0x4 - core index']
  #allocation1 [shape = 'u32[72,128]{1,0:T(1,128)}', space=vmem, size = 0x9000, scoped, tag = 'internal scratch']
  #allocation2 [shape = 'f32[128,512]{1,0:T(8,128)}', space=vmem, size = 0x40000, scoped, tag = 'scratch operand']
  #allocation3 [shape = 'f32[16,128]{1,0:T(8,128)}', space=vmem, size = 0x2000, scoped, tag = 'scratch operand']
  #allocation4 [shape = 'f32[16,128]{1,0:T(8,128)}', space=vmem, size = 0x2000, scoped, tag = 'scratch operand']
  %s0 = inlined_call_operand.hbm [shape: bf16[128,128], index: 0, kind: input, shape index: {}]
  %s1 = inlined_call_operand.hbm [shape: bf16[128,512], index: 1, kind: input, shape index: {}]
  %s2 = inlined_call_operand.hbm [shape: bf16[128,512], index: 2, kind: input, shape index: {}]
  %s3 = inlined_call_operand.hbm [shape: f32[1,512], index: 3, kind: input, shape index: {}]
  %s4 = inlined_call_operand.hbm [shape: f32[16,128], index: 4, kind: input, shape index: {}]
  %s5 = inlined_call_operand.hbm [shape: f32[16,128], index: 5, kind: input, shape index: {}]
  %s6 = inlined_call_operand.hbm [shape: bf16[128,128], index: 6, kind: output, shape index: {0}]
  %s7 = inlined_call_operand.hbm [shape: f32[16,128], index: 7, kind: output, shape index: {1}]
  %s8 = inlined_call_operand.hbm [shape: f32[16,128], index: 8, kind: output, shape index: {2}]
  %9 = xla_tuple %s6, %s7, %s8
  %s10 = sld [smem:[#allocation0]]
  $region82: #{tpu_custom_call.1} parent=0
    _
  %s12 = ssub.s32 1, %s10
  %s13 = scalar_select 0, %s12, %s10
  $region1: #{tpu_custom_call.1} parent=0
    #allocation5 [shape = 'u8[32768]{0}', space=vmem, size = 0x8000, scoped, tag = 'input window, operand 0, single buffered']
    #allocation6 [shape = 's32[1]{0}', space=sflag, size = 0x4, scoped, tag = 'scoped memory for tpu_custom_call.1']
    #allocation7 [shape = 's32[1]{0}', space=sflag, size = 0x4, scoped, tag = 'scoped memory for tpu_custom_call.1']
    #allocation8 [shape = 'u8[131072]{0}', space=vmem, size = 0x20000, scoped, tag = 'input window, operand 1, single buffered']
    #allocation9 [shape = 's32[1]{0}', space=sflag, size = 0x4, scoped, tag = 'scoped memory for tpu_custom_call.1']
    #allocation10 [shape = 'u8[131072]{0}', space=vmem, size = 0x20000, scoped, tag = 'input window, operand 2, single buffered']
    #allocation11 [shape = 'u8[2048]{0}', space=vmem, size = 0x800, scoped, tag = 'input window, operand 3, single buffered']
    #allocation12 [shape = 's32[1]{0}', space=sflag, size = 0x4, scoped, tag = 'scoped memory for tpu_custom_call.1']
    #allocation13 [shape = 'u8[8192]{0}', space=vmem, size = 0x2000, scoped, tag = 'input window, operand 4, single buffered']
    #allocation14 [shape = 'u8[8192]{0}', space=vmem, size = 0x2000, scoped, tag = 'input window, operand 5, single buffered']
    #allocation15 [shape = 's32[1]{0}', space=sflag, size = 0x4, scoped, tag = 'scoped memory for tpu_custom_call.1']
    #allocation16 [shape = 'u8[32768]{0}', space=vmem, size = 0x8000, scoped, tag = 'output window, operand 0, single buffered']
    #allocation17 [shape = 'u8[8192]{0}', space=vmem, size = 0x2000, scoped, tag = 'output window, operand 1, single buffered']
    #allocation18 [shape = 's32[1]{0}', space=sflag, size = 0x4, scoped, tag = 'scoped memory for tpu_custom_call.1']
    #allocation19 [shape = 'u8[8192]{0}', space=vmem, size = 0x2000, scoped, tag = 'output window, operand 2, single buffered']
    %14 = vsyncpa [#allocation6], 0
    %15 = vsyncpa [#allocation9], 0
    %16 = vsyncpa [#allocation12], 0
    %17 = vsyncpa [#allocation15], 0
    %18 = vsyncpa [#allocation7], 0
    %19 = vsyncpa [#allocation18], 0
    // Predicated region
    $region2: #{tpu_custom_call.1} parent=1 // pred_check
      _
    $region3: #{tpu_custom_call.1} parent=1 // pred_check_branch
      %21 = sbr.rel (0) target = $region5
    $region4: #{tpu_custom_call.1} parent=1 // pred_region
      %23 = vsyncadd [#allocation6], 0
      %s24 = sshll.u32 %s0, 4
      %s25 = int_to_ptr.hbm [resolvable:$true] %s24
      %s26 = sshll.u32 [#allocation5], 4
      %s27 = int_to_ptr.vmem [resolvable:$true] %s26
      %32 = dma.hbm_to_vmem [thread:$0]  %s25, 1024, %s27, [#allocation6], 64, 64, 4
    $region5: #{tpu_custom_call.1} parent=1 // pred_fallthru
      _
    // Predicated region
    $region6: #{tpu_custom_call.1} parent=1 // pred_check
      _
    $region7: #{tpu_custom_call.1} parent=1 // pred_check_branch
      %34 = sbr.rel (0) target = $region9
    $region8: #{tpu_custom_call.1} parent=1 // pred_region
      %36 = vsyncadd [#allocation9], 0
      %s37 = sshll.u32 %s1, 4
      %s38 = int_to_ptr.hbm [resolvable:$true] %s37
      %s39 = sshll.u32 [#allocation8], 4
      %s40 = int_to_ptr.vmem [resolvable:$true] %s39
      %45 = dma.hbm_to_vmem [thread:$0]  %s38, 4096, %s40, [#allocation9], 256, 256, 16
    $region9: #{tpu_custom_call.1} parent=1 // pred_fallthru
      _
    // Predicated region
    $region10: #{tpu_custom_call.1} parent=1 // pred_check
      _
    $region11: #{tpu_custom_call.1} parent=1 // pred_check_branch
      %47 = sbr.rel (0) target = $region13
    $region12: #{tpu_custom_call.1} parent=1 // pred_region
      %49 = vsyncadd [#allocation9], 0
      %s50 = sshll.u32 %s2, 4
      %s51 = int_to_ptr.hbm [resolvable:$true] %s50
      %s52 = sshll.u32 [#allocation10], 4
      %s53 = int_to_ptr.vmem [resolvable:$true] %s52
      %58 = dma.hbm_to_vmem [thread:$0]  %s51, 4096, %s53, [#allocation9], 256, 256, 16
    $region13: #{tpu_custom_call.1} parent=1 // pred_fallthru
      _
    // Predicated region
    $region14: #{tpu_custom_call.1} parent=1 // pred_check
      _
    $region15: #{tpu_custom_call.1} parent=1 // pred_check_branch
      %60 = sbr.rel (0) target = $region17
    $region16: #{tpu_custom_call.1} parent=1 // pred_region
      %62 = vsyncadd [#allocation12], 0
      %s64 = sshll.u32 %s3, 4
      %s65 = int_to_ptr.hbm [resolvable:$true] %s64
      %s66 = sshll.u32 [#allocation11], 4
      %s67 = int_to_ptr.vmem [resolvable:$true] %s66
      %69 = dma.hbm_to_vmem [thread:$0]  %s65, 64, %s67, [#allocation12]
    $region17: #{tpu_custom_call.1} parent=1 // pred_fallthru
      _
    // Predicated region
    $region18: #{tpu_custom_call.1} parent=1 // pred_check
      _
    $region19: #{tpu_custom_call.1} parent=1 // pred_check_branch
      %71 = sbr.rel (0) target = $region21
    $region20: #{tpu_custom_call.1} parent=1 // pred_region
      %73 = vsyncadd [#allocation12], 0
      %s74 = sshll.u32 %s4, 4
      %s75 = int_to_ptr.hbm [resolvable:$true] %s74
      %s76 = sshll.u32 [#allocation13], 4
      %s77 = int_to_ptr.vmem [resolvable:$true] %s76
      %82 = dma.hbm_to_vmem [thread:$0]  %s75, 256, %s77, [#allocation12], 128, 128, 8
    $region21: #{tpu_custom_call.1} parent=1 // pred_fallthru
      _
    // Predicated region
    $region22: #{tpu_custom_call.1} parent=1 // pred_check
      _
    $region23: #{tpu_custom_call.1} parent=1 // pred_check_branch
      %84 = sbr.rel (0) target = $region25
    $region24: #{tpu_custom_call.1} parent=1 // pred_region
      %86 = vsyncadd [#allocation15], 0
      %s87 = sshll.u32 %s5, 4
      %s88 = int_to_ptr.hbm [resolvable:$true] %s87
      %s89 = sshll.u32 [#allocation14], 4
      %s90 = int_to_ptr.vmem [resolvable:$true] %s89
      %95 = dma.hbm_to_vmem [thread:$0]  %s88, 256, %s90, [#allocation15], 128, 128, 8
    $region25: #{tpu_custom_call.1} parent=1 // pred_fallthru
      _
    // Predicated region
    $region26: #{tpu_custom_call.1} parent=1 // pred_check
      _
    $region27: #{tpu_custom_call.1} parent=1 // pred_check_branch
      %97 = sbr.rel (0) target = $region29
    $region28: #{tpu_custom_call.1} parent=1 // pred_region
      %99 = dma.done [#allocation6], 1024
    $region29: #{tpu_custom_call.1} parent=1 // pred_fallthru
      _
    // Predicated region
    $region30: #{tpu_custom_call.1} parent=1 // pred_check
      _
    $region31: #{tpu_custom_call.1} parent=1 // pred_check_branch
      %101 = sbr.rel (0) target = $region33
    $region32: #{tpu_custom_call.1} parent=1 // pred_region
      %103 = dma.done [#allocation9], 4096
    $region33: #{tpu_custom_call.1} parent=1 // pred_fallthru
      _
    // Predicated region
    $region34: #{tpu_custom_call.1} parent=1 // pred_check
      _
    $region35: #{tpu_custom_call.1} parent=1 // pred_check_branch
      %105 = sbr.rel (0) target = $region37
    $region36: #{tpu_custom_call.1} parent=1 // pred_region
      %107 = dma.done [#allocation9], 4096
    $region37: #{tpu_custom_call.1} parent=1 // pred_fallthru
      _
    // Predicated region
    $region38: #{tpu_custom_call.1} parent=1 // pred_check
      _
    $region39: #{tpu_custom_call.1} parent=1 // pred_check_branch
      %109 = sbr.rel (0) target = $region41
    $region40: #{tpu_custom_call.1} parent=1 // pred_region
      %111 = dma.done [#allocation12], 64
    $region41: #{tpu_custom_call.1} parent=1 // pred_fallthru
      _
    // Predicated region
    $region42: #{tpu_custom_call.1} parent=1 // pred_check
      _
    $region43: #{tpu_custom_call.1} parent=1 // pred_check_branch
      %113 = sbr.rel (0) target = $region45
    $region44: #{tpu_custom_call.1} parent=1 // pred_region
      %115 = dma.done [#allocation12], 256
    $region45: #{tpu_custom_call.1} parent=1 // pred_fallthru
      _
    // Predicated region
    $region46: #{tpu_custom_call.1} parent=1 // pred_check
      _
    $region47: #{tpu_custom_call.1} parent=1 // pred_check_branch
      %117 = sbr.rel (0) target = $region49
    $region48: #{tpu_custom_call.1} parent=1 // pred_region
      %119 = dma.done [#allocation15], 256
    $region49: #{tpu_custom_call.1} parent=1 // pred_fallthru
      _
    %p120 = scmp.eq.s32.totalorder 0, 0
    // Predicated region
    $region50: #{tpu_custom_call.1} parent=1 // pred_check
      %p121 = pneg %p120
    $region51: #{tpu_custom_call.1} parent=1 // pred_check_branch
      %123 = sbr.rel (%p121) target = $region53
    $region52: #{tpu_custom_call.1} parent=1 // pred_region
      %v124 = vld [vmem:[#allocation13] sm:$0xff]
      %v125 = vld [vmem:[#allocation13 + $0x8] sm:$0xff]
      %126 = vst [vmem:[#allocation3] sm:$0xff] %v124
      %127 = vst [vmem:[#allocation3 + $0x8] sm:$0xff] %v125
      %v128 = vld [vmem:[#allocation14] sm:$0xff]
      %v129 = vld [vmem:[#allocation14 + $0x8] sm:$0xff]
      %130 = vst [vmem:[#allocation4] sm:$0xff] %v128
      %131 = vst [vmem:[#allocation4 + $0x8] sm:$0xff] %v129
    $region53: #{tpu_custom_call.1} parent=1 // pred_fallthru
      _
    %v132 = vld [vmem:[#allocation5] sm:$0xf]
    %v133 = vld [vmem:[#allocation5 + $0x4] sm:$0xf]
    %v134 = vld [vmem:[#allocation5 + $0x8] sm:$0xf]
    %v135 = vld [vmem:[#allocation5 + $0xc] sm:$0xf]
    %v136 = vld [vmem:[#allocation5 + $0x10] sm:$0xf]
    %v137 = vld [vmem:[#allocation5 + $0x14] sm:$0xf]
    %v138 = vld [vmem:[#allocation5 + $0x18] sm:$0xf]
    %v139 = vld [vmem:[#allocation5 + $0x1c] sm:$0xf]
    %v140 = vld [vmem:[#allocation5 + $0x20] sm:$0xf]
    %v141 = vld [vmem:[#allocation5 + $0x24] sm:$0xf]
    %v142 = vld [vmem:[#allocation5 + $0x28] sm:$0xf]
    %v143 = vld [vmem:[#allocation5 + $0x2c] sm:$0xf]
    %v144 = vld [vmem:[#allocation5 + $0x30] sm:$0xf]
    %v145 = vld [vmem:[#allocation5 + $0x34] sm:$0xf]
    %v146 = vld [vmem:[#allocation5 + $0x38] sm:$0xf]
    %v147 = vld [vmem:[#allocation5 + $0x3c] sm:$0xf]
    %v148 = vld [vmem:[#allocation8] sm:$0xff]
    %v149 = vld [vmem:[#allocation8 + $0x8] sm:$0xff]
    %v150 = vld [vmem:[#allocation8 + $0x10] sm:$0xff]
    %v151 = vld [vmem:[#allocation8 + $0x18] sm:$0xff]
    %v152 = vld [vmem:[#allocation8 + $0x20] sm:$0xff]
    %v153 = vld [vmem:[#allocation8 + $0x28] sm:$0xff]
    %v154 = vld [vmem:[#allocation8 + $0x30] sm:$0xff]
    %v155 = vld [vmem:[#allocation8 + $0x38] sm:$0xff]
    %v156 = vld [vmem:[#allocation8 + $0x40] sm:$0xff]
    %v157 = vld [vmem:[#allocation8 + $0x48] sm:$0xff]
    %v158 = vld [vmem:[#allocation8 + $0x50] sm:$0xff]
    %v159 = vld [vmem:[#allocation8 + $0x58] sm:$0xff]
    %v160 = vld [vmem:[#allocation8 + $0x60] sm:$0xff]
    %v161 = vld [vmem:[#allocation8 + $0x68] sm:$0xff]
    %v162 = vld [vmem:[#allocation8 + $0x70] sm:$0xff]
    %v163 = vld [vmem:[#allocation8 + $0x78] sm:$0xff]
    %v164 = vld [vmem:[#allocation8 + $0x80] sm:$0xff]
    %v165 = vld [vmem:[#allocation8 + $0x88] sm:$0xff]
    %v166 = vld [vmem:[#allocation8 + $0x90] sm:$0xff]
    %v167 = vld [vmem:[#allocation8 + $0x98] sm:$0xff]
    %v168 = vld [vmem:[#allocation8 + $0xa0] sm:$0xff]
    %v169 = vld [vmem:[#allocation8 + $0xa8] sm:$0xff]
    %v170 = vld [vmem:[#allocation8 + $0xb0] sm:$0xff]
    %v171 = vld [vmem:[#allocation8 + $0xb8] sm:$0xff]
    %v172 = vld [vmem:[#allocation8 + $0xc0] sm:$0xff]
    %v173 = vld [vmem:[#allocation8 + $0xc8] sm:$0xff]
    %v174 = vld [vmem:[#allocation8 + $0xd0] sm:$0xff]
    %v175 = vld [vmem:[#allocation8 + $0xd8] sm:$0xff]
    %v176 = vld [vmem:[#allocation8 + $0xe0] sm:$0xff]
    %v177 = vld [vmem:[#allocation8 + $0xe8] sm:$0xff]
    %v178 = vld [vmem:[#allocation8 + $0xf0] sm:$0xff]
    %v179 = vld [vmem:[#allocation8 + $0xf8] sm:$0xff]
    %v180 = vld [vmem:[#allocation11] sm:$0xf]
    %v182 = vperm.slane %v180, 0
    %v183 = vperm.slane %v180, 1
    %v184 = vperm.slane %v180, 2
    %v185 = vperm.slane %v180, 3
    %v206 = vunpack.c.l.b16 %v132
    %v207 = vunpack.c.l.b16 %v133
    %v208 = vunpack.c.l.b16 %v134
    %v209 = vunpack.c.l.b16 %v135
    %v210 = vunpack.c.l.b16 %v136
    %v211 = vunpack.c.l.b16 %v137
    %v212 = vunpack.c.l.b16 %v138
    %v213 = vunpack.c.l.b16 %v139
    %v214 = vunpack.c.l.b16 %v140
    %v215 = vunpack.c.l.b16 %v141
    %v216 = vunpack.c.l.b16 %v142
    %v217 = vunpack.c.l.b16 %v143
    %v218 = vunpack.c.l.b16 %v144
    %v219 = vunpack.c.l.b16 %v145
    %v220 = vunpack.c.l.b16 %v146
    %v221 = vunpack.c.l.b16 %v147
    %v222 = vpack.c.b16 %v207, %v206
    %v223 = vpack.c.b16 %v209, %v208
    %v224 = vpack.c.b16 %v211, %v210
    %v225 = vpack.c.b16 %v213, %v212
    %v226 = vpack.c.b16 %v215, %v214
    %v227 = vpack.c.b16 %v217, %v216
    %v228 = vpack.c.b16 %v219, %v218
    %v229 = vpack.c.b16 %v221, %v220
    %v270 = vunpack.c.l.b16 %v148
    %v271 = vunpack.c.h.b16 %v148
    %v272 = vunpack.c.l.b16 %v149
    %v273 = vunpack.c.h.b16 %v149
    %v274 = vunpack.c.l.b16 %v150
    %v275 = vunpack.c.h.b16 %v150
    %v276 = vunpack.c.l.b16 %v151
    %v277 = vunpack.c.h.b16 %v151
    %v278 = vunpack.c.l.b16 %v152
    %v279 = vunpack.c.h.b16 %v152
    %v280 = vunpack.c.l.b16 %v153
    %v281 = vunpack.c.h.b16 %v153
    %v282 = vunpack.c.l.b16 %v154
    %v283 = vunpack.c.h.b16 %v154
    %v284 = vunpack.c.l.b16 %v155
    %v285 = vunpack.c.h.b16 %v155
    %v286 = vunpack.c.l.b16 %v156
    %v287 = vunpack.c.h.b16 %v156
    %v288 = vunpack.c.l.b16 %v157
    %v289 = vunpack.c.h.b16 %v157
    %v290 = vunpack.c.l.b16 %v158
    %v291 = vunpack.c.h.b16 %v158
    %v292 = vunpack.c.l.b16 %v159
    %v293 = vunpack.c.h.b16 %v159
    %v294 = vunpack.c.l.b16 %v160
    %v295 = vunpack.c.h.b16 %v160
    %v296 = vunpack.c.l.b16 %v161
    %v297 = vunpack.c.h.b16 %v161
    %v298 = vunpack.c.l.b16 %v162
    %v299 = vunpack.c.h.b16 %v162
    %v300 = vunpack.c.l.b16 %v163
    %v301 = vunpack.c.h.b16 %v163
    %v302 = vunpack.c.l.b16 %v164
    %v303 = vunpack.c.h.b16 %v164
    %v304 = vunpack.c.l.b16 %v165
    %v305 = vunpack.c.h.b16 %v165
    %v306 = vunpack.c.l.b16 %v166
    %v307 = vunpack.c.h.b16 %v166
    %v308 = vunpack.c.l.b16 %v167
    %v309 = vunpack.c.h.b16 %v167
    %v310 = vunpack.c.l.b16 %v168
    %v311 = vunpack.c.h.b16 %v168
    %v312 = vunpack.c.l.b16 %v169
    %v313 = vunpack.c.h.b16 %v169
    %v314 = vunpack.c.l.b16 %v170
    %v315 = vunpack.c.h.b16 %v170
    %v316 = vunpack.c.l.b16 %v171
    %v317 = vunpack.c.h.b16 %v171
    %v318 = vunpack.c.l.b16 %v172
    %v319 = vunpack.c.h.b16 %v172
    %v320 = vunpack.c.l.b16 %v173
    %v321 = vunpack.c.h.b16 %v173
    %v322 = vunpack.c.l.b16 %v174
    %v323 = vunpack.c.h.b16 %v174
    %v324 = vunpack.c.l.b16 %v175
    %v325 = vunpack.c.h.b16 %v175
    %v326 = vunpack.c.l.b16 %v176
    %v327 = vunpack.c.h.b16 %v176
    %v328 = vunpack.c.l.b16 %v177
    %v329 = vunpack.c.h.b16 %v177
    %v330 = vunpack.c.l.b16 %v178
    %v331 = vunpack.c.h.b16 %v178
    %v332 = vunpack.c.l.b16 %v179
    %v333 = vunpack.c.h.b16 %v179
    %v334 = vpack.c.b16 %v274, %v270
    %v335 = vpack.c.b16 %v275, %v271
    %v336 = vpack.c.b16 %v276, %v272
    %v337 = vpack.c.b16 %v277, %v273
    %v338 = vpack.c.b16 %v282, %v278
    %v339 = vpack.c.b16 %v283, %v279
    %v340 = vpack.c.b16 %v284, %v280
    %v341 = vpack.c.b16 %v285, %v281
    %v342 = vpack.c.b16 %v290, %v286
    %v343 = vpack.c.b16 %v291, %v287
    %v344 = vpack.c.b16 %v292, %v288
    %v345 = vpack.c.b16 %v293, %v289
    %v346 = vpack.c.b16 %v298, %v294
    %v347 = vpack.c.b16 %v299, %v295
    %v348 = vpack.c.b16 %v300, %v296
    %v349 = vpack.c.b16 %v301, %v297
    %v350 = vpack.c.b16 %v306, %v302
    %v351 = vpack.c.b16 %v307, %v303
    %v352 = vpack.c.b16 %v308, %v304
    %v353 = vpack.c.b16 %v309, %v305
    %v354 = vpack.c.b16 %v314, %v310
    %v355 = vpack.c.b16 %v315, %v311
    %v356 = vpack.c.b16 %v316, %v312
    %v357 = vpack.c.b16 %v317, %v313
    %v358 = vpack.c.b16 %v322, %v318
    %v359 = vpack.c.b16 %v323, %v319
    %v360 = vpack.c.b16 %v324, %v320
    %v361 = vpack.c.b16 %v325, %v321
    %v362 = vpack.c.b16 %v330, %v326
    %v363 = vpack.c.b16 %v331, %v327
    %v364 = vpack.c.b16 %v332, %v328
    %v365 = vpack.c.b16 %v333, %v329
    %398 = vmatpush.bf16.msra.mxu0 %v362
    %399 = vmatpush.bf16.msra.mxu0 %v358
    %400 = vmatpush.bf16.msra.mxu0 %v354
    %401 = vmatpush.bf16.msra.mxu0 %v350
    %402 = vmatpush.bf16.msra.mxu0 %v346
    %403 = vmatpush.bf16.msra.mxu0 %v342
    %404 = vmatpush.bf16.msra.mxu0 %v338
    %405 = vmatpush.bf16.msra.mxu0 %v334
    %406 = vmatmul.bf16.gmra.mxu0 %v222
    %v407 = vpop.f32.mrf.mxu0
    %v408 = vadd.f32 %v182, %v407
    %v409 = vpop.f32.mrf.mxu0
    %v410 = vadd.f32 %v182, %v409
    %411 = vmatmul.bf16.gmra.mxu0 %v223
    %v412 = vpop.f32.mrf.mxu0
    %v413 = vadd.f32 %v182, %v412
    %v414 = vpop.f32.mrf.mxu0
    %v415 = vadd.f32 %v182, %v414
    %416 = vmatmul.bf16.gmra.mxu0 %v224
    %v417 = vpop.f32.mrf.mxu0
    %v418 = vadd.f32 %v182, %v417
    %v419 = vpop.f32.mrf.mxu0
    %v420 = vadd.f32 %v182, %v419
    %421 = vmatmul.bf16.gmra.mxu0 %v225
    %v422 = vpop.f32.mrf.mxu0
    %v423 = vadd.f32 %v182, %v422
    %v424 = vpop.f32.mrf.mxu0
    %v425 = vadd.f32 %v182, %v424
    %426 = vmatmul.bf16.gmra.mxu0 %v226
    %v427 = vpop.f32.mrf.mxu0
    %v428 = vadd.f32 %v182, %v427
    %v429 = vpop.f32.mrf.mxu0
    %v430 = vadd.f32 %v182, %v429
    %431 = vmatmul.bf16.gmra.mxu0 %v227
    %v432 = vpop.f32.mrf.mxu0
    %v433 = vadd.f32 %v182, %v432
    %v434 = vpop.f32.mrf.mxu0
    %v435 = vadd.f32 %v182, %v434
    %436 = vmatmul.bf16.gmra.mxu0 %v228
    %v437 = vpop.f32.mrf.mxu0
    %v438 = vadd.f32 %v182, %v437
    %v439 = vpop.f32.mrf.mxu0
    %v440 = vadd.f32 %v182, %v439
    %441 = vmatmul.bf16.gmra.mxu0 %v229
    %v442 = vpop.f32.mrf.mxu0
    %v443 = vadd.f32 %v182, %v442
    %v444 = vpop.f32.mrf.mxu0
    %v445 = vadd.f32 %v182, %v444
    %446 = vdwg.mxu0
    %447 = vmatpush.bf16.msra.mxu0 %v363
    %448 = vmatpush.bf16.msra.mxu0 %v359
    %449 = vmatpush.bf16.msra.mxu0 %v355
    %450 = vmatpush.bf16.msra.mxu0 %v351
    %451 = vmatpush.bf16.msra.mxu0 %v347
    %452 = vmatpush.bf16.msra.mxu0 %v343
    %453 = vmatpush.bf16.msra.mxu0 %v339
    %454 = vmatpush.bf16.msra.mxu0 %v335
    %455 = vmatmul.bf16.gmra.mxu0 %v222
    %v456 = vpop.f32.mrf.mxu0
    %v457 = vadd.f32 %v183, %v456
    %v458 = vpop.f32.mrf.mxu0
    %v459 = vadd.f32 %v183, %v458
    %460 = vmatmul.bf16.gmra.mxu0 %v223
    %v461 = vpop.f32.mrf.mxu0
    %v462 = vadd.f32 %v183, %v461
    %v463 = vpop.f32.mrf.mxu0
    %v464 = vadd.f32 %v183, %v463
    %465 = vmatmul.bf16.gmra.mxu0 %v224
    %v466 = vpop.f32.mrf.mxu0
    %v467 = vadd.f32 %v183, %v466
    %v468 = vpop.f32.mrf.mxu0
    %v469 = vadd.f32 %v183, %v468
    %470 = vmatmul.bf16.gmra.mxu0 %v225
    %v471 = vpop.f32.mrf.mxu0
    %v472 = vadd.f32 %v183, %v471
    %v473 = vpop.f32.mrf.mxu0
    %v474 = vadd.f32 %v183, %v473
    %475 = vmatmul.bf16.gmra.mxu0 %v226
    %v476 = vpop.f32.mrf.mxu0
    %v477 = vadd.f32 %v183, %v476
    %v478 = vpop.f32.mrf.mxu0
    %v479 = vadd.f32 %v183, %v478
    %480 = vmatmul.bf16.gmra.mxu0 %v227
    %v481 = vpop.f32.mrf.mxu0
    %v482 = vadd.f32 %v183, %v481
    %v483 = vpop.f32.mrf.mxu0
    %v484 = vadd.f32 %v183, %v483
    %485 = vmatmul.bf16.gmra.mxu0 %v228
    %v486 = vpop.f32.mrf.mxu0
    %v487 = vadd.f32 %v183, %v486
    %v488 = vpop.f32.mrf.mxu0
    %v489 = vadd.f32 %v183, %v488
    %490 = vmatmul.bf16.gmra.mxu0 %v229
    %v491 = vpop.f32.mrf.mxu0
    %v492 = vadd.f32 %v183, %v491
    %v493 = vpop.f32.mrf.mxu0
    %v494 = vadd.f32 %v183, %v493
    %495 = vdwg.mxu0
    %496 = vmatpush.bf16.msra.mxu0 %v364
    %497 = vmatpush.bf16.msra.mxu0 %v360
    %498 = vmatpush.bf16.msra.mxu0 %v356
    %499 = vmatpush.bf16.msra.mxu0 %v352
    %500 = vmatpush.bf16.msra.mxu0 %v348
    %501 = vmatpush.bf16.msra.mxu0 %v344
    %502 = vmatpush.bf16.msra.mxu0 %v340
    %503 = vmatpush.bf16.msra.mxu0 %v336
    %504 = vmatmul.bf16.gmra.mxu0 %v222
    %v505 = vpop.f32.mrf.mxu0
    %v506 = vadd.f32 %v184, %v505
    %v507 = vpop.f32.mrf.mxu0
    %v508 = vadd.f32 %v184, %v507
    %509 = vmatmul.bf16.gmra.mxu0 %v223
    %v510 = vpop.f32.mrf.mxu0
    %v511 = vadd.f32 %v184, %v510
    %v512 = vpop.f32.mrf.mxu0
    %v513 = vadd.f32 %v184, %v512
    %514 = vmatmul.bf16.gmra.mxu0 %v224
    %v515 = vpop.f32.mrf.mxu0
    %v516 = vadd.f32 %v184, %v515
    %v517 = vpop.f32.mrf.mxu0
    %v518 = vadd.f32 %v184, %v517
    %519 = vmatmul.bf16.gmra.mxu0 %v225
    %v520 = vpop.f32.mrf.mxu0
    %v521 = vadd.f32 %v184, %v520
    %v522 = vpop.f32.mrf.mxu0
    %v523 = vadd.f32 %v184, %v522
    %524 = vmatmul.bf16.gmra.mxu0 %v226
    %v525 = vpop.f32.mrf.mxu0
    %v526 = vadd.f32 %v184, %v525
    %v527 = vpop.f32.mrf.mxu0
    %v528 = vadd.f32 %v184, %v527
    %529 = vmatmul.bf16.gmra.mxu0 %v227
    %v530 = vpop.f32.mrf.mxu0
    %v531 = vadd.f32 %v184, %v530
    %v532 = vpop.f32.mrf.mxu0
    %v533 = vadd.f32 %v184, %v532
    %534 = vmatmul.bf16.gmra.mxu0 %v228
    %v535 = vpop.f32.mrf.mxu0
    %v536 = vadd.f32 %v184, %v535
    %v537 = vpop.f32.mrf.mxu0
    %v538 = vadd.f32 %v184, %v537
    %539 = vmatmul.bf16.gmra.mxu0 %v229
    %v540 = vpop.f32.mrf.mxu0
    %v541 = vadd.f32 %v184, %v540
    %v542 = vpop.f32.mrf.mxu0
    %v543 = vadd.f32 %v184, %v542
    %544 = vdwg.mxu0
    %545 = vmatpush.bf16.msra.mxu0 %v365
    %546 = vmatpush.bf16.msra.mxu0 %v361
    %547 = vmatpush.bf16.msra.mxu0 %v357
    %548 = vmatpush.bf16.msra.mxu0 %v353
    %549 = vmatpush.bf16.msra.mxu0 %v349
    %550 = vmatpush.bf16.msra.mxu0 %v345
    %551 = vmatpush.bf16.msra.mxu0 %v341
    %552 = vmatpush.bf16.msra.mxu0 %v337
    %553 = vmatmul.bf16.gmra.mxu0 %v222
    %v554 = vpop.f32.mrf.mxu0
    %v555 = vadd.f32 %v185, %v554
    %v556 = vpop.f32.mrf.mxu0
    %v557 = vadd.f32 %v185, %v556
    %558 = vmatmul.bf16.gmra.mxu0 %v223
    %v559 = vpop.f32.mrf.mxu0
    %v560 = vadd.f32 %v185, %v559
    %v561 = vpop.f32.mrf.mxu0
    %v562 = vadd.f32 %v185, %v561
    %563 = vmatmul.bf16.gmra.mxu0 %v224
    %v564 = vpop.f32.mrf.mxu0
    %v565 = vadd.f32 %v185, %v564
    %v566 = vpop.f32.mrf.mxu0
    %v567 = vadd.f32 %v185, %v566
    %568 = vmatmul.bf16.gmra.mxu0 %v225
    %v569 = vpop.f32.mrf.mxu0
    %v570 = vadd.f32 %v185, %v569
    %v571 = vpop.f32.mrf.mxu0
    %v572 = vadd.f32 %v185, %v571
    %573 = vmatmul.bf16.gmra.mxu0 %v226
    %v574 = vpop.f32.mrf.mxu0
    %v575 = vadd.f32 %v185, %v574
    %v576 = vpop.f32.mrf.mxu0
    %v577 = vadd.f32 %v185, %v576
    %578 = vmatmul.bf16.gmra.mxu0 %v227
    %v579 = vpop.f32.mrf.mxu0
    %v580 = vadd.f32 %v185, %v579
    %v581 = vpop.f32.mrf.mxu0
    %v582 = vadd.f32 %v185, %v581
    %583 = vmatmul.bf16.gmra.mxu0 %v228
    %v584 = vpop.f32.mrf.mxu0
    %v585 = vadd.f32 %v185, %v584
    %v586 = vpop.f32.mrf.mxu0
    %v587 = vadd.f32 %v185, %v586
    %588 = vmatmul.bf16.gmra.mxu0 %v229
    %v589 = vpop.f32.mrf.mxu0
    %v590 = vadd.f32 %v185, %v589
    %v591 = vpop.f32.mrf.mxu0
    %v592 = vadd.f32 %v185, %v591
    %593 = vdwg.mxu0
    %594 = vst [vmem:[#allocation2] sm:$0xff] %v408
    %595 = vst [vmem:[#allocation2 + $0x8] sm:$0xff] %v457
    %596 = vst [vmem:[#allocation2 + $0x10] sm:$0xff] %v506
    %597 = vst [vmem:[#allocation2 + $0x18] sm:$0xff] %v555
    %598 = vst [vmem:[#allocation2 + $0x20] sm:$0xff] %v410
    %599 = vst [vmem:[#allocation2 + $0x28] sm:$0xff] %v459
    %600 = vst [vmem:[#allocation2 + $0x30] sm:$0xff] %v508
    %601 = vst [vmem:[#allocation2 + $0x38] sm:$0xff] %v557
    %602 = vst [vmem:[#allocation2 + $0x40] sm:$0xff] %v413
    %603 = vst [vmem:[#allocation2 + $0x48] sm:$0xff] %v462
    %604 = vst [vmem:[#allocation2 + $0x50] sm:$0xff] %v511
    %605 = vst [vmem:[#allocation2 + $0x58] sm:$0xff] %v560
    %606 = vst [vmem:[#allocation2 + $0x60] sm:$0xff] %v415
    %607 = vst [vmem:[#allocation2 + $0x68] sm:$0xff] %v464
    %608 = vst [vmem:[#allocation2 + $0x70] sm:$0xff] %v513
    %609 = vst [vmem:[#allocation2 + $0x78] sm:$0xff] %v562
    %610 = vst [vmem:[#allocation2 + $0x80] sm:$0xff] %v418
    %611 = vst [vmem:[#allocation2 + $0x88] sm:$0xff] %v467
    %612 = vst [vmem:[#allocation2 + $0x90] sm:$0xff] %v516
    %613 = vst [vmem:[#allocation2 + $0x98] sm:$0xff] %v565
    %614 = vst [vmem:[#allocation2 + $0xa0] sm:$0xff] %v420
    %615 = vst [vmem:[#allocation2 + $0xa8] sm:$0xff] %v469
    %616 = vst [vmem:[#allocation2 + $0xb0] sm:$0xff] %v518
    %617 = vst [vmem:[#allocation2 + $0xb8] sm:$0xff] %v567
    %618 = vst [vmem:[#allocation2 + $0xc0] sm:$0xff] %v423
    %619 = vst [vmem:[#allocation2 + $0xc8] sm:$0xff] %v472
    %620 = vst [vmem:[#allocation2 + $0xd0] sm:$0xff] %v521
    %621 = vst [vmem:[#allocation2 + $0xd8] sm:$0xff] %v570
    %622 = vst [vmem:[#allocation2 + $0xe0] sm:$0xff] %v425
    %623 = vst [vmem:[#allocation2 + $0xe8] sm:$0xff] %v474
    %624 = vst [vmem:[#allocation2 + $0xf0] sm:$0xff] %v523
    %625 = vst [vmem:[#allocation2 + $0xf8] sm:$0xff] %v572
    %626 = vst [vmem:[#allocation2 + $0x100] sm:$0xff] %v428
    %627 = vst [vmem:[#allocation2 + $0x108] sm:$0xff] %v477
    %628 = vst [vmem:[#allocation2 + $0x110] sm:$0xff] %v526
    %629 = vst [vmem:[#allocation2 + $0x118] sm:$0xff] %v575
    %630 = vst [vmem:[#allocation2 + $0x120] sm:$0xff] %v430
    %631 = vst [vmem:[#allocation2 + $0x128] sm:$0xff] %v479
    %632 = vst [vmem:[#allocation2 + $0x130] sm:$0xff] %v528
    %633 = vst [vmem:[#allocation2 + $0x138] sm:$0xff] %v577
    %634 = vst [vmem:[#allocation2 + $0x140] sm:$0xff] %v433
    %635 = vst [vmem:[#allocation2 + $0x148] sm:$0xff] %v482
    %636 = vst [vmem:[#allocation2 + $0x150] sm:$0xff] %v531
    %637 = vst [vmem:[#allocation2 + $0x158] sm:$0xff] %v580
    %638 = vst [vmem:[#allocation2 + $0x160] sm:$0xff] %v435
    %639 = vst [vmem:[#allocation2 + $0x168] sm:$0xff] %v484
    %640 = vst [vmem:[#allocation2 + $0x170] sm:$0xff] %v533
    %641 = vst [vmem:[#allocation2 + $0x178] sm:$0xff] %v582
    %642 = vst [vmem:[#allocation2 + $0x180] sm:$0xff] %v438
    %643 = vst [vmem:[#allocation2 + $0x188] sm:$0xff] %v487
    %644 = vst [vmem:[#allocation2 + $0x190] sm:$0xff] %v536
    %645 = vst [vmem:[#allocation2 + $0x198] sm:$0xff] %v585
    %646 = vst [vmem:[#allocation2 + $0x1a0] sm:$0xff] %v440
    %647 = vst [vmem:[#allocation2 + $0x1a8] sm:$0xff] %v489
    %648 = vst [vmem:[#allocation2 + $0x1b0] sm:$0xff] %v538
    %649 = vst [vmem:[#allocation2 + $0x1b8] sm:$0xff] %v587
    %650 = vst [vmem:[#allocation2 + $0x1c0] sm:$0xff] %v443
    %651 = vst [vmem:[#allocation2 + $0x1c8] sm:$0xff] %v492
    %652 = vst [vmem:[#allocation2 + $0x1d0] sm:$0xff] %v541
    %653 = vst [vmem:[#allocation2 + $0x1d8] sm:$0xff] %v590
    %654 = vst [vmem:[#allocation2 + $0x1e0] sm:$0xff] %v445
    %655 = vst [vmem:[#allocation2 + $0x1e8] sm:$0xff] %v494
    %656 = vst [vmem:[#allocation2 + $0x1f0] sm:$0xff] %v543
    %657 = vst [vmem:[#allocation2 + $0x1f8] sm:$0xff] %v592
    %v658 = vld [vmem:[#allocation10] sm:$0xff]
    %v659 = vld [vmem:[#allocation10 + $0x8] sm:$0xff]
    %v660 = vld [vmem:[#allocation10 + $0x10] sm:$0xff]
    %v661 = vld [vmem:[#allocation10 + $0x18] sm:$0xff]
    %v662 = vld [vmem:[#allocation10 + $0x20] sm:$0xff]
    %v663 = vld [vmem:[#allocation10 + $0x28] sm:$0xff]
    %v664 = vld [vmem:[#allocation10 + $0x30] sm:$0xff]
    %v665 = vld [vmem:[#allocation10 + $0x38] sm:$0xff]
    %v666 = vld [vmem:[#allocation10 + $0x40] sm:$0xff]
    %v667 = vld [vmem:[#allocation10 + $0x48] sm:$0xff]
    %v668 = vld [vmem:[#allocation10 + $0x50] sm:$0xff]
    %v669 = vld [vmem:[#allocation10 + $0x58] sm:$0xff]
    %v670 = vld [vmem:[#allocation10 + $0x60] sm:$0xff]
    %v671 = vld [vmem:[#allocation10 + $0x68] sm:$0xff]
    %v672 = vld [vmem:[#allocation10 + $0x70] sm:$0xff]
    %v673 = vld [vmem:[#allocation10 + $0x78] sm:$0xff]
    %v674 = vld [vmem:[#allocation10 + $0x80] sm:$0xff]
    %v675 = vld [vmem:[#allocation10 + $0x88] sm:$0xff]
    %v676 = vld [vmem:[#allocation10 + $0x90] sm:$0xff]
    %v677 = vld [vmem:[#allocation10 + $0x98] sm:$0xff]
    %v678 = vld [vmem:[#allocation10 + $0xa0] sm:$0xff]
    %v679 = vld [vmem:[#allocation10 + $0xa8] sm:$0xff]
    %v680 = vld [vmem:[#allocation10 + $0xb0] sm:$0xff]
    %v681 = vld [vmem:[#allocation10 + $0xb8] sm:$0xff]
    %v682 = vld [vmem:[#allocation10 + $0xc0] sm:$0xff]
    %v683 = vld [vmem:[#allocation10 + $0xc8] sm:$0xff]
    %v684 = vld [vmem:[#allocation10 + $0xd0] sm:$0xff]
    %v685 = vld [vmem:[#allocation10 + $0xd8] sm:$0xff]
    %v686 = vld [vmem:[#allocation10 + $0xe0] sm:$0xff]
    %v687 = vld [vmem:[#allocation10 + $0xe8] sm:$0xff]
    %v688 = vld [vmem:[#allocation10 + $0xf0] sm:$0xff]
    %v689 = vld [vmem:[#allocation10 + $0xf8] sm:$0xff]
    %v690 = vld [vmem:[#allocation3] sm:$0xff]
    %v691 = vld [vmem:[#allocation3 + $0x8] sm:$0xff]
    %v692 = vld [vmem:[#allocation4] sm:$0xff]
    %v693 = vld [vmem:[#allocation4 + $0x8] sm:$0xff]
    %s694 = smul.u32 0, 4
    %s695 = smul.addr %s694, 8
    %s696 = scalar_lea.vmem [#allocation2], %s695
    %v697 = vld [vmem:[%s696] sm:$0xff]
    %v698 = vld [vmem:[%s696 + $0x8] sm:$0xff]
    %v699 = vld [vmem:[%s696 + $0x10] sm:$0xff]
    %v700 = vld [vmem:[%s696 + $0x18] sm:$0xff]
    %v701 = vld [vmem:[%s696 + $0x20] sm:$0xff]
    %v702 = vld [vmem:[%s696 + $0x28] sm:$0xff]
    %v703 = vld [vmem:[%s696 + $0x30] sm:$0xff]
    %v704 = vld [vmem:[%s696 + $0x38] sm:$0xff]
    %v705 = vpack.c.bf16 %v691, %v690
    %v738 = vunpack.c.l.b16 %v658
    %v739 = vunpack.c.h.b16 %v658
    %v740 = vunpack.c.l.b16 %v659
    %v741 = vunpack.c.h.b16 %v659
    %v742 = vunpack.c.l.b16 %v660
    %v743 = vunpack.c.h.b16 %v660
    %v744 = vunpack.c.l.b16 %v661
    %v745 = vunpack.c.h.b16 %v661
    %v746 = vunpack.c.l.b16 %v662
    %v747 = vunpack.c.h.b16 %v662
    %v748 = vunpack.c.l.b16 %v663
    %v749 = vunpack.c.h.b16 %v663
    %v750 = vunpack.c.l.b16 %v664
    %v751 = vunpack.c.h.b16 %v664
    %v752 = vunpack.c.l.b16 %v665
    %v753 = vunpack.c.h.b16 %v665
    %v754 = vunpack.c.l.b16 %v666
    %v755 = vunpack.c.h.b16 %v666
    %v756 = vunpack.c.l.b16 %v667
    %v757 = vunpack.c.h.b16 %v667
    %v758 = vunpack.c.l.b16 %v668
    %v759 = vunpack.c.h.b16 %v668
    %v760 = vunpack.c.l.b16 %v669
    %v761 = vunpack.c.h.b16 %v669
    %v762 = vunpack.c.l.b16 %v670
    %v763 = vunpack.c.h.b16 %v670
    %v764 = vunpack.c.l.b16 %v671
    %v765 = vunpack.c.h.b16 %v671
    %v766 = vunpack.c.l.b16 %v672
    %v767 = vunpack.c.h.b16 %v672
    %v768 = vunpack.c.l.b16 %v673
    %v769 = vunpack.c.h.b16 %v673
    %v770 = vunpack.c.l.b16 %v674
    %v771 = vunpack.c.h.b16 %v674
    %v772 = vunpack.c.l.b16 %v675
    %v773 = vunpack.c.h.b16 %v675
    %v774 = vunpack.c.l.b16 %v676
    %v775 = vunpack.c.h.b16 %v676
    %v776 = vunpack.c.l.b16 %v677
    %v777 = vunpack.c.h.b16 %v677
    %v778 = vunpack.c.l.b16 %v678
    %v779 = vunpack.c.h.b16 %v678
    %v780 = vunpack.c.l.b16 %v679
    %v781 = vunpack.c.h.b16 %v679
    %v782 = vunpack.c.l.b16 %v680
    %v783 = vunpack.c.h.b16 %v680
    %v784 = vunpack.c.l.b16 %v681
    %v785 = vunpack.c.h.b16 %v681
    %v786 = vunpack.c.l.b16 %v682
    %v787 = vunpack.c.h.b16 %v682
    %v788 = vunpack.c.l.b16 %v683
    %v789 = vunpack.c.h.b16 %v683
    %v790 = vunpack.c.l.b16 %v684
    %v791 = vunpack.c.h.b16 %v684
    %v792 = vunpack.c.l.b16 %v685
    %v793 = vunpack.c.h.b16 %v685
    %v794 = vunpack.c.l.b16 %v686
    %v795 = vunpack.c.h.b16 %v686
    %v796 = vunpack.c.l.b16 %v687
    %v797 = vunpack.c.h.b16 %v687
    %v798 = vunpack.c.l.b16 %v688
    %v799 = vunpack.c.h.b16 %v688
    %v800 = vunpack.c.l.b16 %v689
    %v801 = vunpack.c.h.b16 %v689
    %v802 = vpack.c.b16 %v742, %v738
    %v803 = vpack.c.b16 %v743, %v739
    %v804 = vpack.c.b16 %v744, %v740
    %v805 = vpack.c.b16 %v745, %v741
    %v806 = vpack.c.b16 %v750, %v746
    %v807 = vpack.c.b16 %v751, %v747
    %v808 = vpack.c.b16 %v752, %v748
    %v809 = vpack.c.b16 %v753, %v749
    %v810 = vpack.c.b16 %v758, %v754
    %v811 = vpack.c.b16 %v759, %v755
    %v812 = vpack.c.b16 %v760, %v756
    %v813 = vpack.c.b16 %v761, %v757
    %v814 = vpack.c.b16 %v766, %v762
    %v815 = vpack.c.b16 %v767, %v763
    %v816 = vpack.c.b16 %v768, %v764
    %v817 = vpack.c.b16 %v769, %v765
    %v818 = vpack.c.b16 %v774, %v770
    %v819 = vpack.c.b16 %v775, %v771
    %v820 = vpack.c.b16 %v776, %v772
    %v821 = vpack.c.b16 %v777, %v773
    %v822 = vpack.c.b16 %v782, %v778
    %v823 = vpack.c.b16 %v783, %v779
    %v824 = vpack.c.b16 %v784, %v780
    %v825 = vpack.c.b16 %v785, %v781
    %v826 = vpack.c.b16 %v790, %v786
    %v827 = vpack.c.b16 %v791, %v787
    %v828 = vpack.c.b16 %v792, %v788
    %v829 = vpack.c.b16 %v793, %v789
    %v830 = vpack.c.b16 %v798, %v794
    %v831 = vpack.c.b16 %v799, %v795
    %v832 = vpack.c.b16 %v800, %v796
    %v833 = vpack.c.b16 %v801, %v797
    %866 = vmatpush.bf16.msra.mxu0 %v830
    %867 = vmatpush.bf16.msra.mxu0 %v826
    %868 = vmatpush.bf16.msra.mxu0 %v822
    %869 = vmatpush.bf16.msra.mxu0 %v818
    %870 = vmatpush.bf16.msra.mxu0 %v814
    %871 = vmatpush.bf16.msra.mxu0 %v810
    %872 = vmatpush.bf16.msra.mxu0 %v806
    %873 = vmatpush.bf16.msra.mxu0 %v802
    %874 = vmatmul.bf16.gmra.mxu0 %v705
    %v875 = vpop.f32.mrf.mxu0
    %v876 = vadd.f32 0.0, %v875
    %v877 = vpop.f32.mrf.mxu0
    %v878 = vadd.f32 0.0, %v877
    %879 = vdwg.mxu0
    %880 = vmatpush.bf16.msra.mxu0 %v831
    %881 = vmatpush.bf16.msra.mxu0 %v827
    %882 = vmatpush.bf16.msra.mxu0 %v823
    %883 = vmatpush.bf16.msra.mxu0 %v819
    %884 = vmatpush.bf16.msra.mxu0 %v815
    %885 = vmatpush.bf16.msra.mxu0 %v811
    %886 = vmatpush.bf16.msra.mxu0 %v807
    %887 = vmatpush.bf16.msra.mxu0 %v803
    %888 = vmatmul.bf16.gmra.mxu0 %v705
    %v889 = vpop.f32.mrf.mxu0
    %v890 = vadd.f32 0.0, %v889
    %v891 = vpop.f32.mrf.mxu0
    %v892 = vadd.f32 0.0, %v891
    %893 = vdwg.mxu0
    %894 = vmatpush.bf16.msra.mxu0 %v832
    %895 = vmatpush.bf16.msra.mxu0 %v828
    %896 = vmatpush.bf16.msra.mxu0 %v824
    %897 = vmatpush.bf16.msra.mxu0 %v820
    %898 = vmatpush.bf16.msra.mxu0 %v816
    %899 = vmatpush.bf16.msra.mxu0 %v812
    %900 = vmatpush.bf16.msra.mxu0 %v808
    %901 = vmatpush.bf16.msra.mxu0 %v804
    %902 = vmatmul.bf16.gmra.mxu0 %v705
    %v903 = vpop.f32.mrf.mxu0
    %v904 = vadd.f32 0.0, %v903
    %v905 = vpop.f32.mrf.mxu0
    %v906 = vadd.f32 0.0, %v905
    %907 = vdwg.mxu0
    %908 = vmatpush.bf16.msra.mxu0 %v833
    %909 = vmatpush.bf16.msra.mxu0 %v829
    %910 = vmatpush.bf16.msra.mxu0 %v825
    %911 = vmatpush.bf16.msra.mxu0 %v821
    %912 = vmatpush.bf16.msra.mxu0 %v817
    %913 = vmatpush.bf16.msra.mxu0 %v813
    %914 = vmatpush.bf16.msra.mxu0 %v809
    %915 = vmatpush.bf16.msra.mxu0 %v805
    %916 = vmatmul.bf16.gmra.mxu0 %v705
    %v917 = vpop.f32.mrf.mxu0
    %v918 = vadd.f32 0.0, %v917
    %v919 = vpop.f32.mrf.mxu0
    %v920 = vadd.f32 0.0, %v919
    %921 = vdwg.mxu0
    %v922 = vadd.f32 %v697, %v876
    %v923 = vadd.f32 %v698, %v890
    %v924 = vadd.f32 %v699, %v904
    %v925 = vadd.f32 %v700, %v918
    %v926 = vadd.f32 %v701, %v878
    %v927 = vadd.f32 %v702, %v892
    %v928 = vadd.f32 %v703, %v906
    %v929 = vadd.f32 %v704, %v920
    %v930 = vmul.f32 %v922, 0.5
    %v931 = vmul.f32 %v926, 0.5
    %v932 = vtanh.pop %v930
    %v933 = vtanh.pop %v931
    %v934 = vmul.f32 %v932, 0.5
    %v935 = vmul.f32 %v933, 0.5
    %v936 = vadd.f32 %v934, 0.5
    %v937 = vadd.f32 %v935, 0.5
    %v938 = vmul.f32 %v923, 0.5
    %v939 = vmul.f32 %v927, 0.5
    %v940 = vtanh.pop %v938
    %v941 = vtanh.pop %v939
    %v942 = vmul.f32 %v940, 0.5
    %v943 = vmul.f32 %v941, 0.5
    %v944 = vadd.f32 %v942, 0.5
    %v945 = vadd.f32 %v943, 0.5
    %v946 = vtanh.pop %v924
    %v947 = vtanh.pop %v928
    %v948 = vmul.f32 %v925, 0.5
    %v949 = vmul.f32 %v929, 0.5
    %v950 = vtanh.pop %v948
    %v951 = vtanh.pop %v949
    %v952 = vmul.f32 %v950, 0.5
    %v953 = vmul.f32 %v951, 0.5
    %v954 = vadd.f32 %v952, 0.5
    %v955 = vadd.f32 %v953, 0.5
    %v956 = vmul.f32 %v944, %v692
    %v957 = vmul.f32 %v945, %v693
    %v958 = vmul.f32 %v936, %v946
    %v959 = vmul.f32 %v937, %v947
    %v960 = vadd.f32 %v956, %v958
    %v961 = vadd.f32 %v957, %v959
    %v962 = vtanh.pop %v960
    %v963 = vtanh.pop %v961
    %v964 = vmul.f32 %v954, %v962
    %v965 = vmul.f32 %v955, %v963
    %v966 = vpack.c.bf16 %v964, %v964
    %v967 = vpack.c.bf16 %v965, %v965
    %968 = vst [vmem:[#allocation16] sm:$0xf] %v966
    %969 = vst [vmem:[#allocation16 + $0x4] sm:$0xf] %v967
    %s970 = smul.u32 2, 4
    %s971 = smul.addr %s970, 8
    %s972 = scalar_lea.vmem [#allocation2], %s971
    %v973 = vld [vmem:[%s972] sm:$0xff]
    %v974 = vld [vmem:[%s972 + $0x8] sm:$0xff]
    %v975 = vld [vmem:[%s972 + $0x10] sm:$0xff]
    %v976 = vld [vmem:[%s972 + $0x18] sm:$0xff]
    %v977 = vld [vmem:[%s972 + $0x20] sm:$0xff]
    %v978 = vld [vmem:[%s972 + $0x28] sm:$0xff]
    %v979 = vld [vmem:[%s972 + $0x30] sm:$0xff]
    %v980 = vld [vmem:[%s972 + $0x38] sm:$0xff]
    %v983 = vunpack.c.l.b16 %v966
    %v984 = vunpack.c.l.b16 %v967
    %v985 = vpack.c.b16 %v984, %v983
    %987 = vmatpush.bf16.msra.mxu0 %v830
    %988 = vmatpush.bf16.msra.mxu0 %v826
    %989 = vmatpush.bf16.msra.mxu0 %v822
    %990 = vmatpush.bf16.msra.mxu0 %v818
    %991 = vmatpush.bf16.msra.mxu0 %v814
    %992 = vmatpush.bf16.msra.mxu0 %v810
    %993 = vmatpush.bf16.msra.mxu0 %v806
    %994 = vmatpush.bf16.msra.mxu0 %v802
    %995 = vmatmul.bf16.gmra.mxu0 %v985
    %v996 = vpop.f32.mrf.mxu0
    %v997 = vadd.f32 0.0, %v996
    %v998 = vpop.f32.mrf.mxu0
    %v999 = vadd.f32 0.0, %v998
    %1000 = vdwg.mxu0
    %1001 = vmatpush.bf16.msra.mxu0 %v831
    %1002 = vmatpush.bf16.msra.mxu0 %v827
    %1003 = vmatpush.bf16.msra.mxu0 %v823
    %1004 = vmatpush.bf16.msra.mxu0 %v819
    %1005 = vmatpush.bf16.msra.mxu0 %v815
    %1006 = vmatpush.bf16.msra.mxu0 %v811
    %1007 = vmatpush.bf16.msra.mxu0 %v807
    %1008 = vmatpush.bf16.msra.mxu0 %v803
    %1009 = vmatmul.bf16.gmra.mxu0 %v985
    %v1010 = vpop.f32.mrf.mxu0
    %v1011 = vadd.f32 0.0, %v1010
    %v1012 = vpop.f32.mrf.mxu0
    %v1013 = vadd.f32 0.0, %v1012
    %1014 = vdwg.mxu0
    %1015 = vmatpush.bf16.msra.mxu0 %v832
    %1016 = vmatpush.bf16.msra.mxu0 %v828
    %1017 = vmatpush.bf16.msra.mxu0 %v824
    %1018 = vmatpush.bf16.msra.mxu0 %v820
    %1019 = vmatpush.bf16.msra.mxu0 %v816
    %1020 = vmatpush.bf16.msra.mxu0 %v812
    %1021 = vmatpush.bf16.msra.mxu0 %v808
    %1022 = vmatpush.bf16.msra.mxu0 %v804
    %1023 = vmatmul.bf16.gmra.mxu0 %v985
    %v1024 = vpop.f32.mrf.mxu0
    %v1025 = vadd.f32 0.0, %v1024
    %v1026 = vpop.f32.mrf.mxu0
    %v1027 = vadd.f32 0.0, %v1026
    %1028 = vdwg.mxu0
    %1029 = vmatpush.bf16.msra.mxu0 %v833
    %1030 = vmatpush.bf16.msra.mxu0 %v829
    %1031 = vmatpush.bf16.msra.mxu0 %v825
    %1032 = vmatpush.bf16.msra.mxu0 %v821
    %1033 = vmatpush.bf16.msra.mxu0 %v817
    %1034 = vmatpush.bf16.msra.mxu0 %v813
    %1035 = vmatpush.bf16.msra.mxu0 %v809
    %1036 = vmatpush.bf16.msra.mxu0 %v805
    %1037 = vmatmul.bf16.gmra.mxu0 %v985
    %v1038 = vpop.f32.mrf.mxu0
    %v1039 = vadd.f32 0.0, %v1038
    %v1040 = vpop.f32.mrf.mxu0
    %v1041 = vadd.f32 0.0, %v1040
    %1042 = vdwg.mxu0
    %v1043 = vadd.f32 %v973, %v997
    %v1044 = vadd.f32 %v974, %v1011
    %v1045 = vadd.f32 %v975, %v1025
    %v1046 = vadd.f32 %v976, %v1039
    %v1047 = vadd.f32 %v977, %v999
    %v1048 = vadd.f32 %v978, %v1013
    %v1049 = vadd.f32 %v979, %v1027
    %v1050 = vadd.f32 %v980, %v1041
    %v1051 = vmul.f32 %v1043, 0.5
    %v1052 = vmul.f32 %v1047, 0.5
    %v1053 = vtanh.pop %v1051
    %v1054 = vtanh.pop %v1052
    %v1055 = vmul.f32 %v1053, 0.5
    %v1056 = vmul.f32 %v1054, 0.5
    %v1057 = vadd.f32 %v1055, 0.5
    %v1058 = vadd.f32 %v1056, 0.5
    %v1059 = vmul.f32 %v1044, 0.5
    %v1060 = vmul.f32 %v1048, 0.5
    %v1061 = vtanh.pop %v1059
    %v1062 = vtanh.pop %v1060
    %v1063 = vmul.f32 %v1061, 0.5
    %v1064 = vmul.f32 %v1062, 0.5
    %v1065 = vadd.f32 %v1063, 0.5
    %v1066 = vadd.f32 %v1064, 0.5
    %v1067 = vtanh.pop %v1045
    %v1068 = vtanh.pop %v1049
    %v1069 = vmul.f32 %v1046, 0.5
    %v1070 = vmul.f32 %v1050, 0.5
    %v1071 = vtanh.pop %v1069
    %v1072 = vtanh.pop %v1070
    %v1073 = vmul.f32 %v1071, 0.5
    %v1074 = vmul.f32 %v1072, 0.5
    %v1075 = vadd.f32 %v1073, 0.5
    %v1076 = vadd.f32 %v1074, 0.5
    %v1077 = vmul.f32 %v1065, %v960
    %v1078 = vmul.f32 %v1066, %v961
    %v1079 = vmul.f32 %v1057, %v1067
    %v1080 = vmul.f32 %v1058, %v1068
    %v1081 = vadd.f32 %v1077, %v1079
    %v1082 = vadd.f32 %v1078, %v1080
    %v1083 = vtanh.pop %v1081
    %v1084 = vtanh.pop %v1082
    %v1085 = vmul.f32 %v1075, %v1083
    %v1086 = vmul.f32 %v1076, %v1084
    %v1087 = vpack.c.bf16 %v1085, %v1085
    %v1088 = vpack.c.bf16 %v1086, %v1086
    %s1089 = scalar_lea.vmem [#allocation16], 8
    %1090 = vst [vmem:[%s1089] sm:$0xf] %v1087
    %1091 = vst [vmem:[%s1089 + $0x4] sm:$0xf] %v1088
    %s1092 = smul.u32 4, 4
    %s1093 = smul.addr %s1092, 8
    %s1094 = scalar_lea.vmem [#allocation2], %s1093
    %v1095 = vld [vmem:[%s1094] sm:$0xff]
    %v1096 = vld [vmem:[%s1094 + $0x8] sm:$0xff]
    %v1097 = vld [vmem:[%s1094 + $0x10] sm:$0xff]
    %v1098 = vld [vmem:[%s1094 + $0x18] sm:$0xff]
    %v1099 = vld [vmem:[%s1094 + $0x20] sm:$0xff]
    %v1100 = vld [vmem:[%s1094 + $0x28] sm:$0xff]
    %v1101 = vld [vmem:[%s1094 + $0x30] sm:$0xff]
    %v1102 = vld [vmem:[%s1094 + $0x38] sm:$0xff]
    %v1105 = vunpack.c.l.b16 %v1087
    %v1106 = vunpack.c.l.b16 %v1088
    %v1107 = vpack.c.b16 %v1106, %v1105
    %1109 = vmatpush.bf16.msra.mxu0 %v830
    %1110 = vmatpush.bf16.msra.mxu0 %v826
    %1111 = vmatpush.bf16.msra.mxu0 %v822
    %1112 = vmatpush.bf16.msra.mxu0 %v818
    %1113 = vmatpush.bf16.msra.mxu0 %v814
    %1114 = vmatpush.bf16.msra.mxu0 %v810
    %1115 = vmatpush.bf16.msra.mxu0 %v806
    %1116 = vmatpush.bf16.msra.mxu0 %v802
    %1117 = vmatmul.bf16.gmra.mxu0 %v1107
    %v1118 = vpop.f32.mrf.mxu0
    %v1119 = vadd.f32 0.0, %v1118
    %v1120 = vpop.f32.mrf.mxu0
    %v1121 = vadd.f32 0.0, %v1120
    %1122 = vdwg.mxu0
    %1123 = vmatpush.bf16.msra.mxu0 %v831
    %1124 = vmatpush.bf16.msra.mxu0 %v827
    %1125 = vmatpush.bf16.msra.mxu0 %v823
    %1126 = vmatpush.bf16.msra.mxu0 %v819
    %1127 = vmatpush.bf16.msra.mxu0 %v815
    %1128 = vmatpush.bf16.msra.mxu0 %v811
    %1129 = vmatpush.bf16.msra.mxu0 %v807
    %1130 = vmatpush.bf16.msra.mxu0 %v803
    %1131 = vmatmul.bf16.gmra.mxu0 %v1107
    %v1132 = vpop.f32.mrf.mxu0
    %v1133 = vadd.f32 0.0, %v1132
    %v1134 = vpop.f32.mrf.mxu0
    %v1135 = vadd.f32 0.0, %v1134
    %1136 = vdwg.mxu0
    %1137 = vmatpush.bf16.msra.mxu0 %v832
    %1138 = vmatpush.bf16.msra.mxu0 %v828
    %1139 = vmatpush.bf16.msra.mxu0 %v824
    %1140 = vmatpush.bf16.msra.mxu0 %v820
    %1141 = vmatpush.bf16.msra.mxu0 %v816
    %1142 = vmatpush.bf16.msra.mxu0 %v812
    %1143 = vmatpush.bf16.msra.mxu0 %v808
    %1144 = vmatpush.bf16.msra.mxu0 %v804
    %1145 = vmatmul.bf16.gmra.mxu0 %v1107
    %v1146 = vpop.f32.mrf.mxu0
    %v1147 = vadd.f32 0.0, %v1146
    %v1148 = vpop.f32.mrf.mxu0
    %v1149 = vadd.f32 0.0, %v1148
    %1150 = vdwg.mxu0
    %1151 = vmatpush.bf16.msra.mxu0 %v833
    %1152 = vmatpush.bf16.msra.mxu0 %v829
    %1153 = vmatpush.bf16.msra.mxu0 %v825
    %1154 = vmatpush.bf16.msra.mxu0 %v821
    %1155 = vmatpush.bf16.msra.mxu0 %v817
    %1156 = vmatpush.bf16.msra.mxu0 %v813
    %1157 = vmatpush.bf16.msra.mxu0 %v809
    %1158 = vmatpush.bf16.msra.mxu0 %v805
    %1159 = vmatmul.bf16.gmra.mxu0 %v1107
    %v1160 = vpop.f32.mrf.mxu0
    %v1161 = vadd.f32 0.0, %v1160
    %v1162 = vpop.f32.mrf.mxu0
    %v1163 = vadd.f32 0.0, %v1162
    %1164 = vdwg.mxu0
    %v1165 = vadd.f32 %v1095, %v1119
    %v1166 = vadd.f32 %v1096, %v1133
    %v1167 = vadd.f32 %v1097, %v1147
    %v1168 = vadd.f32 %v1098, %v1161
    %v1169 = vadd.f32 %v1099, %v1121
    %v1170 = vadd.f32 %v1100, %v1135
    %v1171 = vadd.f32 %v1101, %v1149
    %v1172 = vadd.f32 %v1102, %v1163
    %v1173 = vmul.f32 %v1165, 0.5
    %v1174 = vmul.f32 %v1169, 0.5
    %v1175 = vtanh.pop %v1173
    %v1176 = vtanh.pop %v1174
    %v1177 = vmul.f32 %v1175, 0.5
    %v1178 = vmul.f32 %v1176, 0.5
    %v1179 = vadd.f32 %v1177, 0.5
    %v1180 = vadd.f32 %v1178, 0.5
    %v1181 = vmul.f32 %v1166, 0.5
    %v1182 = vmul.f32 %v1170, 0.5
    %v1183 = vtanh.pop %v1181
    %v1184 = vtanh.pop %v1182
    %v1185 = vmul.f32 %v1183, 0.5
    %v1186 = vmul.f32 %v1184, 0.5
    %v1187 = vadd.f32 %v1185, 0.5
    %v1188 = vadd.f32 %v1186, 0.5
    %v1189 = vtanh.pop %v1167
    %v1190 = vtanh.pop %v1171
    %v1191 = vmul.f32 %v1168, 0.5
    %v1192 = vmul.f32 %v1172, 0.5
    %v1193 = vtanh.pop %v1191
    %v1194 = vtanh.pop %v1192
    %v1195 = vmul.f32 %v1193, 0.5
    %v1196 = vmul.f32 %v1194, 0.5
    %v1197 = vadd.f32 %v1195, 0.5
    %v1198 = vadd.f32 %v1196, 0.5
    %v1199 = vmul.f32 %v1187, %v1081
    %v1200 = vmul.f32 %v1188, %v1082
    %v1201 = vmul.f32 %v1179, %v1189
    %v1202 = vmul.f32 %v1180, %v1190
    %v1203 = vadd.f32 %v1199, %v1201
    %v1204 = vadd.f32 %v1200, %v1202
    %v1205 = vtanh.pop %v1203
    %v1206 = vtanh.pop %v1204
    %v1207 = vmul.f32 %v1197, %v1205
    %v1208 = vmul.f32 %v1198, %v1206
    %v1209 = vpack.c.bf16 %v1207, %v1207
    %v1210 = vpack.c.bf16 %v1208, %v1208
    %s1211 = scalar_lea.vmem [#allocation16], 16
    %1212 = vst [vmem:[%s1211] sm:$0xf] %v1209
    %1213 = vst [vmem:[%s1211 + $0x4] sm:$0xf] %v1210
    %s1214 = smul.u32 6, 4
    %s1215 = smul.addr %s1214, 8
    %s1216 = scalar_lea.vmem [#allocation2], %s1215
    %v1217 = vld [vmem:[%s1216] sm:$0xff]
    %v1218 = vld [vmem:[%s1216 + $0x8] sm:$0xff]
    %v1219 = vld [vmem:[%s1216 + $0x10] sm:$0xff]
    %v1220 = vld [vmem:[%s1216 + $0x18] sm:$0xff]
    %v1221 = vld [vmem:[%s1216 + $0x20] sm:$0xff]
    %v1222 = vld [vmem:[%s1216 + $0x28] sm:$0xff]
    %v1223 = vld [vmem:[%s1216 + $0x30] sm:$0xff]
    %v1224 = vld [vmem:[%s1216 + $0x38] sm:$0xff]
    %v1227 = vunpack.c.l.b16 %v1209
    %v1228 = vunpack.c.l.b16 %v1210
    %v1229 = vpack.c.b16 %v1228, %v1227
    %1231 = vmatpush.bf16.msra.mxu0 %v830
    %1232 = vmatpush.bf16.msra.mxu0 %v826
    %1233 = vmatpush.bf16.msra.mxu0 %v822
    %1234 = vmatpush.bf16.msra.mxu0 %v818
    %1235 = vmatpush.bf16.msra.mxu0 %v814
    %1236 = vmatpush.bf16.msra.mxu0 %v810
    %1237 = vmatpush.bf16.msra.mxu0 %v806
    %1238 = vmatpush.bf16.msra.mxu0 %v802
    %1239 = vmatmul.bf16.gmra.mxu0 %v1229
    %v1240 = vpop.f32.mrf.mxu0
    %v1241 = vadd.f32 0.0, %v1240
    %v1242 = vpop.f32.mrf.mxu0
    %v1243 = vadd.f32 0.0, %v1242
    %1244 = vdwg.mxu0
    %1245 = vmatpush.bf16.msra.mxu0 %v831
    %1246 = vmatpush.bf16.msra.mxu0 %v827
    %1247 = vmatpush.bf16.msra.mxu0 %v823
    %1248 = vmatpush.bf16.msra.mxu0 %v819
    %1249 = vmatpush.bf16.msra.mxu0 %v815
    %1250 = vmatpush.bf16.msra.mxu0 %v811
    %1251 = vmatpush.bf16.msra.mxu0 %v807
    %1252 = vmatpush.bf16.msra.mxu0 %v803
    %1253 = vmatmul.bf16.gmra.mxu0 %v1229
    %v1254 = vpop.f32.mrf.mxu0
    %v1255 = vadd.f32 0.0, %v1254
    %v1256 = vpop.f32.mrf.mxu0
    %v1257 = vadd.f32 0.0, %v1256
    %1258 = vdwg.mxu0
    %1259 = vmatpush.bf16.msra.mxu0 %v832
    %1260 = vmatpush.bf16.msra.mxu0 %v828
    %1261 = vmatpush.bf16.msra.mxu0 %v824
    %1262 = vmatpush.bf16.msra.mxu0 %v820
    %1263 = vmatpush.bf16.msra.mxu0 %v816
    %1264 = vmatpush.bf16.msra.mxu0 %v812
    %1265 = vmatpush.bf16.msra.mxu0 %v808
    %1266 = vmatpush.bf16.msra.mxu0 %v804
    %1267 = vmatmul.bf16.gmra.mxu0 %v1229
    %v1268 = vpop.f32.mrf.mxu0
    %v1269 = vadd.f32 0.0, %v1268
    %v1270 = vpop.f32.mrf.mxu0
    %v1271 = vadd.f32 0.0, %v1270
    %1272 = vdwg.mxu0
    %1273 = vmatpush.bf16.msra.mxu0 %v833
    %1274 = vmatpush.bf16.msra.mxu0 %v829
    %1275 = vmatpush.bf16.msra.mxu0 %v825
    %1276 = vmatpush.bf16.msra.mxu0 %v821
    %1277 = vmatpush.bf16.msra.mxu0 %v817
    %1278 = vmatpush.bf16.msra.mxu0 %v813
    %1279 = vmatpush.bf16.msra.mxu0 %v809
    %1280 = vmatpush.bf16.msra.mxu0 %v805
    %1281 = vmatmul.bf16.gmra.mxu0 %v1229
    %v1282 = vpop.f32.mrf.mxu0
    %v1283 = vadd.f32 0.0, %v1282
    %v1284 = vpop.f32.mrf.mxu0
    %v1285 = vadd.f32 0.0, %v1284
    %1286 = vdwg.mxu0
    %v1287 = vadd.f32 %v1217, %v1241
    %v1288 = vadd.f32 %v1218, %v1255
    %v1289 = vadd.f32 %v1219, %v1269
    %v1290 = vadd.f32 %v1220, %v1283
    %v1291 = vadd.f32 %v1221, %v1243
    %v1292 = vadd.f32 %v1222, %v1257
    %v1293 = vadd.f32 %v1223, %v1271
    %v1294 = vadd.f32 %v1224, %v1285
    %v1295 = vmul.f32 %v1287, 0.5
    %v1296 = vmul.f32 %v1291, 0.5
    %v1297 = vtanh.pop %v1295
    %v1298 = vtanh.pop %v1296
    %v1299 = vmul.f32 %v1297, 0.5
    %v1300 = vmul.f32 %v1298, 0.5
    %v1301 = vadd.f32 %v1299, 0.5
    %v1302 = vadd.f32 %v1300, 0.5
    %v1303 = vmul.f32 %v1288, 0.5
    %v1304 = vmul.f32 %v1292, 0.5
    %v1305 = vtanh.pop %v1303
    %v1306 = vtanh.pop %v1304
    %v1307 = vmul.f32 %v1305, 0.5
    %v1308 = vmul.f32 %v1306, 0.5
    %v1309 = vadd.f32 %v1307, 0.5
    %v1310 = vadd.f32 %v1308, 0.5
    %v1311 = vtanh.pop %v1289
    %v1312 = vtanh.pop %v1293
    %v1313 = vmul.f32 %v1290, 0.5
    %v1314 = vmul.f32 %v1294, 0.5
    %v1315 = vtanh.pop %v1313
    %v1316 = vtanh.pop %v1314
    %v1317 = vmul.f32 %v1315, 0.5
    %v1318 = vmul.f32 %v1316, 0.5
    %v1319 = vadd.f32 %v1317, 0.5
    %v1320 = vadd.f32 %v1318, 0.5
    %v1321 = vmul.f32 %v1309, %v1203
    %v1322 = vmul.f32 %v1310, %v1204
    %v1323 = vmul.f32 %v1301, %v1311
    %v1324 = vmul.f32 %v1302, %v1312
    %v1325 = vadd.f32 %v1321, %v1323
    %v1326 = vadd.f32 %v1322, %v1324
    %v1327 = vtanh.pop %v1325
    %v1328 = vtanh.pop %v1326
    %v1329 = vmul.f32 %v1319, %v1327
    %v1330 = vmul.f32 %v1320, %v1328
    %v1331 = vpack.c.bf16 %v1329, %v1329
    %v1332 = vpack.c.bf16 %v1330, %v1330
    %s1333 = scalar_lea.vmem [#allocation16], 24
    %1334 = vst [vmem:[%s1333] sm:$0xf] %v1331
    %1335 = vst [vmem:[%s1333 + $0x4] sm:$0xf] %v1332
    %s1336 = smul.u32 8, 4
    %s1337 = smul.addr %s1336, 8
    %s1338 = scalar_lea.vmem [#allocation2], %s1337
    %v1339 = vld [vmem:[%s1338] sm:$0xff]
    %v1340 = vld [vmem:[%s1338 + $0x8] sm:$0xff]
    %v1341 = vld [vmem:[%s1338 + $0x10] sm:$0xff]
    %v1342 = vld [vmem:[%s1338 + $0x18] sm:$0xff]
    %v1343 = vld [vmem:[%s1338 + $0x20] sm:$0xff]
    %v1344 = vld [vmem:[%s1338 + $0x28] sm:$0xff]
    %v1345 = vld [vmem:[%s1338 + $0x30] sm:$0xff]
    %v1346 = vld [vmem:[%s1338 + $0x38] sm:$0xff]
    %v1349 = vunpack.c.l.b16 %v1331
    %v1350 = vunpack.c.l.b16 %v1332
    %v1351 = vpack.c.b16 %v1350, %v1349
    %1353 = vmatpush.bf16.msra.mxu0 %v830
    %1354 = vmatpush.bf16.msra.mxu0 %v826
    %1355 = vmatpush.bf16.msra.mxu0 %v822
    %1356 = vmatpush.bf16.msra.mxu0 %v818
    %1357 = vmatpush.bf16.msra.mxu0 %v814
    %1358 = vmatpush.bf16.msra.mxu0 %v810
    %1359 = vmatpush.bf16.msra.mxu0 %v806
    %1360 = vmatpush.bf16.msra.mxu0 %v802
    %1361 = vmatmul.bf16.gmra.mxu0 %v1351
    %v1362 = vpop.f32.mrf.mxu0
    %v1363 = vadd.f32 0.0, %v1362
    %v1364 = vpop.f32.mrf.mxu0
    %v1365 = vadd.f32 0.0, %v1364
    %1366 = vdwg.mxu0
    %1367 = vmatpush.bf16.msra.mxu0 %v831
    %1368 = vmatpush.bf16.msra.mxu0 %v827
    %1369 = vmatpush.bf16.msra.mxu0 %v823
    %1370 = vmatpush.bf16.msra.mxu0 %v819
    %1371 = vmatpush.bf16.msra.mxu0 %v815
    %1372 = vmatpush.bf16.msra.mxu0 %v811
    %1373 = vmatpush.bf16.msra.mxu0 %v807
    %1374 = vmatpush.bf16.msra.mxu0 %v803
    %1375 = vmatmul.bf16.gmra.mxu0 %v1351
    %v1376 = vpop.f32.mrf.mxu0
    %v1377 = vadd.f32 0.0, %v1376
    %v1378 = vpop.f32.mrf.mxu0
    %v1379 = vadd.f32 0.0, %v1378
    %1380 = vdwg.mxu0
    %1381 = vmatpush.bf16.msra.mxu0 %v832
    %1382 = vmatpush.bf16.msra.mxu0 %v828
    %1383 = vmatpush.bf16.msra.mxu0 %v824
    %1384 = vmatpush.bf16.msra.mxu0 %v820
    %1385 = vmatpush.bf16.msra.mxu0 %v816
    %1386 = vmatpush.bf16.msra.mxu0 %v812
    %1387 = vmatpush.bf16.msra.mxu0 %v808
    %1388 = vmatpush.bf16.msra.mxu0 %v804
    %1389 = vmatmul.bf16.gmra.mxu0 %v1351
    %v1390 = vpop.f32.mrf.mxu0
    %v1391 = vadd.f32 0.0, %v1390
    %v1392 = vpop.f32.mrf.mxu0
    %v1393 = vadd.f32 0.0, %v1392
    %1394 = vdwg.mxu0
    %1395 = vmatpush.bf16.msra.mxu0 %v833
    %1396 = vmatpush.bf16.msra.mxu0 %v829
    %1397 = vmatpush.bf16.msra.mxu0 %v825
    %1398 = vmatpush.bf16.msra.mxu0 %v821
    %1399 = vmatpush.bf16.msra.mxu0 %v817
    %1400 = vmatpush.bf16.msra.mxu0 %v813
    %1401 = vmatpush.bf16.msra.mxu0 %v809
    %1402 = vmatpush.bf16.msra.mxu0 %v805
    %1403 = vmatmul.bf16.gmra.mxu0 %v1351
    %v1404 = vpop.f32.mrf.mxu0
    %v1405 = vadd.f32 0.0, %v1404
    %v1406 = vpop.f32.mrf.mxu0
    %v1407 = vadd.f32 0.0, %v1406
    %1408 = vdwg.mxu0
    %v1409 = vadd.f32 %v1339, %v1363
    %v1410 = vadd.f32 %v1340, %v1377
    %v1411 = vadd.f32 %v1341, %v1391
    %v1412 = vadd.f32 %v1342, %v1405
    %v1413 = vadd.f32 %v1343, %v1365
    %v1414 = vadd.f32 %v1344, %v1379
    %v1415 = vadd.f32 %v1345, %v1393
    %v1416 = vadd.f32 %v1346, %v1407
    %v1417 = vmul.f32 %v1409, 0.5
    %v1418 = vmul.f32 %v1413, 0.5
    %v1419 = vtanh.pop %v1417
    %v1420 = vtanh.pop %v1418
    %v1421 = vmul.f32 %v1419, 0.5
    %v1422 = vmul.f32 %v1420, 0.5
    %v1423 = vadd.f32 %v1421, 0.5
    %v1424 = vadd.f32 %v1422, 0.5
    %v1425 = vmul.f32 %v1410, 0.5
    %v1426 = vmul.f32 %v1414, 0.5
    %v1427 = vtanh.pop %v1425
    %v1428 = vtanh.pop %v1426
    %v1429 = vmul.f32 %v1427, 0.5
    %v1430 = vmul.f32 %v1428, 0.5
    %v1431 = vadd.f32 %v1429, 0.5
    %v1432 = vadd.f32 %v1430, 0.5
    %v1433 = vtanh.pop %v1411
    %v1434 = vtanh.pop %v1415
    %v1435 = vmul.f32 %v1412, 0.5
    %v1436 = vmul.f32 %v1416, 0.5
    %v1437 = vtanh.pop %v1435
    %v1438 = vtanh.pop %v1436
    %v1439 = vmul.f32 %v1437, 0.5
    %v1440 = vmul.f32 %v1438, 0.5
    %v1441 = vadd.f32 %v1439, 0.5
    %v1442 = vadd.f32 %v1440, 0.5
    %v1443 = vmul.f32 %v1431, %v1325
    %v1444 = vmul.f32 %v1432, %v1326
    %v1445 = vmul.f32 %v1423, %v1433
    %v1446 = vmul.f32 %v1424, %v1434
    %v1447 = vadd.f32 %v1443, %v1445
    %v1448 = vadd.f32 %v1444, %v1446
    %v1449 = vtanh.pop %v1447
    %v1450 = vtanh.pop %v1448
    %v1451 = vmul.f32 %v1441, %v1449
    %v1452 = vmul.f32 %v1442, %v1450
    %v1453 = vpack.c.bf16 %v1451, %v1451
    %v1454 = vpack.c.bf16 %v1452, %v1452
    %s1455 = scalar_lea.vmem [#allocation16], 32
    %1456 = vst [vmem:[%s1455] sm:$0xf] %v1453
    %1457 = vst [vmem:[%s1455 + $0x4] sm:$0xf] %v1454
    %s1458 = smul.u32 10, 4
    %s1459 = smul.addr %s1458, 8
    %s1460 = scalar_lea.vmem [#allocation2], %s1459
    %v1461 = vld [vmem:[%s1460] sm:$0xff]
    %v1462 = vld [vmem:[%s1460 + $0x8] sm:$0xff]
    %v1463 = vld [vmem:[%s1460 + $0x10] sm:$0xff]
    %v1464 = vld [vmem:[%s1460 + $0x18] sm:$0xff]
    %v1465 = vld [vmem:[%s1460 + $0x20] sm:$0xff]
    %v1466 = vld [vmem:[%s1460 + $0x28] sm:$0xff]
    %v1467 = vld [vmem:[%s1460 + $0x30] sm:$0xff]
    %v1468 = vld [vmem:[%s1460 + $0x38] sm:$0xff]
    %v1471 = vunpack.c.l.b16 %v1453
    %v1472 = vunpack.c.l.b16 %v1454
    %v1473 = vpack.c.b16 %v1472, %v1471
    %1475 = vmatpush.bf16.msra.mxu0 %v830
    %1476 = vmatpush.bf16.msra.mxu0 %v826
    %1477 = vmatpush.bf16.msra.mxu0 %v822
    %1478 = vmatpush.bf16.msra.mxu0 %v818
    %1479 = vmatpush.bf16.msra.mxu0 %v814
    %1480 = vmatpush.bf16.msra.mxu0 %v810
    %1481 = vmatpush.bf16.msra.mxu0 %v806
    %1482 = vmatpush.bf16.msra.mxu0 %v802
    %1483 = vmatmul.bf16.gmra.mxu0 %v1473
    %v1484 = vpop.f32.mrf.mxu0
    %v1485 = vadd.f32 0.0, %v1484
    %v1486 = vpop.f32.mrf.mxu0
    %v1487 = vadd.f32 0.0, %v1486
    %1488 = vdwg.mxu0
    %1489 = vmatpush.bf16.msra.mxu0 %v831
    %1490 = vmatpush.bf16.msra.mxu0 %v827
    %1491 = vmatpush.bf16.msra.mxu0 %v823
    %1492 = vmatpush.bf16.msra.mxu0 %v819
    %1493 = vmatpush.bf16.msra.mxu0 %v815
    %1494 = vmatpush.bf16.msra.mxu0 %v811
    %1495 = vmatpush.bf16.msra.mxu0 %v807
    %1496 = vmatpush.bf16.msra.mxu0 %v803
    %1497 = vmatmul.bf16.gmra.mxu0 %v1473
    %v1498 = vpop.f32.mrf.mxu0
    %v1499 = vadd.f32 0.0, %v1498
    %v1500 = vpop.f32.mrf.mxu0
    %v1501 = vadd.f32 0.0, %v1500
    %1502 = vdwg.mxu0
    %1503 = vmatpush.bf16.msra.mxu0 %v832
    %1504 = vmatpush.bf16.msra.mxu0 %v828
    %1505 = vmatpush.bf16.msra.mxu0 %v824
    %1506 = vmatpush.bf16.msra.mxu0 %v820
    %1507 = vmatpush.bf16.msra.mxu0 %v816
    %1508 = vmatpush.bf16.msra.mxu0 %v812
    %1509 = vmatpush.bf16.msra.mxu0 %v808
    %1510 = vmatpush.bf16.msra.mxu0 %v804
    %1511 = vmatmul.bf16.gmra.mxu0 %v1473
    %v1512 = vpop.f32.mrf.mxu0
    %v1513 = vadd.f32 0.0, %v1512
    %v1514 = vpop.f32.mrf.mxu0
    %v1515 = vadd.f32 0.0, %v1514
    %1516 = vdwg.mxu0
    %1517 = vmatpush.bf16.msra.mxu0 %v833
    %1518 = vmatpush.bf16.msra.mxu0 %v829
    %1519 = vmatpush.bf16.msra.mxu0 %v825
    %1520 = vmatpush.bf16.msra.mxu0 %v821
    %1521 = vmatpush.bf16.msra.mxu0 %v817
    %1522 = vmatpush.bf16.msra.mxu0 %v813
    %1523 = vmatpush.bf16.msra.mxu0 %v809
    %1524 = vmatpush.bf16.msra.mxu0 %v805
    %1525 = vmatmul.bf16.gmra.mxu0 %v1473
    %v1526 = vpop.f32.mrf.mxu0
    %v1527 = vadd.f32 0.0, %v1526
    %v1528 = vpop.f32.mrf.mxu0
    %v1529 = vadd.f32 0.0, %v1528
    %1530 = vdwg.mxu0
    %v1531 = vadd.f32 %v1461, %v1485
    %v1532 = vadd.f32 %v1462, %v1499
    %v1533 = vadd.f32 %v1463, %v1513
    %v1534 = vadd.f32 %v1464, %v1527
    %v1535 = vadd.f32 %v1465, %v1487
    %v1536 = vadd.f32 %v1466, %v1501
    %v1537 = vadd.f32 %v1467, %v1515
    %v1538 = vadd.f32 %v1468, %v1529
    %v1539 = vmul.f32 %v1531, 0.5
    %v1540 = vmul.f32 %v1535, 0.5
    %v1541 = vtanh.pop %v1539
    %v1542 = vtanh.pop %v1540
    %v1543 = vmul.f32 %v1541, 0.5
    %v1544 = vmul.f32 %v1542, 0.5
    %v1545 = vadd.f32 %v1543, 0.5
    %v1546 = vadd.f32 %v1544, 0.5
    %v1547 = vmul.f32 %v1532, 0.5
    %v1548 = vmul.f32 %v1536, 0.5
    %v1549 = vtanh.pop %v1547
    %v1550 = vtanh.pop %v1548
    %v1551 = vmul.f32 %v1549, 0.5
    %v1552 = vmul.f32 %v1550, 0.5
    %v1553 = vadd.f32 %v1551, 0.5
    %v1554 = vadd.f32 %v1552, 0.5
    %v1555 = vtanh.pop %v1533
    %v1556 = vtanh.pop %v1537
    %v1557 = vmul.f32 %v1534, 0.5
    %v1558 = vmul.f32 %v1538, 0.5
    %v1559 = vtanh.pop %v1557
    %v1560 = vtanh.pop %v1558
    %v1561 = vmul.f32 %v1559, 0.5
    %v1562 = vmul.f32 %v1560, 0.5
    %v1563 = vadd.f32 %v1561, 0.5
    %v1564 = vadd.f32 %v1562, 0.5
    %v1565 = vmul.f32 %v1553, %v1447
    %v1566 = vmul.f32 %v1554, %v1448
    %v1567 = vmul.f32 %v1545, %v1555
    %v1568 = vmul.f32 %v1546, %v1556
    %v1569 = vadd.f32 %v1565, %v1567
    %v1570 = vadd.f32 %v1566, %v1568
    %v1571 = vtanh.pop %v1569
    %v1572 = vtanh.pop %v1570
    %v1573 = vmul.f32 %v1563, %v1571
    %v1574 = vmul.f32 %v1564, %v1572
    %v1575 = vpack.c.bf16 %v1573, %v1573
    %v1576 = vpack.c.bf16 %v1574, %v1574
    %s1577 = scalar_lea.vmem [#allocation16], 40
    %1578 = vst [vmem:[%s1577] sm:$0xf] %v1575
    %1579 = vst [vmem:[%s1577 + $0x4] sm:$0xf] %v1576
    %s1580 = smul.u32 12, 4
    %s1581 = smul.addr %s1580, 8
    %s1582 = scalar_lea.vmem [#allocation2], %s1581
    %v1583 = vld [vmem:[%s1582] sm:$0xff]
    %v1584 = vld [vmem:[%s1582 + $0x8] sm:$0xff]
    %v1585 = vld [vmem:[%s1582 + $0x10] sm:$0xff]
    %v1586 = vld [vmem:[%s1582 + $0x18] sm:$0xff]
    %v1587 = vld [vmem:[%s1582 + $0x20] sm:$0xff]
    %v1588 = vld [vmem:[%s1582 + $0x28] sm:$0xff]
    %v1589 = vld [vmem:[%s1582 + $0x30] sm:$0xff]
    %v1590 = vld [vmem:[%s1582 + $0x38] sm:$0xff]
    %v1593 = vunpack.c.l.b16 %v1575
    %v1594 = vunpack.c.l.b16 %v1576
    %v1595 = vpack.c.b16 %v1594, %v1593
    %1597 = vmatpush.bf16.msra.mxu0 %v830
    %1598 = vmatpush.bf16.msra.mxu0 %v826
    %1599 = vmatpush.bf16.msra.mxu0 %v822
    %1600 = vmatpush.bf16.msra.mxu0 %v818
    %1601 = vmatpush.bf16.msra.mxu0 %v814
    %1602 = vmatpush.bf16.msra.mxu0 %v810
    %1603 = vmatpush.bf16.msra.mxu0 %v806
    %1604 = vmatpush.bf16.msra.mxu0 %v802
    %1605 = vmatmul.bf16.gmra.mxu0 %v1595
    %v1606 = vpop.f32.mrf.mxu0
    %v1607 = vadd.f32 0.0, %v1606
    %v1608 = vpop.f32.mrf.mxu0
    %v1609 = vadd.f32 0.0, %v1608
    %1610 = vdwg.mxu0
    %1611 = vmatpush.bf16.msra.mxu0 %v831
    %1612 = vmatpush.bf16.msra.mxu0 %v827
    %1613 = vmatpush.bf16.msra.mxu0 %v823
    %1614 = vmatpush.bf16.msra.mxu0 %v819
    %1615 = vmatpush.bf16.msra.mxu0 %v815
    %1616 = vmatpush.bf16.msra.mxu0 %v811
    %1617 = vmatpush.bf16.msra.mxu0 %v807
    %1618 = vmatpush.bf16.msra.mxu0 %v803
    %1619 = vmatmul.bf16.gmra.mxu0 %v1595
    %v1620 = vpop.f32.mrf.mxu0
    %v1621 = vadd.f32 0.0, %v1620
    %v1622 = vpop.f32.mrf.mxu0
    %v1623 = vadd.f32 0.0, %v1622
    %1624 = vdwg.mxu0
    %1625 = vmatpush.bf16.msra.mxu0 %v832
    %1626 = vmatpush.bf16.msra.mxu0 %v828
    %1627 = vmatpush.bf16.msra.mxu0 %v824
    %1628 = vmatpush.bf16.msra.mxu0 %v820
    %1629 = vmatpush.bf16.msra.mxu0 %v816
    %1630 = vmatpush.bf16.msra.mxu0 %v812
    %1631 = vmatpush.bf16.msra.mxu0 %v808
    %1632 = vmatpush.bf16.msra.mxu0 %v804
    %1633 = vmatmul.bf16.gmra.mxu0 %v1595
    %v1634 = vpop.f32.mrf.mxu0
    %v1635 = vadd.f32 0.0, %v1634
    %v1636 = vpop.f32.mrf.mxu0
    %v1637 = vadd.f32 0.0, %v1636
    %1638 = vdwg.mxu0
    %1639 = vmatpush.bf16.msra.mxu0 %v833
    %1640 = vmatpush.bf16.msra.mxu0 %v829
    %1641 = vmatpush.bf16.msra.mxu0 %v825
    %1642 = vmatpush.bf16.msra.mxu0 %v821
    %1643 = vmatpush.bf16.msra.mxu0 %v817
    %1644 = vmatpush.bf16.msra.mxu0 %v813
    %1645 = vmatpush.bf16.msra.mxu0 %v809
    %1646 = vmatpush.bf16.msra.mxu0 %v805
    %1647 = vmatmul.bf16.gmra.mxu0 %v1595
    %v1648 = vpop.f32.mrf.mxu0
    %v1649 = vadd.f32 0.0, %v1648
    %v1650 = vpop.f32.mrf.mxu0
    %v1651 = vadd.f32 0.0, %v1650
    %1652 = vdwg.mxu0
    %v1653 = vadd.f32 %v1583, %v1607
    %v1654 = vadd.f32 %v1584, %v1621
    %v1655 = vadd.f32 %v1585, %v1635
    %v1656 = vadd.f32 %v1586, %v1649
    %v1657 = vadd.f32 %v1587, %v1609
    %v1658 = vadd.f32 %v1588, %v1623
    %v1659 = vadd.f32 %v1589, %v1637
    %v1660 = vadd.f32 %v1590, %v1651
    %v1661 = vmul.f32 %v1653, 0.5
    %v1662 = vmul.f32 %v1657, 0.5
    %v1663 = vtanh.pop %v1661
    %v1664 = vtanh.pop %v1662
    %v1665 = vmul.f32 %v1663, 0.5
    %v1666 = vmul.f32 %v1664, 0.5
    %v1667 = vadd.f32 %v1665, 0.5
    %v1668 = vadd.f32 %v1666, 0.5
    %v1669 = vmul.f32 %v1654, 0.5
    %v1670 = vmul.f32 %v1658, 0.5
    %v1671 = vtanh.pop %v1669
    %v1672 = vtanh.pop %v1670
    %v1673 = vmul.f32 %v1671, 0.5
    %v1674 = vmul.f32 %v1672, 0.5
    %v1675 = vadd.f32 %v1673, 0.5
    %v1676 = vadd.f32 %v1674, 0.5
    %v1677 = vtanh.pop %v1655
    %v1678 = vtanh.pop %v1659
    %v1679 = vmul.f32 %v1656, 0.5
    %v1680 = vmul.f32 %v1660, 0.5
    %v1681 = vtanh.pop %v1679
    %v1682 = vtanh.pop %v1680
    %v1683 = vmul.f32 %v1681, 0.5
    %v1684 = vmul.f32 %v1682, 0.5
    %v1685 = vadd.f32 %v1683, 0.5
    %v1686 = vadd.f32 %v1684, 0.5
    %v1687 = vmul.f32 %v1675, %v1569
    %v1688 = vmul.f32 %v1676, %v1570
    %v1689 = vmul.f32 %v1667, %v1677
    %v1690 = vmul.f32 %v1668, %v1678
    %v1691 = vadd.f32 %v1687, %v1689
    %v1692 = vadd.f32 %v1688, %v1690
    %v1693 = vtanh.pop %v1691
    %v1694 = vtanh.pop %v1692
    %v1695 = vmul.f32 %v1685, %v1693
    %v1696 = vmul.f32 %v1686, %v1694
    %v1697 = vpack.c.bf16 %v1695, %v1695
    %v1698 = vpack.c.bf16 %v1696, %v1696
    %s1699 = scalar_lea.vmem [#allocation16], 48
    %1700 = vst [vmem:[%s1699] sm:$0xf] %v1697
    %1701 = vst [vmem:[%s1699 + $0x4] sm:$0xf] %v1698
    %s1702 = smul.u32 14, 4
    %s1703 = smul.addr %s1702, 8
    %s1704 = scalar_lea.vmem [#allocation2], %s1703
    %v1705 = vld [vmem:[%s1704] sm:$0xff]
    %v1706 = vld [vmem:[%s1704 + $0x8] sm:$0xff]
    %v1707 = vld [vmem:[%s1704 + $0x10] sm:$0xff]
    %v1708 = vld [vmem:[%s1704 + $0x18] sm:$0xff]
    %v1709 = vld [vmem:[%s1704 + $0x20] sm:$0xff]
    %v1710 = vld [vmem:[%s1704 + $0x28] sm:$0xff]
    %v1711 = vld [vmem:[%s1704 + $0x30] sm:$0xff]
    %v1712 = vld [vmem:[%s1704 + $0x38] sm:$0xff]
    %v1715 = vunpack.c.l.b16 %v1697
    %v1716 = vunpack.c.l.b16 %v1698
    %v1717 = vpack.c.b16 %v1716, %v1715
    %1719 = vmatpush.bf16.msra.mxu0 %v830
    %1720 = vmatpush.bf16.msra.mxu0 %v826
    %1721 = vmatpush.bf16.msra.mxu0 %v822
    %1722 = vmatpush.bf16.msra.mxu0 %v818
    %1723 = vmatpush.bf16.msra.mxu0 %v814
    %1724 = vmatpush.bf16.msra.mxu0 %v810
    %1725 = vmatpush.bf16.msra.mxu0 %v806
    %1726 = vmatpush.bf16.msra.mxu0 %v802
    %1727 = vmatmul.bf16.gmra.mxu0 %v1717
    %v1728 = vpop.f32.mrf.mxu0
    %v1729 = vadd.f32 0.0, %v1728
    %v1730 = vpop.f32.mrf.mxu0
    %v1731 = vadd.f32 0.0, %v1730
    %1732 = vdwg.mxu0
    %1733 = vmatpush.bf16.msra.mxu0 %v831
    %1734 = vmatpush.bf16.msra.mxu0 %v827
    %1735 = vmatpush.bf16.msra.mxu0 %v823
    %1736 = vmatpush.bf16.msra.mxu0 %v819
    %1737 = vmatpush.bf16.msra.mxu0 %v815
    %1738 = vmatpush.bf16.msra.mxu0 %v811
    %1739 = vmatpush.bf16.msra.mxu0 %v807
    %1740 = vmatpush.bf16.msra.mxu0 %v803
    %1741 = vmatmul.bf16.gmra.mxu0 %v1717
    %v1742 = vpop.f32.mrf.mxu0
    %v1743 = vadd.f32 0.0, %v1742
    %v1744 = vpop.f32.mrf.mxu0
    %v1745 = vadd.f32 0.0, %v1744
    %1746 = vdwg.mxu0
    %1747 = vmatpush.bf16.msra.mxu0 %v832
    %1748 = vmatpush.bf16.msra.mxu0 %v828
    %1749 = vmatpush.bf16.msra.mxu0 %v824
    %1750 = vmatpush.bf16.msra.mxu0 %v820
    %1751 = vmatpush.bf16.msra.mxu0 %v816
    %1752 = vmatpush.bf16.msra.mxu0 %v812
    %1753 = vmatpush.bf16.msra.mxu0 %v808
    %1754 = vmatpush.bf16.msra.mxu0 %v804
    %1755 = vmatmul.bf16.gmra.mxu0 %v1717
    %v1756 = vpop.f32.mrf.mxu0
    %v1757 = vadd.f32 0.0, %v1756
    %v1758 = vpop.f32.mrf.mxu0
    %v1759 = vadd.f32 0.0, %v1758
    %1760 = vdwg.mxu0
    %1761 = vmatpush.bf16.msra.mxu0 %v833
    %1762 = vmatpush.bf16.msra.mxu0 %v829
    %1763 = vmatpush.bf16.msra.mxu0 %v825
    %1764 = vmatpush.bf16.msra.mxu0 %v821
    %1765 = vmatpush.bf16.msra.mxu0 %v817
    %1766 = vmatpush.bf16.msra.mxu0 %v813
    %1767 = vmatpush.bf16.msra.mxu0 %v809
    %1768 = vmatpush.bf16.msra.mxu0 %v805
    %1769 = vmatmul.bf16.gmra.mxu0 %v1717
    %v1770 = vpop.f32.mrf.mxu0
    %v1771 = vadd.f32 0.0, %v1770
    %v1772 = vpop.f32.mrf.mxu0
    %v1773 = vadd.f32 0.0, %v1772
    %1774 = vdwg.mxu0
    %v1775 = vadd.f32 %v1705, %v1729
    %v1776 = vadd.f32 %v1706, %v1743
    %v1777 = vadd.f32 %v1707, %v1757
    %v1778 = vadd.f32 %v1708, %v1771
    %v1779 = vadd.f32 %v1709, %v1731
    %v1780 = vadd.f32 %v1710, %v1745
    %v1781 = vadd.f32 %v1711, %v1759
    %v1782 = vadd.f32 %v1712, %v1773
    %v1783 = vmul.f32 %v1775, 0.5
    %v1784 = vmul.f32 %v1779, 0.5
    %v1785 = vtanh.pop %v1783
    %v1786 = vtanh.pop %v1784
    %v1787 = vmul.f32 %v1785, 0.5
    %v1788 = vmul.f32 %v1786, 0.5
    %v1789 = vadd.f32 %v1787, 0.5
    %v1790 = vadd.f32 %v1788, 0.5
    %v1791 = vmul.f32 %v1776, 0.5
    %v1792 = vmul.f32 %v1780, 0.5
    %v1793 = vtanh.pop %v1791
    %v1794 = vtanh.pop %v1792
    %v1795 = vmul.f32 %v1793, 0.5
    %v1796 = vmul.f32 %v1794, 0.5
    %v1797 = vadd.f32 %v1795, 0.5
    %v1798 = vadd.f32 %v1796, 0.5
    %v1799 = vtanh.pop %v1777
    %v1800 = vtanh.pop %v1781
    %v1801 = vmul.f32 %v1778, 0.5
    %v1802 = vmul.f32 %v1782, 0.5
    %v1803 = vtanh.pop %v1801
    %v1804 = vtanh.pop %v1802
    %v1805 = vmul.f32 %v1803, 0.5
    %v1806 = vmul.f32 %v1804, 0.5
    %v1807 = vadd.f32 %v1805, 0.5
    %v1808 = vadd.f32 %v1806, 0.5
    %v1809 = vmul.f32 %v1797, %v1691
    %v1810 = vmul.f32 %v1798, %v1692
    %v1811 = vmul.f32 %v1789, %v1799
    %v1812 = vmul.f32 %v1790, %v1800
    %v1813 = vadd.f32 %v1809, %v1811
    %v1814 = vadd.f32 %v1810, %v1812
    %v1815 = vtanh.pop %v1813
    %v1816 = vtanh.pop %v1814
    %v1817 = vmul.f32 %v1807, %v1815
    %v1818 = vmul.f32 %v1808, %v1816
    %v1819 = vpack.c.bf16 %v1817, %v1817
    %v1820 = vpack.c.bf16 %v1818, %v1818
    %s1821 = scalar_lea.vmem [#allocation16], 56
    %1822 = vst [vmem:[%s1821] sm:$0xf] %v1819
    %1823 = vst [vmem:[%s1821 + $0x4] sm:$0xf] %v1820
    %1824 = vst [vmem:[#allocation3] sm:$0xff] %v1817
    %1825 = vst [vmem:[#allocation3 + $0x8] sm:$0xff] %v1818
    %1826 = vst [vmem:[#allocation4] sm:$0xff] %v1813
    %1827 = vst [vmem:[#allocation4 + $0x8] sm:$0xff] %v1814
    // Predicated region
    $region54: #{tpu_custom_call.1} parent=1 // pred_check
      %p1828 = pneg %p120
    $region55: #{tpu_custom_call.1} parent=1 // pred_check_branch
      %1830 = sbr.rel (%p1828) target = $region57
    $region56: #{tpu_custom_call.1} parent=1 // pred_region
      %1831 = vst [vmem:[#allocation17] sm:$0xff] %v1817
      %1832 = vst [vmem:[#allocation17 + $0x8] sm:$0xff] %v1818
      %1833 = vst [vmem:[#allocation19] sm:$0xff] %v1813
      %1834 = vst [vmem:[#allocation19 + $0x8] sm:$0xff] %v1814
    $region57: #{tpu_custom_call.1} parent=1 // pred_fallthru
      _
    // Predicated region
    $region58: #{tpu_custom_call.1} parent=1 // pred_check
      _
    $region59: #{tpu_custom_call.1} parent=1 // pred_check_branch
      %1836 = sbr.rel (0) target = $region61
    $region60: #{tpu_custom_call.1} parent=1 // pred_region
      %1838 = vsyncadd [#allocation7], 0
      %s1839 = sshll.u32 [#allocation16], 4
      %s1840 = int_to_ptr.vmem [resolvable:$true] %s1839
      %s1841 = sshll.u32 %s6, 4
      %s1842 = int_to_ptr.hbm [resolvable:$true] %s1841
      %1847 = dma.vmem_to_hbm [thread:$0]  %s1840, 1024, %s1842, [#allocation7], 64, 64, 4
    $region61: #{tpu_custom_call.1} parent=1 // pred_fallthru
      _
    // Predicated region
    $region62: #{tpu_custom_call.1} parent=1 // pred_check
      _
    $region63: #{tpu_custom_call.1} parent=1 // pred_check_branch
      %1849 = sbr.rel (0) target = $region65
    $region64: #{tpu_custom_call.1} parent=1 // pred_region
      %1851 = vsyncadd [#allocation18], 0
      %s1852 = sshll.u32 [#allocation17], 4
      %s1853 = int_to_ptr.vmem [resolvable:$true] %s1852
      %s1854 = sshll.u32 %s7, 4
      %s1855 = int_to_ptr.hbm [resolvable:$true] %s1854
      %1860 = dma.vmem_to_hbm [thread:$0]  %s1853, 256, %s1855, [#allocation18], 128, 128, 8
    $region65: #{tpu_custom_call.1} parent=1 // pred_fallthru
      _
    // Predicated region
    $region66: #{tpu_custom_call.1} parent=1 // pred_check
      _
    $region67: #{tpu_custom_call.1} parent=1 // pred_check_branch
      %1862 = sbr.rel (0) target = $region69
    $region68: #{tpu_custom_call.1} parent=1 // pred_region
      %1864 = vsyncadd [#allocation18], 0
      %s1865 = sshll.u32 [#allocation19], 4
      %s1866 = int_to_ptr.vmem [resolvable:$true] %s1865
      %s1867 = sshll.u32 %s8, 4
      %s1868 = int_to_ptr.hbm [resolvable:$true] %s1867
      %1873 = dma.vmem_to_hbm [thread:$0]  %s1866, 256, %s1868, [#allocation18], 128, 128, 8
    $region69: #{tpu_custom_call.1} parent=1 // pred_fallthru
      _
    // Predicated region
    $region70: #{tpu_custom_call.1} parent=1 // pred_check
      _
    $region71: #{tpu_custom_call.1} parent=1 // pred_check_branch
      %1875 = sbr.rel (0) target = $region73
    $region72: #{tpu_custom_call.1} parent=1 // pred_region
      %1877 = dma.done [#allocation7], 1024
    $region73: #{tpu_custom_call.1} parent=1 // pred_fallthru
      _
    // Predicated region
    $region74: #{tpu_custom_call.1} parent=1 // pred_check
      _
    $region75: #{tpu_custom_call.1} parent=1 // pred_check_branch
      %1879 = sbr.rel (0) target = $region77
    $region76: #{tpu_custom_call.1} parent=1 // pred_region
      %1881 = dma.done [#allocation18], 256
    $region77: #{tpu_custom_call.1} parent=1 // pred_fallthru
      _
    // Predicated region
    $region78: #{tpu_custom_call.1} parent=1 // pred_check
      _
    $region79: #{tpu_custom_call.1} parent=1 // pred_check_branch
      %1883 = sbr.rel (0) target = $region81
    $region80: #{tpu_custom_call.1} parent=1 // pred_region
      %1885 = dma.done [#allocation18], 256
    $region81: #{tpu_custom_call.1} parent=1 // pred_fallthru
      _
    %1886 = vsyncpa [#allocation6], 1
    %1887 = vsyncpa [#allocation9], 1
    %1888 = vsyncpa [#allocation12], 1
    %1889 = vsyncpa [#allocation15], 1
    %1890 = vsyncpa [#allocation7], 1
    %1891 = vsyncpa [#allocation18], 1

</llo_original>
